<compile_context>
chip_gen: v7x
topology: tpu7x:2x2x1
jax: 0.10.0
libtpu: 0.0.40
codegen_flags: <defaults>
</compile_context>

<pallas_src>
import jax
import jax.numpy as jnp
from jax import lax
from jax.experimental import pallas as pl
from jax.experimental.pallas import tpu as pltpu

# ----------------------------- configuration --------------------------------
IN_FEATURES = 8
ENCODER_CHANNELS = [32, 16]          # encoder MLP: 8 -> 32 -> 16
ENCODER_FEATURES = ENCODER_CHANNELS[-1]
CONV_CHANNELS = [32, 32]             # GNN: FSConv(16->32) -> relu/bn -> FSConv(32->32)
DECODER_CHANNELS = [32]              # decoder MLP: 32 -> 32 -> num_classes
NUM_CLASSES = 5
NUM_HEADS = 4
NUM_NODES = 64
OUT_PAD = 128                        # lane-dense decoder output slab width
BN_EPS = 1e-5

assert NUM_HEADS == 4, "head-softmax lane folds below are written for 4 heads"

# ------------- packed-parameter slab layout (width = 128 lanes) ---------------
P_COLS = 128
O_EW1, O_EB1 = 0, 8                  # encoder Linear(8,32)   weight (8,32)  / bias (1,32)
O_EW2, O_EB2 = 16, 48                # encoder Linear(32,16)  weight (32,16) / bias (1,16)
O_DW1, O_DB1 = 56, 88                # decoder Linear(32,32)  weight (32,32) / bias (1,32)
O_DW2, O_DB2 = 96, 128               # decoder Linear(32,5)   zero-padded to 128 lanes
O_C1W, O_C1U, O_C1CB = 136, 152, 168  # conv1: W (16,128), u (16,4), c/bias row
O_C2W, O_C2U, O_C2CB = 176, 208, 240  # conv2: W (32,128), u (32,4), c/bias row
CB_BIAS_COL = 8                      # conv bias column offset inside the c/bias row
P_ROWS = 248                         # (248, 128) f32  ~= 124 KiB -> one DMA


# ------------------------------ fused kernel ---------------------------------
def mesh_seg_kernel(x_ref, adj_ref, p_ref, o_ref):
    f32 = jnp.float32
    n = adj_ref.shape[0]
    e0, e1 = ENCODER_CHANNELS
    d0 = DECODER_CHANNELS[0]
    cv = CONV_CHANNELS[0]            # == CONV_CHANNELS[1] == 32

    x = x_ref[...]
    adj = adj_ref[...]

    # -------- input encoder: Linear(8,32) -> ReLU -> Linear(32,16) --------
    h = jnp.dot(x, p_ref[O_EW1:O_EW1 + IN_FEATURES, 0:e0],
                preferred_element_type=f32) + p_ref[O_EB1:O_EB1 + 1, 0:e0]
    h = jnp.maximum(h, 0.0)
    h = jnp.dot(h, p_ref[O_EW2:O_EW2 + e0, 0:e1],
                preferred_element_type=f32) + p_ref[O_EB2:O_EB2 + 1, 0:e1]

    # -------- graph factor shared by both conv layers --------
    deg = jnp.sum(adj, axis=1, keepdims=True)   # in-degree incl. self-loop (>= 1)
    masked = adj / deg                          # exact; folds the 'mean' aggregation

    def fsconv(feat, cin, o_w, o_u, o_cb):
        w = p_ref[o_w:o_w + cin, :]                               # (cin, H*Cout) lane-concat
        u = p_ref[o_u:o_u + cin, 0:NUM_HEADS]                     # (cin, H)
        c = p_ref[o_cb:o_cb + 1, 0:NUM_HEADS]                     # (1, H)
        b = p_ref[o_cb:o_cb + 1, CB_BIAS_COL:CB_BIAS_COL + cv]    # (1, Cout)

        # per-head linear outputs, lane-concatenated: ONE lane-dense MXU pass
        lin = jnp.dot(feat, w, preferred_element_type=f32)        # (N, H*Cout) = (64,128)

        # translation-invariant attention logits on a lane-dense (N, H*N) slab:
        #   logit_h[i, j] = u_h.(x_i - x_j) + c_h = (xu[i,h] + c_h) - xu[j,h]
        xu = jnp.dot(feat, u, preferred_element_type=f32)         # (N, H)
        xuc = xu + c                                              # fold +c once
        xut = jnp.transpose(xu)                                   # (H, N); tiny, proven lowering
        blocks = [xuc[:, k:k + 1] - xut[k:k + 1, :] for k in range(NUM_HEADS)]
        m = jnp.maximum(jnp.maximum(blocks[0], blocks[1]),
                        jnp.maximum(blocks[2], blocks[3]))        # per-edge max over heads
        logits = jnp.concatenate([blk - m for blk in blocks], axis=1)   # (N, H*N) = (64,256)

        # head softmax: exp on the full 256-lane slab; head-sum via vreg-aligned folds
        ex = jnp.exp(logits)
        s = ex[:, :2 * n] + ex[:, 2 * n:]      # heads {0,2} + {1,3}   (128-lane aligned)
        den = s[:, :n] + s[:, n:]              # full softmax denominator, (N, N)
        # fold adjacency mask + 1/deg + 1/denominator into ONE per-edge factor (exact)
        factor = masked / den
        att = ex * jnp.concatenate([factor] * NUM_HEADS, axis=1)  # (N, H*N)

        # aggregation: out = bias + sum_h A_h @ L_h, accumulated in f32 vregs (no scratch)
        acc = b
        for k in range(NUM_HEADS):
            acc = acc + jnp.dot(att[:, k * n:(k + 1) * n],
                                lin[:, k * cv:(k + 1) * cv],
                                preferred_element_type=f32)
        return acc

    # -------- GNN: FSConv -> ReLU -> BatchNorm1d (train mode) -> FSConv --------
    h = fsconv(h, ENCODER_FEATURES, O_C1W, O_C1U, O_C1CB)
    h = jnp.maximum(h, 0.0)
    mean = jnp.mean(h, axis=0, keepdims=True)
    var = jnp.mean((h - mean) ** 2, axis=0, keepdims=True)        # biased batch variance
    h = (h - mean) * lax.rsqrt(var + BN_EPS)                      # gamma=1, beta=0
    h = fsconv(h, CONV_CHANNELS[0], O_C2W, O_C2U, O_C2CB)

    # -------- decoder: Linear(32,32) -> ReLU -> Linear(32, padded 128) --------
    h = jnp.dot(h, p_ref[O_DW1:O_DW1 + cv, 0:d0],
                preferred_element_type=f32) + p_ref[O_DB1:O_DB1 + 1, 0:d0]
    h = jnp.maximum(h, 0.0)
    out = jnp.dot(h, p_ref[O_DW2:O_DW2 + d0, :],
                  preferred_element_type=f32) + p_ref[O_DB2:O_DB2 + 1, :]
    o_ref[...] = out.astype(o_ref.dtype)                          # lane-dense (N,128) store


# --------------------------------- wrapper -----------------------------------
def pack_params(params):
    """Pack all MeshSeg parameters into ONE (248, 128) f32 slab (single DMA).

    Called once at setup, OUTSIDE the per-call jitted path, so the kernel is not
    preceded by a string of tiny XLA packing/padding ops.
    """
    p = jnp.zeros((P_ROWS, P_COLS), jnp.float32)

    def put(p, row, col, a):
        return p.at[row:row + a.shape[0], col:col + a.shape[1]].set(a)

    p = put(p, O_EW1, 0, params["enc_w1"]); p = put(p, O_EB1, 0, params["enc_b1"])
    p = put(p, O_EW2, 0, params["enc_w2"]); p = put(p, O_EB2, 0, params["enc_b2"])
    p = put(p, O_DW1, 0, params["dec_w1"]); p = put(p, O_DB1, 0, params["dec_b1"])
    p = put(p, O_DW2, 0, params["dec_w2"]); p = put(p, O_DB2, 0, params["dec_b2"])  # zero-padded
    p = put(p, O_C1W, 0, params["c1_w"]);   p = put(p, O_C1U, 0, params["c1_u"])
    p = put(p, O_C1CB, 0, params["c1_c"]);  p = put(p, O_C1CB, CB_BIAS_COL, params["c1_b"])
    p = put(p, O_C2W, 0, params["c2_w"]);   p = put(p, O_C2U, 0, params["c2_u"])
    p = put(p, O_C2CB, 0, params["c2_c"]);  p = put(p, O_C2CB, CB_BIAS_COL, params["c2_b"])
    return p


@jax.jit
def mesh_seg_forward(x, adj, packed_params):
    n = x.shape[0]
    out_padded = pl.pallas_call(
        mesh_seg_kernel,
        out_shape=jax.ShapeDtypeStruct((n, OUT_PAD), jnp.float32),
        in_specs=[pl.BlockSpec(memory_space=pltpu.MemorySpace.VMEM) for _ in range(3)],
        out_specs=pl.BlockSpec(memory_space=pltpu.MemorySpace.VMEM),
        cost_estimate=pl.CostEstimate(flops=6_000_000, transcendentals=40_000,
                                      bytes_accessed=180_000),
    )(x, adj, packed_params)
    return out_padded[:, :NUM_CLASSES]


# ------------------------------ parameter init -------------------------------
def init_params(key):
    ks = iter(jax.random.split(key, 32))

    def unif(shape):
        return jax.random.uniform(next(ks), shape, jnp.float32)

    def norm01(shape):
        return 0.1 * jax.random.normal(next(ks), shape, jnp.float32)

    p = {}
    # input encoder MLP: Linear(8,32) + ReLU, Linear(32,16)
    p["enc_w1"] = 0.1 * unif((IN_FEATURES, ENCODER_CHANNELS[0]))
    p["enc_b1"] = jnp.zeros((1, ENCODER_CHANNELS[0]), jnp.float32)
    p["enc_w2"] = 0.1 * unif((ENCODER_CHANNELS[0], ENCODER_CHANNELS[1]))
    p["enc_b2"] = jnp.zeros((1, ENCODER_CHANNELS[1]), jnp.float32)

    # FeatureSteeredConv layers (linear/u: uniform init, c/bias: N(0, 0.1))
    cin = ENCODER_FEATURES
    for li, cout in enumerate(CONV_CHANNELS, start=1):
        p[f"c{li}_w"] = unif((cin, NUM_HEADS * cout))     # linear (no bias), lane-concat heads
        p[f"c{li}_u"] = unif((cin, NUM_HEADS))            # u      (no bias)
        p[f"c{li}_c"] = norm01((1, NUM_HEADS))
        p[f"c{li}_b"] = norm01((1, cout))
        cin = cout

    # final projection MLP: Linear(32,32) + ReLU, Linear(32,num_classes)
    p["dec_w1"] = 0.1 * unif((CONV_CHANNELS[-1], DECODER_CHANNELS[0]))
    p["dec_b1"] = jnp.zeros((1, DECODER_CHANNELS[0]), jnp.float32)
    p["dec_w2"] = 0.1 * unif((DECODER_CHANNELS[0], NUM_CLASSES))
    p["dec_b2"] = jnp.zeros((1, NUM_CLASSES), jnp.float32)
    return p


if __name__ == "__main__":
    key = jax.random.PRNGKey(0)
    kx, kp = jax.random.split(key)

    # node features (N, in_features)
    x = jax.random.normal(kx, (NUM_NODES, IN_FEATURES), jnp.float32)

    # ring graph: undirected edges (i, i+1 mod N), plus self-loops (dense adjacency)
    eye = jnp.eye(NUM_NODES, dtype=jnp.float32)
    adj = jnp.clip(eye + jnp.roll(eye, 1, axis=1) + jnp.roll(eye, -1, axis=1), 0.0, 1.0)

    params = init_params(kp)
    packed = pack_params(params)     # one-time packing, outside the per-call path

    out = mesh_seg_forward(x, adj, packed)
    out = jax.block_until_ready(out)
    assert out.shape == (NUM_NODES, NUM_CLASSES)
    assert bool(jnp.all(jnp.isfinite(out)))
    print("KERNEL_OK")
</pallas_src>

<mosaic_0001>
module attributes {stable_mosaic.version = 11 : i64} {
  func.func @mesh_seg_kernel(%arg0: memref<64x8xf32, #tpu.memory_space<vmem>>, %arg1: memref<64x64xf32, #tpu.memory_space<vmem>>, %arg2: memref<248x128xf32, #tpu.memory_space<vmem>>, %arg3: memref<64x128xf32, #tpu.memory_space<vmem>>) attributes {dimension_semantics = [], scalar_prefetch = 0 : i64, scratch_operands = 0 : i64, tpu.core_type = #tpu.core_type<tc>} {
    %c0 = arith.constant 0 : index
    %c0_0 = arith.constant 0 : index
    %0 = vector.load %arg0[%c0, %c0_0] : memref<64x8xf32, #tpu.memory_space<vmem>>, vector<64x8xf32>
    %c0_1 = arith.constant 0 : index
    %c0_2 = arith.constant 0 : index
    %1 = vector.load %arg1[%c0_1, %c0_2] : memref<64x64xf32, #tpu.memory_space<vmem>>, vector<64x64xf32>
    %c0_3 = arith.constant 0 : index
    %c0_4 = arith.constant 0 : index
    %2 = vector.load %arg2[%c0_3, %c0_4] : memref<248x128xf32, #tpu.memory_space<vmem>>, vector<8x32xf32>
    %cst = arith.constant dense<0.000000e+00> : vector<64x32xf32>
    %3 = tpu.matmul %0, %2, %cst {dimension_numbers = #tpu.dot_dimension_numbers<[1], [0], [0], [1], [0, 0, 1, 1], [], []>} : vector<64x8xf32>, vector<8x32xf32>, vector<64x32xf32> -> vector<64x32xf32>
    %c8 = arith.constant 8 : index
    %c0_5 = arith.constant 0 : index
    %4 = vector.load %arg2[%c8, %c0_5] : memref<248x128xf32, #tpu.memory_space<vmem>>, vector<1x32xf32>
    %5 = vector.broadcast %4 : vector<1x32xf32> to vector<64x32xf32>
    %6 = arith.addf %3, %5 : vector<64x32xf32>
    %cst_6 = arith.constant 0.000000e+00 : f32
    %7 = vector.broadcast %cst_6 : f32 to vector<64x32xf32>
    %8 = arith.maximumf %6, %7 : vector<64x32xf32>
    %c16 = arith.constant 16 : index
    %c0_7 = arith.constant 0 : index
    %9 = vector.load %arg2[%c16, %c0_7] : memref<248x128xf32, #tpu.memory_space<vmem>>, vector<32x16xf32>
    %cst_8 = arith.constant dense<0.000000e+00> : vector<64x16xf32>
    %10 = tpu.matmul %8, %9, %cst_8 {dimension_numbers = #tpu.dot_dimension_numbers<[1], [0], [0], [1], [0, 0, 1, 1], [], []>} : vector<64x32xf32>, vector<32x16xf32>, vector<64x16xf32> -> vector<64x16xf32>
    %c48 = arith.constant 48 : index
    %c0_9 = arith.constant 0 : index
    %11 = vector.load %arg2[%c48, %c0_9] : memref<248x128xf32, #tpu.memory_space<vmem>>, vector<1x16xf32>
    %12 = vector.broadcast %11 : vector<1x16xf32> to vector<64x16xf32>
    %13 = arith.addf %10, %12 : vector<64x16xf32>
    %cst_10 = arith.constant dense<0.000000e+00> : vector<64xf32>
    %14 = vector.multi_reduction <add>, %1, %cst_10 [1] : vector<64x64xf32> to vector<64xf32>
    %15 = vector.shape_cast %14 : vector<64xf32> to vector<64x1xf32>
    %16 = vector.broadcast %15 : vector<64x1xf32> to vector<64x64xf32>
    %17 = arith.divf %1, %16 : vector<64x64xf32>
    %c136 = arith.constant 136 : index
    %c0_11 = arith.constant 0 : index
    %18 = vector.load %arg2[%c136, %c0_11] : memref<248x128xf32, #tpu.memory_space<vmem>>, vector<16x128xf32>
    %c152 = arith.constant 152 : index
    %c0_12 = arith.constant 0 : index
    %19 = vector.load %arg2[%c152, %c0_12] : memref<248x128xf32, #tpu.memory_space<vmem>>, vector<16x4xf32>
    %c168 = arith.constant 168 : index
    %c0_13 = arith.constant 0 : index
    %20 = vector.load %arg2[%c168, %c0_13] : memref<248x128xf32, #tpu.memory_space<vmem>>, vector<1x4xf32>
    %c168_14 = arith.constant 168 : index
    %c8_15 = arith.constant 8 : index
    %21 = vector.load %arg2[%c168_14, %c8_15] : memref<248x128xf32, #tpu.memory_space<vmem>>, vector<1x32xf32>
    %cst_16 = arith.constant dense<0.000000e+00> : vector<64x128xf32>
    %22 = tpu.matmul %13, %18, %cst_16 {dimension_numbers = #tpu.dot_dimension_numbers<[1], [0], [0], [1], [0, 0, 1, 1], [], []>} : vector<64x16xf32>, vector<16x128xf32>, vector<64x128xf32> -> vector<64x128xf32>
    %cst_17 = arith.constant dense<0.000000e+00> : vector<64x4xf32>
    %23 = tpu.matmul %13, %19, %cst_17 {dimension_numbers = #tpu.dot_dimension_numbers<[1], [0], [0], [1], [0, 0, 1, 1], [], []>} : vector<64x16xf32>, vector<16x4xf32>, vector<64x4xf32> -> vector<64x4xf32>
    %24 = vector.broadcast %20 : vector<1x4xf32> to vector<64x4xf32>
    %25 = arith.addf %23, %24 : vector<64x4xf32>
    %26 = tpu.transpose %23, [1, 0] : vector<64x4xf32> -> vector<4x64xf32>
    %27 = vector.extract_strided_slice %25 {offsets = [0, 0], sizes = [64, 1], strides = [1, 1]} : vector<64x4xf32> to vector<64x1xf32>
    %28 = vector.extract_strided_slice %26 {offsets = [0, 0], sizes = [1, 64], strides = [1, 1]} : vector<4x64xf32> to vector<1x64xf32>
    %29 = vector.broadcast %27 : vector<64x1xf32> to vector<64x64xf32>
    %30 = vector.broadcast %28 : vector<1x64xf32> to vector<64x64xf32>
    %31 = arith.subf %29, %30 : vector<64x64xf32>
    %32 = vector.extract_strided_slice %25 {offsets = [0, 1], sizes = [64, 1], strides = [1, 1]} : vector<64x4xf32> to vector<64x1xf32>
    %33 = vector.extract_strided_slice %26 {offsets = [1, 0], sizes = [1, 64], strides = [1, 1]} : vector<4x64xf32> to vector<1x64xf32>
    %34 = vector.broadcast %32 : vector<64x1xf32> to vector<64x64xf32>
    %35 = vector.broadcast %33 : vector<1x64xf32> to vector<64x64xf32>
    %36 = arith.subf %34, %35 : vector<64x64xf32>
    %37 = vector.extract_strided_slice %25 {offsets = [0, 2], sizes = [64, 1], strides = [1, 1]} : vector<64x4xf32> to vector<64x1xf32>
    %38 = vector.extract_strided_slice %26 {offsets = [2, 0], sizes = [1, 64], strides = [1, 1]} : vector<4x64xf32> to vector<1x64xf32>
    %39 = vector.broadcast %37 : vector<64x1xf32> to vector<64x64xf32>
    %40 = vector.broadcast %38 : vector<1x64xf32> to vector<64x64xf32>
    %41 = arith.subf %39, %40 : vector<64x64xf32>
    %42 = vector.extract_strided_slice %25 {offsets = [0, 3], sizes = [64, 1], strides = [1, 1]} : vector<64x4xf32> to vector<64x1xf32>
    %43 = vector.extract_strided_slice %26 {offsets = [3, 0], sizes = [1, 64], strides = [1, 1]} : vector<4x64xf32> to vector<1x64xf32>
    %44 = vector.broadcast %42 : vector<64x1xf32> to vector<64x64xf32>
    %45 = vector.broadcast %43 : vector<1x64xf32> to vector<64x64xf32>
    %46 = arith.subf %44, %45 : vector<64x64xf32>
    %47 = arith.maximumf %31, %36 : vector<64x64xf32>
    %48 = arith.maximumf %41, %46 : vector<64x64xf32>
    %49 = arith.maximumf %47, %48 : vector<64x64xf32>
    %50 = arith.subf %31, %49 : vector<64x64xf32>
    %51 = arith.subf %36, %49 : vector<64x64xf32>
    %52 = arith.subf %41, %49 : vector<64x64xf32>
    %53 = arith.subf %46, %49 : vector<64x64xf32>
    %54 = tpu.concatenate %50, %51, %52, %53 in 1 : vector<64x64xf32>, vector<64x64xf32>, vector<64x64xf32>, vector<64x64xf32> -> vector<64x256xf32>
    %55 = math.exp %54 : vector<64x256xf32>
    %56 = vector.extract_strided_slice %55 {offsets = [0, 0], sizes = [64, 128], strides = [1, 1]} : vector<64x256xf32> to vector<64x128xf32>
    %57 = vector.extract_strided_slice %55 {offsets = [0, 128], sizes = [64, 128], strides = [1, 1]} : vector<64x256xf32> to vector<64x128xf32>
    %58 = arith.addf %56, %57 : vector<64x128xf32>
    %59 = vector.extract_strided_slice %58 {offsets = [0, 0], sizes = [64, 64], strides = [1, 1]} : vector<64x128xf32> to vector<64x64xf32>
    %60 = vector.extract_strided_slice %58 {offsets = [0, 64], sizes = [64, 64], strides = [1, 1]} : vector<64x128xf32> to vector<64x64xf32>
    %61 = arith.addf %59, %60 : vector<64x64xf32>
    %62 = arith.divf %17, %61 : vector<64x64xf32>
    %63 = tpu.concatenate %62, %62, %62, %62 in 1 : vector<64x64xf32>, vector<64x64xf32>, vector<64x64xf32>, vector<64x64xf32> -> vector<64x256xf32>
    %64 = arith.mulf %55, %63 : vector<64x256xf32>
    %65 = vector.extract_strided_slice %64 {offsets = [0, 0], sizes = [64, 64], strides = [1, 1]} : vector<64x256xf32> to vector<64x64xf32>
    %66 = vector.extract_strided_slice %22 {offsets = [0, 0], sizes = [64, 32], strides = [1, 1]} : vector<64x128xf32> to vector<64x32xf32>
    %cst_18 = arith.constant dense<0.000000e+00> : vector<64x32xf32>
    %67 = tpu.matmul %65, %66, %cst_18 {dimension_numbers = #tpu.dot_dimension_numbers<[1], [0], [0], [1], [0, 0, 1, 1], [], []>} : vector<64x64xf32>, vector<64x32xf32>, vector<64x32xf32> -> vector<64x32xf32>
    %68 = vector.broadcast %21 : vector<1x32xf32> to vector<64x32xf32>
    %69 = arith.addf %68, %67 : vector<64x32xf32>
    %70 = vector.extract_strided_slice %64 {offsets = [0, 64], sizes = [64, 64], strides = [1, 1]} : vector<64x256xf32> to vector<64x64xf32>
    %71 = vector.extract_strided_slice %22 {offsets = [0, 32], sizes = [64, 32], strides = [1, 1]} : vector<64x128xf32> to vector<64x32xf32>
    %cst_19 = arith.constant dense<0.000000e+00> : vector<64x32xf32>
    %72 = tpu.matmul %70, %71, %cst_19 {dimension_numbers = #tpu.dot_dimension_numbers<[1], [0], [0], [1], [0, 0, 1, 1], [], []>} : vector<64x64xf32>, vector<64x32xf32>, vector<64x32xf32> -> vector<64x32xf32>
    %73 = arith.addf %69, %72 : vector<64x32xf32>
    %74 = vector.extract_strided_slice %64 {offsets = [0, 128], sizes = [64, 64], strides = [1, 1]} : vector<64x256xf32> to vector<64x64xf32>
    %75 = vector.extract_strided_slice %22 {offsets = [0, 64], sizes = [64, 32], strides = [1, 1]} : vector<64x128xf32> to vector<64x32xf32>
    %cst_20 = arith.constant dense<0.000000e+00> : vector<64x32xf32>
    %76 = tpu.matmul %74, %75, %cst_20 {dimension_numbers = #tpu.dot_dimension_numbers<[1], [0], [0], [1], [0, 0, 1, 1], [], []>} : vector<64x64xf32>, vector<64x32xf32>, vector<64x32xf32> -> vector<64x32xf32>
    %77 = arith.addf %73, %76 : vector<64x32xf32>
    %78 = vector.extract_strided_slice %64 {offsets = [0, 192], sizes = [64, 64], strides = [1, 1]} : vector<64x256xf32> to vector<64x64xf32>
    %79 = vector.extract_strided_slice %22 {offsets = [0, 96], sizes = [64, 32], strides = [1, 1]} : vector<64x128xf32> to vector<64x32xf32>
    %cst_21 = arith.constant dense<0.000000e+00> : vector<64x32xf32>
    %80 = tpu.matmul %78, %79, %cst_21 {dimension_numbers = #tpu.dot_dimension_numbers<[1], [0], [0], [1], [0, 0, 1, 1], [], []>} : vector<64x64xf32>, vector<64x32xf32>, vector<64x32xf32> -> vector<64x32xf32>
    %81 = arith.addf %77, %80 : vector<64x32xf32>
    %cst_22 = arith.constant 0.000000e+00 : f32
    %82 = vector.broadcast %cst_22 : f32 to vector<64x32xf32>
    %83 = arith.maximumf %81, %82 : vector<64x32xf32>
    %cst_23 = arith.constant dense<0.000000e+00> : vector<32xf32>
    %84 = vector.multi_reduction <add>, %83, %cst_23 [0] : vector<64x32xf32> to vector<32xf32>
    %85 = vector.shape_cast %84 : vector<32xf32> to vector<1x32xf32>
    %cst_24 = arith.constant 6.400000e+01 : f32
    %86 = vector.broadcast %cst_24 : f32 to vector<1x32xf32>
    %87 = arith.divf %85, %86 : vector<1x32xf32>
    %88 = vector.broadcast %87 : vector<1x32xf32> to vector<64x32xf32>
    %89 = arith.subf %83, %88 : vector<64x32xf32>
    %90 = arith.mulf %89, %89 : vector<64x32xf32>
    %cst_25 = arith.constant dense<0.000000e+00> : vector<32xf32>
    %91 = vector.multi_reduction <add>, %90, %cst_25 [0] : vector<64x32xf32> to vector<32xf32>
    %92 = vector.shape_cast %91 : vector<32xf32> to vector<1x32xf32>
    %cst_26 = arith.constant 6.400000e+01 : f32
    %93 = vector.broadcast %cst_26 : f32 to vector<1x32xf32>
    %94 = arith.divf %92, %93 : vector<1x32xf32>
    %95 = vector.broadcast %87 : vector<1x32xf32> to vector<64x32xf32>
    %96 = arith.subf %83, %95 : vector<64x32xf32>
    %cst_27 = arith.constant 9.99999974E-6 : f32
    %97 = vector.broadcast %cst_27 : f32 to vector<1x32xf32>
    %98 = arith.addf %94, %97 : vector<1x32xf32>
    %99 = math.rsqrt %98 : vector<1x32xf32>
    %100 = vector.broadcast %99 : vector<1x32xf32> to vector<64x32xf32>
    %101 = arith.mulf %96, %100 : vector<64x32xf32>
    %c176 = arith.constant 176 : index
    %c0_28 = arith.constant 0 : index
    %102 = vector.load %arg2[%c176, %c0_28] : memref<248x128xf32, #tpu.memory_space<vmem>>, vector<32x128xf32>
    %c208 = arith.constant 208 : index
    %c0_29 = arith.constant 0 : index
    %103 = vector.load %arg2[%c208, %c0_29] : memref<248x128xf32, #tpu.memory_space<vmem>>, vector<32x4xf32>
    %c240 = arith.constant 240 : index
    %c0_30 = arith.constant 0 : index
    %104 = vector.load %arg2[%c240, %c0_30] : memref<248x128xf32, #tpu.memory_space<vmem>>, vector<1x4xf32>
    %c240_31 = arith.constant 240 : index
    %c8_32 = arith.constant 8 : index
    %105 = vector.load %arg2[%c240_31, %c8_32] : memref<248x128xf32, #tpu.memory_space<vmem>>, vector<1x32xf32>
    %cst_33 = arith.constant dense<0.000000e+00> : vector<64x128xf32>
    %106 = tpu.matmul %101, %102, %cst_33 {dimension_numbers = #tpu.dot_dimension_numbers<[1], [0], [0], [1], [0, 0, 1, 1], [], []>} : vector<64x32xf32>, vector<32x128xf32>, vector<64x128xf32> -> vector<64x128xf32>
    %cst_34 = arith.constant dense<0.000000e+00> : vector<64x4xf32>
    %107 = tpu.matmul %101, %103, %cst_34 {dimension_numbers = #tpu.dot_dimension_numbers<[1], [0], [0], [1], [0, 0, 1, 1], [], []>} : vector<64x32xf32>, vector<32x4xf32>, vector<64x4xf32> -> vector<64x4xf32>
    %108 = vector.broadcast %104 : vector<1x4xf32> to vector<64x4xf32>
    %109 = arith.addf %107, %108 : vector<64x4xf32>
    %110 = tpu.transpose %107, [1, 0] : vector<64x4xf32> -> vector<4x64xf32>
    %111 = vector.extract_strided_slice %109 {offsets = [0, 0], sizes = [64, 1], strides = [1, 1]} : vector<64x4xf32> to vector<64x1xf32>
    %112 = vector.extract_strided_slice %110 {offsets = [0, 0], sizes = [1, 64], strides = [1, 1]} : vector<4x64xf32> to vector<1x64xf32>
    %113 = vector.broadcast %111 : vector<64x1xf32> to vector<64x64xf32>
    %114 = vector.broadcast %112 : vector<1x64xf32> to vector<64x64xf32>
    %115 = arith.subf %113, %114 : vector<64x64xf32>
    %116 = vector.extract_strided_slice %109 {offsets = [0, 1], sizes = [64, 1], strides = [1, 1]} : vector<64x4xf32> to vector<64x1xf32>
    %117 = vector.extract_strided_slice %110 {offsets = [1, 0], sizes = [1, 64], strides = [1, 1]} : vector<4x64xf32> to vector<1x64xf32>
    %118 = vector.broadcast %116 : vector<64x1xf32> to vector<64x64xf32>
    %119 = vector.broadcast %117 : vector<1x64xf32> to vector<64x64xf32>
    %120 = arith.subf %118, %119 : vector<64x64xf32>
    %121 = vector.extract_strided_slice %109 {offsets = [0, 2], sizes = [64, 1], strides = [1, 1]} : vector<64x4xf32> to vector<64x1xf32>
    %122 = vector.extract_strided_slice %110 {offsets = [2, 0], sizes = [1, 64], strides = [1, 1]} : vector<4x64xf32> to vector<1x64xf32>
    %123 = vector.broadcast %121 : vector<64x1xf32> to vector<64x64xf32>
    %124 = vector.broadcast %122 : vector<1x64xf32> to vector<64x64xf32>
    %125 = arith.subf %123, %124 : vector<64x64xf32>
    %126 = vector.extract_strided_slice %109 {offsets = [0, 3], sizes = [64, 1], strides = [1, 1]} : vector<64x4xf32> to vector<64x1xf32>
    %127 = vector.extract_strided_slice %110 {offsets = [3, 0], sizes = [1, 64], strides = [1, 1]} : vector<4x64xf32> to vector<1x64xf32>
    %128 = vector.broadcast %126 : vector<64x1xf32> to vector<64x64xf32>
    %129 = vector.broadcast %127 : vector<1x64xf32> to vector<64x64xf32>
    %130 = arith.subf %128, %129 : vector<64x64xf32>
    %131 = arith.maximumf %115, %120 : vector<64x64xf32>
    %132 = arith.maximumf %125, %130 : vector<64x64xf32>
    %133 = arith.maximumf %131, %132 : vector<64x64xf32>
    %134 = arith.subf %115, %133 : vector<64x64xf32>
    %135 = arith.subf %120, %133 : vector<64x64xf32>
    %136 = arith.subf %125, %133 : vector<64x64xf32>
    %137 = arith.subf %130, %133 : vector<64x64xf32>
    %138 = tpu.concatenate %134, %135, %136, %137 in 1 : vector<64x64xf32>, vector<64x64xf32>, vector<64x64xf32>, vector<64x64xf32> -> vector<64x256xf32>
    %139 = math.exp %138 : vector<64x256xf32>
    %140 = vector.extract_strided_slice %139 {offsets = [0, 0], sizes = [64, 128], strides = [1, 1]} : vector<64x256xf32> to vector<64x128xf32>
    %141 = vector.extract_strided_slice %139 {offsets = [0, 128], sizes = [64, 128], strides = [1, 1]} : vector<64x256xf32> to vector<64x128xf32>
    %142 = arith.addf %140, %141 : vector<64x128xf32>
    %143 = vector.extract_strided_slice %142 {offsets = [0, 0], sizes = [64, 64], strides = [1, 1]} : vector<64x128xf32> to vector<64x64xf32>
    %144 = vector.extract_strided_slice %142 {offsets = [0, 64], sizes = [64, 64], strides = [1, 1]} : vector<64x128xf32> to vector<64x64xf32>
    %145 = arith.addf %143, %144 : vector<64x64xf32>
    %146 = arith.divf %17, %145 : vector<64x64xf32>
    %147 = tpu.concatenate %146, %146, %146, %146 in 1 : vector<64x64xf32>, vector<64x64xf32>, vector<64x64xf32>, vector<64x64xf32> -> vector<64x256xf32>
    %148 = arith.mulf %139, %147 : vector<64x256xf32>
    %149 = vector.extract_strided_slice %148 {offsets = [0, 0], sizes = [64, 64], strides = [1, 1]} : vector<64x256xf32> to vector<64x64xf32>
    %150 = vector.extract_strided_slice %106 {offsets = [0, 0], sizes = [64, 32], strides = [1, 1]} : vector<64x128xf32> to vector<64x32xf32>
    %cst_35 = arith.constant dense<0.000000e+00> : vector<64x32xf32>
    %151 = tpu.matmul %149, %150, %cst_35 {dimension_numbers = #tpu.dot_dimension_numbers<[1], [0], [0], [1], [0, 0, 1, 1], [], []>} : vector<64x64xf32>, vector<64x32xf32>, vector<64x32xf32> -> vector<64x32xf32>
    %152 = vector.broadcast %105 : vector<1x32xf32> to vector<64x32xf32>
    %153 = arith.addf %152, %151 : vector<64x32xf32>
    %154 = vector.extract_strided_slice %148 {offsets = [0, 64], sizes = [64, 64], strides = [1, 1]} : vector<64x256xf32> to vector<64x64xf32>
    %155 = vector.extract_strided_slice %106 {offsets = [0, 32], sizes = [64, 32], strides = [1, 1]} : vector<64x128xf32> to vector<64x32xf32>
    %cst_36 = arith.constant dense<0.000000e+00> : vector<64x32xf32>
    %156 = tpu.matmul %154, %155, %cst_36 {dimension_numbers = #tpu.dot_dimension_numbers<[1], [0], [0], [1], [0, 0, 1, 1], [], []>} : vector<64x64xf32>, vector<64x32xf32>, vector<64x32xf32> -> vector<64x32xf32>
    %157 = arith.addf %153, %156 : vector<64x32xf32>
    %158 = vector.extract_strided_slice %148 {offsets = [0, 128], sizes = [64, 64], strides = [1, 1]} : vector<64x256xf32> to vector<64x64xf32>
    %159 = vector.extract_strided_slice %106 {offsets = [0, 64], sizes = [64, 32], strides = [1, 1]} : vector<64x128xf32> to vector<64x32xf32>
    %cst_37 = arith.constant dense<0.000000e+00> : vector<64x32xf32>
    %160 = tpu.matmul %158, %159, %cst_37 {dimension_numbers = #tpu.dot_dimension_numbers<[1], [0], [0], [1], [0, 0, 1, 1], [], []>} : vector<64x64xf32>, vector<64x32xf32>, vector<64x32xf32> -> vector<64x32xf32>
    %161 = arith.addf %157, %160 : vector<64x32xf32>
    %162 = vector.extract_strided_slice %148 {offsets = [0, 192], sizes = [64, 64], strides = [1, 1]} : vector<64x256xf32> to vector<64x64xf32>
    %163 = vector.extract_strided_slice %106 {offsets = [0, 96], sizes = [64, 32], strides = [1, 1]} : vector<64x128xf32> to vector<64x32xf32>
    %cst_38 = arith.constant dense<0.000000e+00> : vector<64x32xf32>
    %164 = tpu.matmul %162, %163, %cst_38 {dimension_numbers = #tpu.dot_dimension_numbers<[1], [0], [0], [1], [0, 0, 1, 1], [], []>} : vector<64x64xf32>, vector<64x32xf32>, vector<64x32xf32> -> vector<64x32xf32>
    %165 = arith.addf %161, %164 : vector<64x32xf32>
    %c56 = arith.constant 56 : index
    %c0_39 = arith.constant 0 : index
    %166 = vector.load %arg2[%c56, %c0_39] : memref<248x128xf32, #tpu.memory_space<vmem>>, vector<32x32xf32>
    %cst_40 = arith.constant dense<0.000000e+00> : vector<64x32xf32>
    %167 = tpu.matmul %165, %166, %cst_40 {dimension_numbers = #tpu.dot_dimension_numbers<[1], [0], [0], [1], [0, 0, 1, 1], [], []>} : vector<64x32xf32>, vector<32x32xf32>, vector<64x32xf32> -> vector<64x32xf32>
    %c88 = arith.constant 88 : index
    %c0_41 = arith.constant 0 : index
    %168 = vector.load %arg2[%c88, %c0_41] : memref<248x128xf32, #tpu.memory_space<vmem>>, vector<1x32xf32>
    %169 = vector.broadcast %168 : vector<1x32xf32> to vector<64x32xf32>
    %170 = arith.addf %167, %169 : vector<64x32xf32>
    %cst_42 = arith.constant 0.000000e+00 : f32
    %171 = vector.broadcast %cst_42 : f32 to vector<64x32xf32>
    %172 = arith.maximumf %170, %171 : vector<64x32xf32>
    %c96 = arith.constant 96 : index
    %c0_43 = arith.constant 0 : index
    %173 = vector.load %arg2[%c96, %c0_43] : memref<248x128xf32, #tpu.memory_space<vmem>>, vector<32x128xf32>
    %cst_44 = arith.constant dense<0.000000e+00> : vector<64x128xf32>
    %174 = tpu.matmul %172, %173, %cst_44 {dimension_numbers = #tpu.dot_dimension_numbers<[1], [0], [0], [1], [0, 0, 1, 1], [], []>} : vector<64x32xf32>, vector<32x128xf32>, vector<64x128xf32> -> vector<64x128xf32>
    %c128 = arith.constant 128 : index
    %c0_45 = arith.constant 0 : index
    %175 = vector.load %arg2[%c128, %c0_45] : memref<248x128xf32, #tpu.memory_space<vmem>>, vector<1x128xf32>
    %176 = vector.broadcast %175 : vector<1x128xf32> to vector<64x128xf32>
    %177 = arith.addf %174, %176 : vector<64x128xf32>
    %c0_46 = arith.constant 0 : index
    %c0_47 = arith.constant 0 : index
    %178 = vector.load %arg3[%c0_46, %c0_47] : memref<64x128xf32, #tpu.memory_space<vmem>>, vector<64x128xf32>
    tpu.vector_store %arg3[%c0_46, %c0_47], %177 {strides = array<i32>} : memref<64x128xf32, #tpu.memory_space<vmem>>, vector<64x128xf32>,
    return
  }
}

</mosaic_0001>

<llo_original>
// kernel: mesh_seg_forward.1
$region0: #{mesh_seg_forward.1}
  #allocation0 [shape = 'u32[]', space=smem, size = 0x4, offset = 0x4, fixed_abs, tag = 'smem constant byte address 0x4 - core index']
  #allocation1 [shape = 'u32[144,128]{1,0:T(1,128)}', space=vmem, size = 0x12000, scoped, tag = 'internal scratch']
  %s0 = inlined_call_operand.vmem [shape: f32[64,8], index: 0, kind: input, shape index: {}]
  %s1 = inlined_call_operand.vmem [shape: f32[64,64], index: 1, kind: input, shape index: {}]
  %s2 = inlined_call_operand.hbm [shape: f32[248,128], index: 2, kind: input, shape index: {}]
  %s3 = inlined_call_operand.vmem [shape: f32[64,128], index: 3, kind: output, shape index: {}]
  %s4 = sld [smem:[#allocation0]]
  $region26: #{mesh_seg_forward.1} parent=0
    _
  %s6 = ssub.s32 1, %s4
  %s7 = scalar_select 0, %s6, %s4
  $region1: #{mesh_seg_forward.1} parent=0
    #allocation2 [shape = 'u8[126976]{0}', space=vmem, size = 0x1f000, scoped, tag = 'input window, operand 2, single buffered']
    #allocation3 [shape = 's32[1]{0}', space=sflag, size = 0x4, scoped, tag = 'scoped memory for mesh_seg_forward.1']
    %8 = vsyncpa [#allocation3], 0
    // Predicated region
    $region2: #{mesh_seg_forward.1} parent=1 // pred_check
      _
    $region3: #{mesh_seg_forward.1} parent=1 // pred_check_branch
      %10 = sbr.rel (0) target = $region5
    $region4: #{mesh_seg_forward.1} parent=1 // pred_region
      _
    $region5: #{mesh_seg_forward.1} parent=1 // pred_fallthru
      _
    // Predicated region
    $region6: #{mesh_seg_forward.1} parent=1 // pred_check
      _
    $region7: #{mesh_seg_forward.1} parent=1 // pred_check_branch
      %12 = sbr.rel (0) target = $region9
    $region8: #{mesh_seg_forward.1} parent=1 // pred_region
      _
    $region9: #{mesh_seg_forward.1} parent=1 // pred_fallthru
      _
    // Predicated region
    $region10: #{mesh_seg_forward.1} parent=1 // pred_check
      _
    $region11: #{mesh_seg_forward.1} parent=1 // pred_check_branch
      %14 = sbr.rel (0) target = $region13
    $region12: #{mesh_seg_forward.1} parent=1 // pred_region
      %s16 = ssub.s32 3968, 3968
      %17 = vsyncadd [#allocation3], %s16
      %s18 = sshll.u32 [#allocation2], 4
      %s19 = int_to_ptr.vmem [resolvable:$true] %s18
      %24 = dma.hbm_to_vmem [thread:$0]  %s2, 3968, %s19, [#allocation3], 128, 128, 8
    $region13: #{mesh_seg_forward.1} parent=1 // pred_fallthru
      _
    // Predicated region
    $region14: #{mesh_seg_forward.1} parent=1 // pred_check
      _
    $region15: #{mesh_seg_forward.1} parent=1 // pred_check_branch
      %26 = sbr.rel (0) target = $region17
    $region16: #{mesh_seg_forward.1} parent=1 // pred_region
      %27 = dma.done [#allocation3], 3968
    $region17: #{mesh_seg_forward.1} parent=1 // pred_fallthru
      _
    %v28 = vld [vmem:[%s0] sm:$0xff]
    %v29 = vld [vmem:[%s0 + $0x8] sm:$0xff]
    %v30 = vld [vmem:[%s0 + $0x10] sm:$0xff]
    %v31 = vld [vmem:[%s0 + $0x18] sm:$0xff]
    %v32 = vld [vmem:[%s0 + $0x20] sm:$0xff]
    %v33 = vld [vmem:[%s0 + $0x28] sm:$0xff]
    %v34 = vld [vmem:[%s0 + $0x30] sm:$0xff]
    %v35 = vld [vmem:[%s0 + $0x38] sm:$0xff]
    %v36 = vld [vmem:[%s1] sm:$0xff]
    %v37 = vld [vmem:[%s1 + $0x8] sm:$0xff]
    %v38 = vld [vmem:[%s1 + $0x10] sm:$0xff]
    %v39 = vld [vmem:[%s1 + $0x18] sm:$0xff]
    %v40 = vld [vmem:[%s1 + $0x20] sm:$0xff]
    %v41 = vld [vmem:[%s1 + $0x28] sm:$0xff]
    %v42 = vld [vmem:[%s1 + $0x30] sm:$0xff]
    %v43 = vld [vmem:[%s1 + $0x38] sm:$0xff]
    %v44 = vld [vmem:[#allocation2] sm:$0xff]
    %v45 = vld [vmem:[#allocation2 + $0x8] sm:$0x1]
    %v46 = vlaneseq
    %v47 = vshrl.u32 %v46, 7
    %v48 = vsub.s32 0, %v47
    %v49 = vrot.slane %v45, %v48
    %vm50 = vcmask 64512
    %v52 = vsel %vm50, %v28, 0
    %v55 = vsel %vm50, %v29, 0
    %v58 = vsel %vm50, %v30, 0
    %v61 = vsel %vm50, %v31, 0
    %v64 = vsel %vm50, %v32, 0
    %v67 = vsel %vm50, %v33, 0
    %v70 = vsel %vm50, %v34, 0
    %v73 = vsel %vm50, %v35, 0
    %75 = vmatprep.subr.mxu0 0.0
    %76 = vmatpush1.msra.mxu0 %v44
    %77 = vmatprep.subr.mxu0 0.0
    %78 = vmatpush1.msra.mxu0 0.0
    %79 = vmatprep.subr.mxu0 0.0
    %80 = vmatpush1.msra.mxu0 0.0
    %81 = vmatprep.subr.mxu0 0.0
    %82 = vmatpush1.msra.mxu0 0.0
    %83 = vmatprep.subr.mxu0 0.0
    %84 = vmatpush1.msra.mxu0 0.0
    %85 = vmatprep.subr.mxu0 0.0
    %86 = vmatpush1.msra.mxu0 0.0
    %87 = vmatprep.subr.mxu0 0.0
    %88 = vmatpush1.msra.mxu0 0.0
    %89 = vmatprep.subr.mxu0 0.0
    %90 = vmatpush1.msra.mxu0 0.0
    %91 = vmatprep.subr.mxu0 0.0
    %92 = vmatpush1.msra.mxu0 0.0
    %93 = vmatprep.subr.mxu0 0.0
    %94 = vmatpush1.msra.mxu0 0.0
    %95 = vmatprep.subr.mxu0 0.0
    %96 = vmatpush1.msra.mxu0 0.0
    %97 = vmatprep.subr.mxu0 0.0
    %98 = vmatpush1.msra.mxu0 0.0
    %99 = vmatprep.subr.mxu0 0.0
    %100 = vmatpush1.msra.mxu0 0.0
    %101 = vmatprep.subr.mxu0 0.0
    %102 = vmatpush1.msra.mxu0 0.0
    %103 = vmatprep.subr.mxu0 0.0
    %104 = vmatpush1.msra.mxu0 0.0
    %105 = vmatprep.subr.mxu0 0.0
    %106 = vmatpush1.msra.mxu0 0.0
    %107 = vmatprep.subr.mxu0 0.0
    %108 = vmatpush1.msra.mxu0 0.0
    %109 = vmatprep.subr.mxu0 0.0
    %110 = vmatpush1.msra.mxu0 0.0
    %111 = vmatprep.subr.mxu0 0.0
    %112 = vmatpush1.msra.mxu0 0.0
    %113 = vmatprep.subr.mxu0 0.0
    %114 = vmatpush1.msra.mxu0 0.0
    %115 = vmatprep.subr.mxu0 0.0
    %116 = vmatpush1.msra.mxu0 0.0
    %117 = vmatprep.subr.mxu0 0.0
    %118 = vmatpush1.msra.mxu0 0.0
    %119 = vmatprep.subr.mxu0 0.0
    %120 = vmatpush1.msra.mxu0 0.0
    %121 = vmatprep.subr.mxu0 0.0
    %122 = vmatpush1.msra.mxu0 0.0
    %123 = vmatprep.subr.mxu0 0.0
    %124 = vmatpush1.msra.mxu0 0.0
    %125 = vmatprep.subr.mxu0 0.0
    %126 = vmatpush1.msra.mxu0 0.0
    %127 = vmatprep.subr.mxu0 0.0
    %128 = vmatpush1.msra.mxu0 0.0
    %129 = vmatprep.subr.mxu0 0.0
    %130 = vmatpush1.msra.mxu0 0.0
    %131 = vmatprep.subr.mxu0 0.0
    %132 = vmatpush1.msra.mxu0 0.0
    %133 = vmatprep.subr.mxu0 0.0
    %134 = vmatpush1.msra.mxu0 0.0
    %135 = vmatprep.subr.mxu0 0.0
    %136 = vmatpush1.msra.mxu0 0.0
    %137 = vmatprep.subr.mxu0 0.0
    %138 = vmatpush1.msra.mxu0 0.0
    %139 = vmatprep.mubr.f32.mxu0 0.0
    %140 = vmatmul.mubr.f32.gmra.mrb[0].mxu0 %v52
    %v141 = vpop.f32.mrb[0].mxu0
    %v142 = vadd.f32 %v49, %v141
    %v143 = vpop.f32.mrb[0].mxu0
    %144 = vmatprep.mubr.f32.mxu0 0.0
    %145 = vmatmul.mubr.f32.gmra.mrb[0].mxu0 %v55
    %v146 = vpop.f32.mrb[0].mxu0
    %v147 = vadd.f32 %v49, %v146
    %v148 = vpop.f32.mrb[0].mxu0
    %149 = vmatprep.mubr.f32.mxu0 0.0
    %150 = vmatmul.mubr.f32.gmra.mrb[0].mxu0 %v58
    %v151 = vpop.f32.mrb[0].mxu0
    %v152 = vadd.f32 %v49, %v151
    %v153 = vpop.f32.mrb[0].mxu0
    %154 = vmatprep.mubr.f32.mxu0 0.0
    %155 = vmatmul.mubr.f32.gmra.mrb[0].mxu0 %v61
    %v156 = vpop.f32.mrb[0].mxu0
    %v157 = vadd.f32 %v49, %v156
    %v158 = vpop.f32.mrb[0].mxu0
    %159 = vmatprep.mubr.f32.mxu0 0.0
    %160 = vmatmul.mubr.f32.gmra.mrb[0].mxu0 %v64
    %v161 = vpop.f32.mrb[0].mxu0
    %v162 = vadd.f32 %v49, %v161
    %v163 = vpop.f32.mrb[0].mxu0
    %164 = vmatprep.mubr.f32.mxu0 0.0
    %165 = vmatmul.mubr.f32.gmra.mrb[0].mxu0 %v67
    %v166 = vpop.f32.mrb[0].mxu0
    %v167 = vadd.f32 %v49, %v166
    %v168 = vpop.f32.mrb[0].mxu0
    %169 = vmatprep.mubr.f32.mxu0 0.0
    %170 = vmatmul.mubr.f32.gmra.mrb[0].mxu0 %v70
    %v171 = vpop.f32.mrb[0].mxu0
    %v172 = vadd.f32 %v49, %v171
    %v173 = vpop.f32.mrb[0].mxu0
    %174 = vmatprep.mubr.f32.mxu0 0.0
    %175 = vmatmul.mubr.f32.gmra.mrb[0].mxu0 %v73
    %v176 = vpop.f32.mrb[0].mxu0
    %v177 = vadd.f32 %v49, %v176
    %v178 = vpop.f32.mrb[0].mxu0
    %179 = vdwg.mxu0
    %v180 = vmax.f32 %v142, 0.0
    %v181 = vmax.f32 %v147, 0.0
    %v182 = vmax.f32 %v152, 0.0
    %v183 = vmax.f32 %v157, 0.0
    %v184 = vmax.f32 %v162, 0.0
    %v185 = vmax.f32 %v167, 0.0
    %v186 = vmax.f32 %v172, 0.0
    %v187 = vmax.f32 %v177, 0.0
    %v188 = vld [vmem:[#allocation2 + $0x10] sm:$0xff]
    %v189 = vld [vmem:[#allocation2 + $0x18] sm:$0xff]
    %v190 = vld [vmem:[#allocation2 + $0x20] sm:$0xff]
    %v191 = vld [vmem:[#allocation2 + $0x28] sm:$0xff]
    %v192 = vld [vmem:[#allocation2 + $0x30] sm:$0x1]
    %v193 = vlaneseq
    %v194 = vshrl.u32 %v193, 7
    %v195 = vsub.s32 0, %v194
    %v196 = vrot.slane %v192, %v195
    %vm197 = vcmask 261120
    %v199 = vsel %vm197, %v180, 0
    %v202 = vsel %vm197, %v181, 0
    %v205 = vsel %vm197, %v182, 0
    %v208 = vsel %vm197, %v183, 0
    %v211 = vsel %vm197, %v184, 0
    %v214 = vsel %vm197, %v185, 0
    %v217 = vsel %vm197, %v186, 0
    %v220 = vsel %vm197, %v187, 0
    %222 = vmatprep.subr.mxu0 0.0
    %223 = vmatpush1.msra.mxu0 %v188
    %224 = vmatprep.subr.mxu0 0.0
    %225 = vmatpush1.msra.mxu0 %v189
    %226 = vmatprep.subr.mxu0 0.0
    %227 = vmatpush1.msra.mxu0 %v190
    %228 = vmatprep.subr.mxu0 0.0
    %229 = vmatpush1.msra.mxu0 %v191
    %230 = vmatprep.subr.mxu0 0.0
    %231 = vmatpush1.msra.mxu0 0.0
    %232 = vmatprep.subr.mxu0 0.0
    %233 = vmatpush1.msra.mxu0 0.0
    %234 = vmatprep.subr.mxu0 0.0
    %235 = vmatpush1.msra.mxu0 0.0
    %236 = vmatprep.subr.mxu0 0.0
    %237 = vmatpush1.msra.mxu0 0.0
    %238 = vmatprep.subr.mxu0 0.0
    %239 = vmatpush1.msra.mxu0 0.0
    %240 = vmatprep.subr.mxu0 0.0
    %241 = vmatpush1.msra.mxu0 0.0
    %242 = vmatprep.subr.mxu0 0.0
    %243 = vmatpush1.msra.mxu0 0.0
    %244 = vmatprep.subr.mxu0 0.0
    %245 = vmatpush1.msra.mxu0 0.0
    %246 = vmatprep.subr.mxu0 0.0
    %247 = vmatpush1.msra.mxu0 0.0
    %248 = vmatprep.subr.mxu0 0.0
    %249 = vmatpush1.msra.mxu0 0.0
    %250 = vmatprep.subr.mxu0 0.0
    %251 = vmatpush1.msra.mxu0 0.0
    %252 = vmatprep.subr.mxu0 0.0
    %253 = vmatpush1.msra.mxu0 0.0
    %254 = vmatprep.subr.mxu0 0.0
    %255 = vmatpush1.msra.mxu0 0.0
    %256 = vmatprep.subr.mxu0 0.0
    %257 = vmatpush1.msra.mxu0 0.0
    %258 = vmatprep.subr.mxu0 0.0
    %259 = vmatpush1.msra.mxu0 0.0
    %260 = vmatprep.subr.mxu0 0.0
    %261 = vmatpush1.msra.mxu0 0.0
    %262 = vmatprep.subr.mxu0 0.0
    %263 = vmatpush1.msra.mxu0 0.0
    %264 = vmatprep.subr.mxu0 0.0
    %265 = vmatpush1.msra.mxu0 0.0
    %266 = vmatprep.subr.mxu0 0.0
    %267 = vmatpush1.msra.mxu0 0.0
    %268 = vmatprep.subr.mxu0 0.0
    %269 = vmatpush1.msra.mxu0 0.0
    %270 = vmatprep.subr.mxu0 0.0
    %271 = vmatpush1.msra.mxu0 0.0
    %272 = vmatprep.subr.mxu0 0.0
    %273 = vmatpush1.msra.mxu0 0.0
    %274 = vmatprep.subr.mxu0 0.0
    %275 = vmatpush1.msra.mxu0 0.0
    %276 = vmatprep.subr.mxu0 0.0
    %277 = vmatpush1.msra.mxu0 0.0
    %278 = vmatprep.subr.mxu0 0.0
    %279 = vmatpush1.msra.mxu0 0.0
    %280 = vmatprep.subr.mxu0 0.0
    %281 = vmatpush1.msra.mxu0 0.0
    %282 = vmatprep.subr.mxu0 0.0
    %283 = vmatpush1.msra.mxu0 0.0
    %284 = vmatprep.subr.mxu0 0.0
    %285 = vmatpush1.msra.mxu0 0.0
    %286 = vmatprep.mubr.f32.mxu0 0.0
    %287 = vmatmul.mubr.f32.gmra.mrb[0].mxu0 %v199
    %v288 = vpop.f32.mrb[0].mxu0
    %v289 = vadd.f32 %v196, %v288
    %v290 = vpop.f32.mrb[0].mxu0
    %291 = vmatprep.mubr.f32.mxu0 0.0
    %292 = vmatmul.mubr.f32.gmra.mrb[0].mxu0 %v202
    %v293 = vpop.f32.mrb[0].mxu0
    %v294 = vadd.f32 %v196, %v293
    %v295 = vpop.f32.mrb[0].mxu0
    %296 = vmatprep.mubr.f32.mxu0 0.0
    %297 = vmatmul.mubr.f32.gmra.mrb[0].mxu0 %v205
    %v298 = vpop.f32.mrb[0].mxu0
    %v299 = vadd.f32 %v196, %v298
    %v300 = vpop.f32.mrb[0].mxu0
    %301 = vmatprep.mubr.f32.mxu0 0.0
    %302 = vmatmul.mubr.f32.gmra.mrb[0].mxu0 %v208
    %v303 = vpop.f32.mrb[0].mxu0
    %v304 = vadd.f32 %v196, %v303
    %v305 = vpop.f32.mrb[0].mxu0
    %306 = vmatprep.mubr.f32.mxu0 0.0
    %307 = vmatmul.mubr.f32.gmra.mrb[0].mxu0 %v211
    %v308 = vpop.f32.mrb[0].mxu0
    %v309 = vadd.f32 %v196, %v308
    %v310 = vpop.f32.mrb[0].mxu0
    %311 = vmatprep.mubr.f32.mxu0 0.0
    %312 = vmatmul.mubr.f32.gmra.mrb[0].mxu0 %v214
    %v313 = vpop.f32.mrb[0].mxu0
    %v314 = vadd.f32 %v196, %v313
    %v315 = vpop.f32.mrb[0].mxu0
    %316 = vmatprep.mubr.f32.mxu0 0.0
    %317 = vmatmul.mubr.f32.gmra.mrb[0].mxu0 %v217
    %v318 = vpop.f32.mrb[0].mxu0
    %v319 = vadd.f32 %v196, %v318
    %v320 = vpop.f32.mrb[0].mxu0
    %321 = vmatprep.mubr.f32.mxu0 0.0
    %322 = vmatmul.mubr.f32.gmra.mrb[0].mxu0 %v220
    %v323 = vpop.f32.mrb[0].mxu0
    %v324 = vadd.f32 %v196, %v323
    %v325 = vpop.f32.mrb[0].mxu0
    %326 = vdwg.mxu0
    %vm327 = vcmask 523264
    %v328 = vsel %vm327, %v36, 0.0
    %329 = vadd.xlane.f32.xlu0 %v328
    %v330 = vpop.xlane.xlu0 %329
    %v331 = vsel %vm327, %v37, 0.0
    %332 = vadd.xlane.f32.xlu0 %v331
    %v333 = vpop.xlane.xlu0 %332
    %v334 = vsel %vm327, %v38, 0.0
    %335 = vadd.xlane.f32.xlu0 %v334
    %v336 = vpop.xlane.xlu0 %335
    %v337 = vsel %vm327, %v39, 0.0
    %338 = vadd.xlane.f32.xlu0 %v337
    %v339 = vpop.xlane.xlu0 %338
    %v340 = vsel %vm327, %v40, 0.0
    %341 = vadd.xlane.f32.xlu0 %v340
    %v342 = vpop.xlane.xlu0 %341
    %v343 = vsel %vm327, %v41, 0.0
    %344 = vadd.xlane.f32.xlu0 %v343
    %v345 = vpop.xlane.xlu0 %344
    %v346 = vsel %vm327, %v42, 0.0
    %347 = vadd.xlane.f32.xlu0 %v346
    %v348 = vpop.xlane.xlu0 %347
    %v349 = vsel %vm327, %v43, 0.0
    %350 = vadd.xlane.f32.xlu0 %v349
    %v351 = vpop.xlane.xlu0 %350
    %v352 = vrcp.pop %v330
    %v353 = vmul.f32 %v36, %v352
    %v354 = vrcp.pop %v333
    %v355 = vmul.f32 %v37, %v354
    %v356 = vrcp.pop %v336
    %v357 = vmul.f32 %v38, %v356
    %v358 = vrcp.pop %v339
    %v359 = vmul.f32 %v39, %v358
    %v360 = vrcp.pop %v342
    %v361 = vmul.f32 %v40, %v360
    %v362 = vrcp.pop %v345
    %v363 = vmul.f32 %v41, %v362
    %v364 = vrcp.pop %v348
    %v365 = vmul.f32 %v42, %v364
    %v366 = vrcp.pop %v351
    %v367 = vmul.f32 %v43, %v366
    %v368 = vld [vmem:[#allocation2 + $0x88] sm:$0xff]
    %v369 = vld [vmem:[#allocation2 + $0x90] sm:$0xff]
    %v370 = vld [vmem:[#allocation2 + $0x98] sm:$0xff]
    %v371 = vld [vmem:[#allocation2 + $0xa0] sm:$0xff]
    %v372 = vld [vmem:[#allocation2 + $0xa8] sm:$0x1]
    %vm373 = vcmask 130048
    %v375 = vsel %vm373, %v289, 0
    %v378 = vsel %vm373, %v294, 0
    %v381 = vsel %vm373, %v299, 0
    %v384 = vsel %vm373, %v304, 0
    %v387 = vsel %vm373, %v309, 0
    %v390 = vsel %vm373, %v314, 0
    %v393 = vsel %vm373, %v319, 0
    %v396 = vsel %vm373, %v324, 0
    %398 = vmatprep.subr.mxu0 0.0
    %399 = vmatpush1.msra.mxu0 %v368
    %400 = vmatprep.subr.mxu0 0.0
    %401 = vmatpush1.msra.mxu0 %v369
    %402 = vmatprep.subr.mxu0 0.0
    %403 = vmatpush1.msra.mxu0 0.0
    %404 = vmatprep.subr.mxu0 0.0
    %405 = vmatpush1.msra.mxu0 0.0
    %406 = vmatprep.subr.mxu0 0.0
    %407 = vmatpush1.msra.mxu0 0.0
    %408 = vmatprep.subr.mxu0 0.0
    %409 = vmatpush1.msra.mxu0 0.0
    %410 = vmatprep.subr.mxu0 0.0
    %411 = vmatpush1.msra.mxu0 0.0
    %412 = vmatprep.subr.mxu0 0.0
    %413 = vmatpush1.msra.mxu0 0.0
    %414 = vmatprep.subr.mxu0 0.0
    %415 = vmatpush1.msra.mxu0 0.0
    %416 = vmatprep.subr.mxu0 0.0
    %417 = vmatpush1.msra.mxu0 0.0
    %418 = vmatprep.subr.mxu0 0.0
    %419 = vmatpush1.msra.mxu0 0.0
    %420 = vmatprep.subr.mxu0 0.0
    %421 = vmatpush1.msra.mxu0 0.0
    %422 = vmatprep.subr.mxu0 0.0
    %423 = vmatpush1.msra.mxu0 0.0
    %424 = vmatprep.subr.mxu0 0.0
    %425 = vmatpush1.msra.mxu0 0.0
    %426 = vmatprep.subr.mxu0 0.0
    %427 = vmatpush1.msra.mxu0 0.0
    %428 = vmatprep.subr.mxu0 0.0
    %429 = vmatpush1.msra.mxu0 0.0
    %430 = vmatprep.subr.mxu0 0.0
    %431 = vmatpush1.msra.mxu0 0.0
    %432 = vmatprep.subr.mxu0 0.0
    %433 = vmatpush1.msra.mxu0 0.0
    %434 = vmatprep.subr.mxu0 0.0
    %435 = vmatpush1.msra.mxu0 0.0
    %436 = vmatprep.subr.mxu0 0.0
    %437 = vmatpush1.msra.mxu0 0.0
    %438 = vmatprep.subr.mxu0 0.0
    %439 = vmatpush1.msra.mxu0 0.0
    %440 = vmatprep.subr.mxu0 0.0
    %441 = vmatpush1.msra.mxu0 0.0
    %442 = vmatprep.subr.mxu0 0.0
    %443 = vmatpush1.msra.mxu0 0.0
    %444 = vmatprep.subr.mxu0 0.0
    %445 = vmatpush1.msra.mxu0 0.0
    %446 = vmatprep.subr.mxu0 0.0
    %447 = vmatpush1.msra.mxu0 0.0
    %448 = vmatprep.subr.mxu0 0.0
    %449 = vmatpush1.msra.mxu0 0.0
    %450 = vmatprep.subr.mxu0 0.0
    %451 = vmatpush1.msra.mxu0 0.0
    %452 = vmatprep.subr.mxu0 0.0
    %453 = vmatpush1.msra.mxu0 0.0
    %454 = vmatprep.subr.mxu0 0.0
    %455 = vmatpush1.msra.mxu0 0.0
    %456 = vmatprep.subr.mxu0 0.0
    %457 = vmatpush1.msra.mxu0 0.0
    %458 = vmatprep.subr.mxu0 0.0
    %459 = vmatpush1.msra.mxu0 0.0
    %460 = vmatprep.subr.mxu0 0.0
    %461 = vmatpush1.msra.mxu0 0.0
    %462 = vmatprep.mubr.f32.mxu0 0.0
    %463 = vmatmul.mubr.f32.gmra.mrb[0].mxu0 %v375
    %v464 = vpop.f32.mrb[0].mxu0
    %v465 = vadd.f32 0.0, %v464
    %v466 = vpop.f32.mrb[0].mxu0
    %467 = vmatprep.mubr.f32.mxu0 0.0
    %468 = vmatmul.mubr.f32.gmra.mrb[0].mxu0 %v378
    %v469 = vpop.f32.mrb[0].mxu0
    %v470 = vadd.f32 0.0, %v469
    %v471 = vpop.f32.mrb[0].mxu0
    %472 = vmatprep.mubr.f32.mxu0 0.0
    %473 = vmatmul.mubr.f32.gmra.mrb[0].mxu0 %v381
    %v474 = vpop.f32.mrb[0].mxu0
    %v475 = vadd.f32 0.0, %v474
    %v476 = vpop.f32.mrb[0].mxu0
    %477 = vmatprep.mubr.f32.mxu0 0.0
    %478 = vmatmul.mubr.f32.gmra.mrb[0].mxu0 %v384
    %v479 = vpop.f32.mrb[0].mxu0
    %v480 = vadd.f32 0.0, %v479
    %v481 = vpop.f32.mrb[0].mxu0
    %482 = vmatprep.mubr.f32.mxu0 0.0
    %483 = vmatmul.mubr.f32.gmra.mrb[0].mxu0 %v387
    %v484 = vpop.f32.mrb[0].mxu0
    %v485 = vadd.f32 0.0, %v484
    %v486 = vpop.f32.mrb[0].mxu0
    %487 = vmatprep.mubr.f32.mxu0 0.0
    %488 = vmatmul.mubr.f32.gmra.mrb[0].mxu0 %v390
    %v489 = vpop.f32.mrb[0].mxu0
    %v490 = vadd.f32 0.0, %v489
    %v491 = vpop.f32.mrb[0].mxu0
    %492 = vmatprep.mubr.f32.mxu0 0.0
    %493 = vmatmul.mubr.f32.gmra.mrb[0].mxu0 %v393
    %v494 = vpop.f32.mrb[0].mxu0
    %v495 = vadd.f32 0.0, %v494
    %v496 = vpop.f32.mrb[0].mxu0
    %497 = vmatprep.mubr.f32.mxu0 0.0
    %498 = vmatmul.mubr.f32.gmra.mrb[0].mxu0 %v396
    %v499 = vpop.f32.mrb[0].mxu0
    %v500 = vadd.f32 0.0, %v499
    %v501 = vpop.f32.mrb[0].mxu0
    %502 = vdwg.mxu0
    %503 = vmatprep.subr.mxu0 0.0
    %504 = vmatpush1.msra.mxu0 %v370
    %505 = vmatprep.subr.mxu0 0.0
    %506 = vmatpush1.msra.mxu0 %v371
    %507 = vmatprep.subr.mxu0 0.0
    %508 = vmatpush1.msra.mxu0 0.0
    %509 = vmatprep.subr.mxu0 0.0
    %510 = vmatpush1.msra.mxu0 0.0
    %511 = vmatprep.subr.mxu0 0.0
    %512 = vmatpush1.msra.mxu0 0.0
    %513 = vmatprep.subr.mxu0 0.0
    %514 = vmatpush1.msra.mxu0 0.0
    %515 = vmatprep.subr.mxu0 0.0
    %516 = vmatpush1.msra.mxu0 0.0
    %517 = vmatprep.subr.mxu0 0.0
    %518 = vmatpush1.msra.mxu0 0.0
    %519 = vmatprep.subr.mxu0 0.0
    %520 = vmatpush1.msra.mxu0 0.0
    %521 = vmatprep.subr.mxu0 0.0
    %522 = vmatpush1.msra.mxu0 0.0
    %523 = vmatprep.subr.mxu0 0.0
    %524 = vmatpush1.msra.mxu0 0.0
    %525 = vmatprep.subr.mxu0 0.0
    %526 = vmatpush1.msra.mxu0 0.0
    %527 = vmatprep.subr.mxu0 0.0
    %528 = vmatpush1.msra.mxu0 0.0
    %529 = vmatprep.subr.mxu0 0.0
    %530 = vmatpush1.msra.mxu0 0.0
    %531 = vmatprep.subr.mxu0 0.0
    %532 = vmatpush1.msra.mxu0 0.0
    %533 = vmatprep.subr.mxu0 0.0
    %534 = vmatpush1.msra.mxu0 0.0
    %535 = vmatprep.subr.mxu0 0.0
    %536 = vmatpush1.msra.mxu0 0.0
    %537 = vmatprep.subr.mxu0 0.0
    %538 = vmatpush1.msra.mxu0 0.0
    %539 = vmatprep.subr.mxu0 0.0
    %540 = vmatpush1.msra.mxu0 0.0
    %541 = vmatprep.subr.mxu0 0.0
    %542 = vmatpush1.msra.mxu0 0.0
    %543 = vmatprep.subr.mxu0 0.0
    %544 = vmatpush1.msra.mxu0 0.0
    %545 = vmatprep.subr.mxu0 0.0
    %546 = vmatpush1.msra.mxu0 0.0
    %547 = vmatprep.subr.mxu0 0.0
    %548 = vmatpush1.msra.mxu0 0.0
    %549 = vmatprep.subr.mxu0 0.0
    %550 = vmatpush1.msra.mxu0 0.0
    %551 = vmatprep.subr.mxu0 0.0
    %552 = vmatpush1.msra.mxu0 0.0
    %553 = vmatprep.subr.mxu0 0.0
    %554 = vmatpush1.msra.mxu0 0.0
    %555 = vmatprep.subr.mxu0 0.0
    %556 = vmatpush1.msra.mxu0 0.0
    %557 = vmatprep.subr.mxu0 0.0
    %558 = vmatpush1.msra.mxu0 0.0
    %559 = vmatprep.subr.mxu0 0.0
    %560 = vmatpush1.msra.mxu0 0.0
    %561 = vmatprep.subr.mxu0 0.0
    %562 = vmatpush1.msra.mxu0 0.0
    %563 = vmatprep.subr.mxu0 0.0
    %564 = vmatpush1.msra.mxu0 0.0
    %565 = vmatprep.subr.mxu0 0.0
    %566 = vmatpush1.msra.mxu0 0.0
    %567 = vmatprep.mubr.f32.mxu0 0.0
    %568 = vmatmul.mubr.f32.gmra.mrb[0].mxu0 %v375
    %v569 = vpop.f32.mrb[0].mxu0
    %v570 = vadd.f32 0.0, %v569
    %v571 = vpop.f32.mrb[0].mxu0
    %572 = vmatprep.mubr.f32.mxu0 0.0
    %573 = vmatmul.mubr.f32.gmra.mrb[0].mxu0 %v378
    %v574 = vpop.f32.mrb[0].mxu0
    %v575 = vadd.f32 0.0, %v574
    %v576 = vpop.f32.mrb[0].mxu0
    %577 = vmatprep.mubr.f32.mxu0 0.0
    %578 = vmatmul.mubr.f32.gmra.mrb[0].mxu0 %v381
    %v579 = vpop.f32.mrb[0].mxu0
    %v580 = vadd.f32 0.0, %v579
    %v581 = vpop.f32.mrb[0].mxu0
    %582 = vmatprep.mubr.f32.mxu0 0.0
    %583 = vmatmul.mubr.f32.gmra.mrb[0].mxu0 %v384
    %v584 = vpop.f32.mrb[0].mxu0
    %v585 = vadd.f32 0.0, %v584
    %v586 = vpop.f32.mrb[0].mxu0
    %587 = vmatprep.mubr.f32.mxu0 0.0
    %588 = vmatmul.mubr.f32.gmra.mrb[0].mxu0 %v387
    %v589 = vpop.f32.mrb[0].mxu0
    %v590 = vadd.f32 0.0, %v589
    %v591 = vpop.f32.mrb[0].mxu0
    %592 = vmatprep.mubr.f32.mxu0 0.0
    %593 = vmatmul.mubr.f32.gmra.mrb[0].mxu0 %v390
    %v594 = vpop.f32.mrb[0].mxu0
    %v595 = vadd.f32 0.0, %v594
    %v596 = vpop.f32.mrb[0].mxu0
    %597 = vmatprep.mubr.f32.mxu0 0.0
    %598 = vmatmul.mubr.f32.gmra.mrb[0].mxu0 %v393
    %v599 = vpop.f32.mrb[0].mxu0
    %v600 = vadd.f32 0.0, %v599
    %v601 = vpop.f32.mrb[0].mxu0
    %602 = vmatprep.mubr.f32.mxu0 0.0
    %603 = vmatmul.mubr.f32.gmra.mrb[0].mxu0 %v396
    %v604 = vpop.f32.mrb[0].mxu0
    %v605 = vadd.f32 0.0, %v604
    %v606 = vpop.f32.mrb[0].mxu0
    %607 = vdwg.mxu0
    %v608 = vlaneseq
    %v609 = vshrl.u32 %v608, 7
    %v610 = vsub.s32 0, %v609
    %v611 = vrot.slane %v372, %v610
    %v612 = vadd.f32 %v570, %v611
    %v613 = vadd.f32 %v575, %v611
    %v614 = vadd.f32 %v580, %v611
    %v615 = vadd.f32 %v585, %v611
    %v616 = vadd.f32 %v590, %v611
    %v617 = vadd.f32 %v595, %v611
    %v618 = vadd.f32 %v600, %v611
    %v619 = vadd.f32 %v605, %v611
    %620 = vxpose.xlu0.b32.start [1/16] %v570, 128
    %621 = vxpose.xlu0.b32.cont [2/16] %v575, 128
    %622 = vxpose.xlu0.b32.cont [3/16] %v580, 128
    %623 = vxpose.xlu0.b32.cont [4/16] %v585, 128
    %624 = vxpose.xlu0.b32.cont [5/16] %v590, 128
    %625 = vxpose.xlu0.b32.cont [6/16] %v595, 128
    %626 = vxpose.xlu0.b32.cont [7/16] %v600, 128
    %627 = vxpose.xlu0.b32.cont [8/16] %v605, 128
    %628 = vxpose.xlu0.b32.cont [9/16] 0.0, 128
    %629 = vxpose.xlu0.b32.cont [10/16] 0.0, 128
    %630 = vxpose.xlu0.b32.cont [11/16] 0.0, 128
    %631 = vxpose.xlu0.b32.cont [12/16] 0.0, 128
    %632 = vxpose.xlu0.b32.cont [13/16] 0.0, 128
    %633 = vxpose.xlu0.b32.cont [14/16] 0.0, 128
    %634 = vxpose.xlu0.b32.cont [15/16] 0.0, 128
    %635 = vxpose.xlu0.b32.end [16/16] 0.0, 128
    %v636 = vpop.trf.xlu0
    %v637 = vpop.trf.xlu0
    %v638 = vpop.trf.xlu0
    %v639 = vpop.trf.xlu0
    %v640 = vpop.trf.xlu0
    %v641 = vpop.trf.xlu0
    %v642 = vpop.trf.xlu0
    %v643 = vpop.trf.xlu0
    %v644 = vpop.trf.xlu0
    %v645 = vpop.trf.xlu0
    %v646 = vpop.trf.xlu0
    %v647 = vpop.trf.xlu0
    %v648 = vpop.trf.xlu0
    %v649 = vpop.trf.xlu0
    %v650 = vpop.trf.xlu0
    %v651 = vpop.trf.xlu0
    %653 = vset.pattern.permute.xlu0 0
    %654 = vperm.xlu0 %653, %v612
    %v655 = vpop.permute.xlu0 %654
    %658 = vset.pattern.permute.xlu0 0
    %659 = vperm.xlu0 %658, %v613
    %v660 = vpop.permute.xlu0 %659
    %663 = vset.pattern.permute.xlu0 0
    %664 = vperm.xlu0 %663, %v614
    %v665 = vpop.permute.xlu0 %664
    %668 = vset.pattern.permute.xlu0 0
    %669 = vperm.xlu0 %668, %v615
    %v670 = vpop.permute.xlu0 %669
    %673 = vset.pattern.permute.xlu0 0
    %674 = vperm.xlu0 %673, %v616
    %v675 = vpop.permute.xlu0 %674
    %678 = vset.pattern.permute.xlu0 0
    %679 = vperm.xlu0 %678, %v617
    %v680 = vpop.permute.xlu0 %679
    %683 = vset.pattern.permute.xlu0 0
    %684 = vperm.xlu0 %683, %v618
    %v685 = vpop.permute.xlu0 %684
    %688 = vset.pattern.permute.xlu0 0
    %689 = vperm.xlu0 %688, %v619
    %v690 = vpop.permute.xlu0 %689
    %v692 = vlaneseq
    %v693 = vshrl.u32 %v692, 7
    %v694 = vsub.s32 0, %v693
    %v695 = vrot.slane %v636, %v694
    %v696 = vsub.f32 %v655, %v695
    %v697 = vsub.f32 %v660, %v695
    %v698 = vsub.f32 %v665, %v695
    %v699 = vsub.f32 %v670, %v695
    %v700 = vsub.f32 %v675, %v695
    %v701 = vsub.f32 %v680, %v695
    %v702 = vsub.f32 %v685, %v695
    %v703 = vsub.f32 %v690, %v695
    %704 = vset.pattern.permute.xlu0 1
    %705 = vperm.xlu0 %704, %v612
    %v706 = vpop.permute.xlu0 %705
    %708 = vset.pattern.permute.xlu0 1
    %709 = vperm.xlu0 %708, %v613
    %v710 = vpop.permute.xlu0 %709
    %712 = vset.pattern.permute.xlu0 1
    %713 = vperm.xlu0 %712, %v614
    %v714 = vpop.permute.xlu0 %713
    %716 = vset.pattern.permute.xlu0 1
    %717 = vperm.xlu0 %716, %v615
    %v718 = vpop.permute.xlu0 %717
    %720 = vset.pattern.permute.xlu0 1
    %721 = vperm.xlu0 %720, %v616
    %v722 = vpop.permute.xlu0 %721
    %724 = vset.pattern.permute.xlu0 1
    %725 = vperm.xlu0 %724, %v617
    %v726 = vpop.permute.xlu0 %725
    %728 = vset.pattern.permute.xlu0 1
    %729 = vperm.xlu0 %728, %v618
    %v730 = vpop.permute.xlu0 %729
    %732 = vset.pattern.permute.xlu0 1
    %733 = vperm.xlu0 %732, %v619
    %v734 = vpop.permute.xlu0 %733
    %v736 = vlaneseq
    %v737 = vshrl.u32 %v736, 7
    %v738 = vsub.s32 1, %v737
    %v739 = vrot.slane %v636, %v738
    %v740 = vsub.f32 %v706, %v739
    %v741 = vsub.f32 %v710, %v739
    %v742 = vsub.f32 %v714, %v739
    %v743 = vsub.f32 %v718, %v739
    %v744 = vsub.f32 %v722, %v739
    %v745 = vsub.f32 %v726, %v739
    %v746 = vsub.f32 %v730, %v739
    %v747 = vsub.f32 %v734, %v739
    %748 = vset.pattern.permute.xlu0 2
    %749 = vperm.xlu0 %748, %v612
    %v750 = vpop.permute.xlu0 %749
    %752 = vset.pattern.permute.xlu0 2
    %753 = vperm.xlu0 %752, %v613
    %v754 = vpop.permute.xlu0 %753
    %756 = vset.pattern.permute.xlu0 2
    %757 = vperm.xlu0 %756, %v614
    %v758 = vpop.permute.xlu0 %757
    %760 = vset.pattern.permute.xlu0 2
    %761 = vperm.xlu0 %760, %v615
    %v762 = vpop.permute.xlu0 %761
    %764 = vset.pattern.permute.xlu0 2
    %765 = vperm.xlu0 %764, %v616
    %v766 = vpop.permute.xlu0 %765
    %768 = vset.pattern.permute.xlu0 2
    %769 = vperm.xlu0 %768, %v617
    %v770 = vpop.permute.xlu0 %769
    %772 = vset.pattern.permute.xlu0 2
    %773 = vperm.xlu0 %772, %v618
    %v774 = vpop.permute.xlu0 %773
    %776 = vset.pattern.permute.xlu0 2
    %777 = vperm.xlu0 %776, %v619
    %v778 = vpop.permute.xlu0 %777
    %v780 = vlaneseq
    %v781 = vshrl.u32 %v780, 7
    %v782 = vsub.s32 2, %v781
    %v783 = vrot.slane %v636, %v782
    %v784 = vsub.f32 %v750, %v783
    %v785 = vsub.f32 %v754, %v783
    %v786 = vsub.f32 %v758, %v783
    %v787 = vsub.f32 %v762, %v783
    %v788 = vsub.f32 %v766, %v783
    %v789 = vsub.f32 %v770, %v783
    %v790 = vsub.f32 %v774, %v783
    %v791 = vsub.f32 %v778, %v783
    %792 = vset.pattern.permute.xlu0 3
    %793 = vperm.xlu0 %792, %v612
    %v794 = vpop.permute.xlu0 %793
    %796 = vset.pattern.permute.xlu0 3
    %797 = vperm.xlu0 %796, %v613
    %v798 = vpop.permute.xlu0 %797
    %800 = vset.pattern.permute.xlu0 3
    %801 = vperm.xlu0 %800, %v614
    %v802 = vpop.permute.xlu0 %801
    %804 = vset.pattern.permute.xlu0 3
    %805 = vperm.xlu0 %804, %v615
    %v806 = vpop.permute.xlu0 %805
    %808 = vset.pattern.permute.xlu0 3
    %809 = vperm.xlu0 %808, %v616
    %v810 = vpop.permute.xlu0 %809
    %812 = vset.pattern.permute.xlu0 3
    %813 = vperm.xlu0 %812, %v617
    %v814 = vpop.permute.xlu0 %813
    %816 = vset.pattern.permute.xlu0 3
    %817 = vperm.xlu0 %816, %v618
    %v818 = vpop.permute.xlu0 %817
    %820 = vset.pattern.permute.xlu0 3
    %821 = vperm.xlu0 %820, %v619
    %v822 = vpop.permute.xlu0 %821
    %v824 = vlaneseq
    %v825 = vshrl.u32 %v824, 7
    %v826 = vsub.s32 3, %v825
    %v827 = vrot.slane %v636, %v826
    %v828 = vsub.f32 %v794, %v827
    %v829 = vsub.f32 %v798, %v827
    %v830 = vsub.f32 %v802, %v827
    %v831 = vsub.f32 %v806, %v827
    %v832 = vsub.f32 %v810, %v827
    %v833 = vsub.f32 %v814, %v827
    %v834 = vsub.f32 %v818, %v827
    %v835 = vsub.f32 %v822, %v827
    %v836 = vmax.f32 %v696, %v740
    %v837 = vmax.f32 %v697, %v741
    %v838 = vmax.f32 %v698, %v742
    %v839 = vmax.f32 %v699, %v743
    %v840 = vmax.f32 %v700, %v744
    %v841 = vmax.f32 %v701, %v745
    %v842 = vmax.f32 %v702, %v746
    %v843 = vmax.f32 %v703, %v747
    %v844 = vmax.f32 %v784, %v828
    %v845 = vmax.f32 %v785, %v829
    %v846 = vmax.f32 %v786, %v830
    %v847 = vmax.f32 %v787, %v831
    %v848 = vmax.f32 %v788, %v832
    %v849 = vmax.f32 %v789, %v833
    %v850 = vmax.f32 %v790, %v834
    %v851 = vmax.f32 %v791, %v835
    %v852 = vmax.f32 %v836, %v844
    %v853 = vmax.f32 %v837, %v845
    %v854 = vmax.f32 %v838, %v846
    %v855 = vmax.f32 %v839, %v847
    %v856 = vmax.f32 %v840, %v848
    %v857 = vmax.f32 %v841, %v849
    %v858 = vmax.f32 %v842, %v850
    %v859 = vmax.f32 %v843, %v851
    %v860 = vsub.f32 %v696, %v852
    %v861 = vsub.f32 %v697, %v853
    %v862 = vsub.f32 %v698, %v854
    %v863 = vsub.f32 %v699, %v855
    %v864 = vsub.f32 %v700, %v856
    %v865 = vsub.f32 %v701, %v857
    %v866 = vsub.f32 %v702, %v858
    %v867 = vsub.f32 %v703, %v859
    %v868 = vsub.f32 %v740, %v852
    %v869 = vsub.f32 %v741, %v853
    %v870 = vsub.f32 %v742, %v854
    %v871 = vsub.f32 %v743, %v855
    %v872 = vsub.f32 %v744, %v856
    %v873 = vsub.f32 %v745, %v857
    %v874 = vsub.f32 %v746, %v858
    %v875 = vsub.f32 %v747, %v859
    %v876 = vsub.f32 %v784, %v852
    %v877 = vsub.f32 %v785, %v853
    %v878 = vsub.f32 %v786, %v854
    %v879 = vsub.f32 %v787, %v855
    %v880 = vsub.f32 %v788, %v856
    %v881 = vsub.f32 %v789, %v857
    %v882 = vsub.f32 %v790, %v858
    %v883 = vsub.f32 %v791, %v859
    %v884 = vsub.f32 %v828, %v852
    %v885 = vsub.f32 %v829, %v853
    %v886 = vsub.f32 %v830, %v854
    %v887 = vsub.f32 %v831, %v855
    %v888 = vsub.f32 %v832, %v856
    %v889 = vsub.f32 %v833, %v857
    %v890 = vsub.f32 %v834, %v858
    %v891 = vsub.f32 %v835, %v859
    %900 = vrot.lane.b32.xlu0 %v868, 64
    %v901 = vpop.permute.xlu0 %900
    %902 = vrot.lane.b32.xlu0 %v869, 64
    %v903 = vpop.permute.xlu0 %902
    %904 = vrot.lane.b32.xlu0 %v870, 64
    %v905 = vpop.permute.xlu0 %904
    %906 = vrot.lane.b32.xlu0 %v871, 64
    %v907 = vpop.permute.xlu0 %906
    %908 = vrot.lane.b32.xlu0 %v872, 64
    %v909 = vpop.permute.xlu0 %908
    %910 = vrot.lane.b32.xlu0 %v873, 64
    %v911 = vpop.permute.xlu0 %910
    %912 = vrot.lane.b32.xlu0 %v874, 64
    %v913 = vpop.permute.xlu0 %912
    %914 = vrot.lane.b32.xlu0 %v875, 64
    %v915 = vpop.permute.xlu0 %914
    %932 = vrot.lane.b32.xlu0 %v884, 64
    %v933 = vpop.permute.xlu0 %932
    %934 = vrot.lane.b32.xlu0 %v885, 64
    %v935 = vpop.permute.xlu0 %934
    %936 = vrot.lane.b32.xlu0 %v886, 64
    %v937 = vpop.permute.xlu0 %936
    %938 = vrot.lane.b32.xlu0 %v887, 64
    %v939 = vpop.permute.xlu0 %938
    %940 = vrot.lane.b32.xlu0 %v888, 64
    %v941 = vpop.permute.xlu0 %940
    %942 = vrot.lane.b32.xlu0 %v889, 64
    %v943 = vpop.permute.xlu0 %942
    %944 = vrot.lane.b32.xlu0 %v890, 64
    %v945 = vpop.permute.xlu0 %944
    %946 = vrot.lane.b32.xlu0 %v891, 64
    %v947 = vpop.permute.xlu0 %946
    %v956 = vsel %vm327, %v860, %v901
    %v957 = vsel %vm327, %v861, %v903
    %v958 = vsel %vm327, %v862, %v905
    %v959 = vsel %vm327, %v863, %v907
    %v960 = vsel %vm327, %v864, %v909
    %v961 = vsel %vm327, %v865, %v911
    %v962 = vsel %vm327, %v866, %v913
    %v963 = vsel %vm327, %v867, %v915
    %v964 = vsel %vm327, %v876, %v933
    %v965 = vsel %vm327, %v877, %v935
    %v966 = vsel %vm327, %v878, %v937
    %v967 = vsel %vm327, %v879, %v939
    %v968 = vsel %vm327, %v880, %v941
    %v969 = vsel %vm327, %v881, %v943
    %v970 = vsel %vm327, %v882, %v945
    %v971 = vsel %vm327, %v883, %v947
    %v972 = vmul.f32 %v956, 1.442695
    %v973 = vpow.pop %v972
    %v974 = vmul.f32 %v964, 1.442695
    %v975 = vpow.pop %v974
    %v976 = vmul.f32 %v957, 1.442695
    %v977 = vpow.pop %v976
    %v978 = vmul.f32 %v965, 1.442695
    %v979 = vpow.pop %v978
    %v980 = vmul.f32 %v958, 1.442695
    %v981 = vpow.pop %v980
    %v982 = vmul.f32 %v966, 1.442695
    %v983 = vpow.pop %v982
    %v984 = vmul.f32 %v959, 1.442695
    %v985 = vpow.pop %v984
    %v986 = vmul.f32 %v967, 1.442695
    %v987 = vpow.pop %v986
    %v988 = vmul.f32 %v960, 1.442695
    %v989 = vpow.pop %v988
    %v990 = vmul.f32 %v968, 1.442695
    %v991 = vpow.pop %v990
    %v992 = vmul.f32 %v961, 1.442695
    %v993 = vpow.pop %v992
    %v994 = vmul.f32 %v969, 1.442695
    %v995 = vpow.pop %v994
    %v996 = vmul.f32 %v962, 1.442695
    %v997 = vpow.pop %v996
    %v998 = vmul.f32 %v970, 1.442695
    %v999 = vpow.pop %v998
    %v1000 = vmul.f32 %v963, 1.442695
    %v1001 = vpow.pop %v1000
    %v1002 = vmul.f32 %v971, 1.442695
    %v1003 = vpow.pop %v1002
    %v1004 = vadd.f32 %v973, %v975
    %v1005 = vadd.f32 %v977, %v979
    %v1006 = vadd.f32 %v981, %v983
    %v1007 = vadd.f32 %v985, %v987
    %v1008 = vadd.f32 %v989, %v991
    %v1009 = vadd.f32 %v993, %v995
    %v1010 = vadd.f32 %v997, %v999
    %v1011 = vadd.f32 %v1001, %v1003
    %1020 = vrot.lane.b32.xlu0 %v1004, 64
    %v1021 = vpop.permute.xlu0 %1020
    %1022 = vrot.lane.b32.xlu0 %v1005, 64
    %v1023 = vpop.permute.xlu0 %1022
    %1024 = vrot.lane.b32.xlu0 %v1006, 64
    %v1025 = vpop.permute.xlu0 %1024
    %1026 = vrot.lane.b32.xlu0 %v1007, 64
    %v1027 = vpop.permute.xlu0 %1026
    %1028 = vrot.lane.b32.xlu0 %v1008, 64
    %v1029 = vpop.permute.xlu0 %1028
    %1030 = vrot.lane.b32.xlu0 %v1009, 64
    %v1031 = vpop.permute.xlu0 %1030
    %1032 = vrot.lane.b32.xlu0 %v1010, 64
    %v1033 = vpop.permute.xlu0 %1032
    %1034 = vrot.lane.b32.xlu0 %v1011, 64
    %v1035 = vpop.permute.xlu0 %1034
    %v1044 = vadd.f32 %v1004, %v1021
    %v1045 = vadd.f32 %v1005, %v1023
    %v1046 = vadd.f32 %v1006, %v1025
    %v1047 = vadd.f32 %v1007, %v1027
    %v1048 = vadd.f32 %v1008, %v1029
    %v1049 = vadd.f32 %v1009, %v1031
    %v1050 = vadd.f32 %v1010, %v1033
    %v1051 = vadd.f32 %v1011, %v1035
    %v1052 = vrcp.pop %v1044
    %v1053 = vmul.f32 %v353, %v1052
    %v1054 = vrcp.pop %v1045
    %v1055 = vmul.f32 %v355, %v1054
    %v1056 = vrcp.pop %v1046
    %v1057 = vmul.f32 %v357, %v1056
    %v1058 = vrcp.pop %v1047
    %v1059 = vmul.f32 %v359, %v1058
    %v1060 = vrcp.pop %v1048
    %v1061 = vmul.f32 %v361, %v1060
    %v1062 = vrcp.pop %v1049
    %v1063 = vmul.f32 %v363, %v1062
    %v1064 = vrcp.pop %v1050
    %v1065 = vmul.f32 %v365, %v1064
    %v1066 = vrcp.pop %v1051
    %v1067 = vmul.f32 %v367, %v1066
    %1076 = vrot.lane.b32.xlu0 %v1053, 64
    %v1077 = vpop.permute.xlu0 %1076
    %1078 = vrot.lane.b32.xlu0 %v1055, 64
    %v1079 = vpop.permute.xlu0 %1078
    %1080 = vrot.lane.b32.xlu0 %v1057, 64
    %v1081 = vpop.permute.xlu0 %1080
    %1082 = vrot.lane.b32.xlu0 %v1059, 64
    %v1083 = vpop.permute.xlu0 %1082
    %1084 = vrot.lane.b32.xlu0 %v1061, 64
    %v1085 = vpop.permute.xlu0 %1084
    %1086 = vrot.lane.b32.xlu0 %v1063, 64
    %v1087 = vpop.permute.xlu0 %1086
    %1088 = vrot.lane.b32.xlu0 %v1065, 64
    %v1089 = vpop.permute.xlu0 %1088
    %1090 = vrot.lane.b32.xlu0 %v1067, 64
    %v1091 = vpop.permute.xlu0 %1090
    %v1100 = vsel %vm327, %v1053, %v1077
    %v1101 = vsel %vm327, %v1055, %v1079
    %v1102 = vsel %vm327, %v1057, %v1081
    %v1103 = vsel %vm327, %v1059, %v1083
    %v1104 = vsel %vm327, %v1061, %v1085
    %v1105 = vsel %vm327, %v1063, %v1087
    %v1106 = vsel %vm327, %v1065, %v1089
    %v1107 = vsel %vm327, %v1067, %v1091
    %v1108 = vmul.f32 %v973, %v1100
    %v1109 = vmul.f32 %v975, %v1100
    %v1110 = vmul.f32 %v977, %v1101
    %v1111 = vmul.f32 %v979, %v1101
    %v1112 = vmul.f32 %v981, %v1102
    %v1113 = vmul.f32 %v983, %v1102
    %v1114 = vmul.f32 %v985, %v1103
    %v1115 = vmul.f32 %v987, %v1103
    %v1116 = vmul.f32 %v989, %v1104
    %v1117 = vmul.f32 %v991, %v1104
    %v1118 = vmul.f32 %v993, %v1105
    %v1119 = vmul.f32 %v995, %v1105
    %v1120 = vmul.f32 %v997, %v1106
    %v1121 = vmul.f32 %v999, %v1106
    %v1122 = vmul.f32 %v1001, %v1107
    %v1123 = vmul.f32 %v1003, %v1107
    %v1125 = vsel %vm327, %v1108, 0
    %v1128 = vsel %vm327, %v1110, 0
    %v1131 = vsel %vm327, %v1112, 0
    %v1134 = vsel %vm327, %v1114, 0
    %v1137 = vsel %vm327, %v1116, 0
    %v1140 = vsel %vm327, %v1118, 0
    %v1143 = vsel %vm327, %v1120, 0
    %v1146 = vsel %vm327, %v1122, 0
    %1148 = vmatprep.subr.mxu0 0.0
    %1149 = vmatpush1.msra.mxu0 %v465
    %1150 = vmatprep.subr.mxu0 0.0
    %1151 = vmatpush1.msra.mxu0 %v470
    %1152 = vmatprep.subr.mxu0 0.0
    %1153 = vmatpush1.msra.mxu0 %v475
    %1154 = vmatprep.subr.mxu0 0.0
    %1155 = vmatpush1.msra.mxu0 %v480
    %1156 = vmatprep.subr.mxu0 0.0
    %1157 = vmatpush1.msra.mxu0 %v485
    %1158 = vmatprep.subr.mxu0 0.0
    %1159 = vmatpush1.msra.mxu0 %v490
    %1160 = vmatprep.subr.mxu0 0.0
    %1161 = vmatpush1.msra.mxu0 %v495
    %1162 = vmatprep.subr.mxu0 0.0
    %1163 = vmatpush1.msra.mxu0 %v500
    %1164 = vmatprep.subr.mxu0 0.0
    %1165 = vmatpush1.msra.mxu0 0.0
    %1166 = vmatprep.subr.mxu0 0.0
    %1167 = vmatpush1.msra.mxu0 0.0
    %1168 = vmatprep.subr.mxu0 0.0
    %1169 = vmatpush1.msra.mxu0 0.0
    %1170 = vmatprep.subr.mxu0 0.0
    %1171 = vmatpush1.msra.mxu0 0.0
    %1172 = vmatprep.subr.mxu0 0.0
    %1173 = vmatpush1.msra.mxu0 0.0
    %1174 = vmatprep.subr.mxu0 0.0
    %1175 = vmatpush1.msra.mxu0 0.0
    %1176 = vmatprep.subr.mxu0 0.0
    %1177 = vmatpush1.msra.mxu0 0.0
    %1178 = vmatprep.subr.mxu0 0.0
    %1179 = vmatpush1.msra.mxu0 0.0
    %1180 = vmatprep.subr.mxu0 0.0
    %1181 = vmatpush1.msra.mxu0 0.0
    %1182 = vmatprep.subr.mxu0 0.0
    %1183 = vmatpush1.msra.mxu0 0.0
    %1184 = vmatprep.subr.mxu0 0.0
    %1185 = vmatpush1.msra.mxu0 0.0
    %1186 = vmatprep.subr.mxu0 0.0
    %1187 = vmatpush1.msra.mxu0 0.0
    %1188 = vmatprep.subr.mxu0 0.0
    %1189 = vmatpush1.msra.mxu0 0.0
    %1190 = vmatprep.subr.mxu0 0.0
    %1191 = vmatpush1.msra.mxu0 0.0
    %1192 = vmatprep.subr.mxu0 0.0
    %1193 = vmatpush1.msra.mxu0 0.0
    %1194 = vmatprep.subr.mxu0 0.0
    %1195 = vmatpush1.msra.mxu0 0.0
    %1196 = vmatprep.subr.mxu0 0.0
    %1197 = vmatpush1.msra.mxu0 0.0
    %1198 = vmatprep.subr.mxu0 0.0
    %1199 = vmatpush1.msra.mxu0 0.0
    %1200 = vmatprep.subr.mxu0 0.0
    %1201 = vmatpush1.msra.mxu0 0.0
    %1202 = vmatprep.subr.mxu0 0.0
    %1203 = vmatpush1.msra.mxu0 0.0
    %1204 = vmatprep.subr.mxu0 0.0
    %1205 = vmatpush1.msra.mxu0 0.0
    %1206 = vmatprep.subr.mxu0 0.0
    %1207 = vmatpush1.msra.mxu0 0.0
    %1208 = vmatprep.subr.mxu0 0.0
    %1209 = vmatpush1.msra.mxu0 0.0
    %1210 = vmatprep.subr.mxu0 0.0
    %1211 = vmatpush1.msra.mxu0 0.0
    %1212 = vmatprep.mubr.f32.mxu0 0.0
    %1213 = vmatmul.mubr.f32.gmra.mrb[0].mxu0 %v1125
    %v1214 = vpop.f32.mrb[0].mxu0
    %v1215 = vadd.f32 0.0, %v1214
    %v1216 = vpop.f32.mrb[0].mxu0
    %1217 = vmatprep.mubr.f32.mxu0 0.0
    %1218 = vmatmul.mubr.f32.gmra.mrb[0].mxu0 %v1128
    %v1219 = vpop.f32.mrb[0].mxu0
    %v1220 = vadd.f32 0.0, %v1219
    %v1221 = vpop.f32.mrb[0].mxu0
    %1222 = vmatprep.mubr.f32.mxu0 0.0
    %1223 = vmatmul.mubr.f32.gmra.mrb[0].mxu0 %v1131
    %v1224 = vpop.f32.mrb[0].mxu0
    %v1225 = vadd.f32 0.0, %v1224
    %v1226 = vpop.f32.mrb[0].mxu0
    %1227 = vmatprep.mubr.f32.mxu0 0.0
    %1228 = vmatmul.mubr.f32.gmra.mrb[0].mxu0 %v1134
    %v1229 = vpop.f32.mrb[0].mxu0
    %v1230 = vadd.f32 0.0, %v1229
    %v1231 = vpop.f32.mrb[0].mxu0
    %1232 = vmatprep.mubr.f32.mxu0 0.0
    %1233 = vmatmul.mubr.f32.gmra.mrb[0].mxu0 %v1137
    %v1234 = vpop.f32.mrb[0].mxu0
    %v1235 = vadd.f32 0.0, %v1234
    %v1236 = vpop.f32.mrb[0].mxu0
    %1237 = vmatprep.mubr.f32.mxu0 0.0
    %1238 = vmatmul.mubr.f32.gmra.mrb[0].mxu0 %v1140
    %v1239 = vpop.f32.mrb[0].mxu0
    %v1240 = vadd.f32 0.0, %v1239
    %v1241 = vpop.f32.mrb[0].mxu0
    %1242 = vmatprep.mubr.f32.mxu0 0.0
    %1243 = vmatmul.mubr.f32.gmra.mrb[0].mxu0 %v1143
    %v1244 = vpop.f32.mrb[0].mxu0
    %v1245 = vadd.f32 0.0, %v1244
    %v1246 = vpop.f32.mrb[0].mxu0
    %1247 = vmatprep.mubr.f32.mxu0 0.0
    %1248 = vmatmul.mubr.f32.gmra.mrb[0].mxu0 %v1146
    %v1249 = vpop.f32.mrb[0].mxu0
    %v1250 = vadd.f32 0.0, %v1249
    %v1251 = vpop.f32.mrb[0].mxu0
    %1252 = vdwg.mxu0
    %1261 = vrot.lane.b32.xlu0 %v1215, 8
    %v1262 = vpop.permute.xlu0 %1261
    %1263 = vrot.lane.b32.xlu0 %v1220, 8
    %v1264 = vpop.permute.xlu0 %1263
    %1265 = vrot.lane.b32.xlu0 %v1225, 8
    %v1266 = vpop.permute.xlu0 %1265
    %1267 = vrot.lane.b32.xlu0 %v1230, 8
    %v1268 = vpop.permute.xlu0 %1267
    %1269 = vrot.lane.b32.xlu0 %v1235, 8
    %v1270 = vpop.permute.xlu0 %1269
    %1271 = vrot.lane.b32.xlu0 %v1240, 8
    %v1272 = vpop.permute.xlu0 %1271
    %1273 = vrot.lane.b32.xlu0 %v1245, 8
    %v1274 = vpop.permute.xlu0 %1273
    %1275 = vrot.lane.b32.xlu0 %v1250, 8
    %v1276 = vpop.permute.xlu0 %1275
    %v1285 = vadd.f32 %v611, %v1262
    %v1286 = vadd.f32 %v611, %v1264
    %v1287 = vadd.f32 %v611, %v1266
    %v1288 = vadd.f32 %v611, %v1268
    %v1289 = vadd.f32 %v611, %v1270
    %v1290 = vadd.f32 %v611, %v1272
    %v1291 = vadd.f32 %v611, %v1274
    %v1292 = vadd.f32 %v611, %v1276
    %1293 = vrot.lane.b32.xlu0 %v1108, 64
    %v1294 = vpop.permute.xlu0 %1293
    %1295 = vrot.lane.b32.xlu0 %v1110, 64
    %v1296 = vpop.permute.xlu0 %1295
    %1297 = vrot.lane.b32.xlu0 %v1112, 64
    %v1298 = vpop.permute.xlu0 %1297
    %1299 = vrot.lane.b32.xlu0 %v1114, 64
    %v1300 = vpop.permute.xlu0 %1299
    %1301 = vrot.lane.b32.xlu0 %v1116, 64
    %v1302 = vpop.permute.xlu0 %1301
    %1303 = vrot.lane.b32.xlu0 %v1118, 64
    %v1304 = vpop.permute.xlu0 %1303
    %1305 = vrot.lane.b32.xlu0 %v1120, 64
    %v1306 = vpop.permute.xlu0 %1305
    %1307 = vrot.lane.b32.xlu0 %v1122, 64
    %v1308 = vpop.permute.xlu0 %1307
    %1317 = vrot.lane.b32.xlu0 %v465, 96
    %v1318 = vpop.permute.xlu0 %1317
    %1319 = vrot.lane.b32.xlu0 %v470, 96
    %v1320 = vpop.permute.xlu0 %1319
    %1321 = vrot.lane.b32.xlu0 %v475, 96
    %v1322 = vpop.permute.xlu0 %1321
    %1323 = vrot.lane.b32.xlu0 %v480, 96
    %v1324 = vpop.permute.xlu0 %1323
    %1325 = vrot.lane.b32.xlu0 %v485, 96
    %v1326 = vpop.permute.xlu0 %1325
    %1327 = vrot.lane.b32.xlu0 %v490, 96
    %v1328 = vpop.permute.xlu0 %1327
    %1329 = vrot.lane.b32.xlu0 %v495, 96
    %v1330 = vpop.permute.xlu0 %1329
    %1331 = vrot.lane.b32.xlu0 %v500, 96
    %v1332 = vpop.permute.xlu0 %1331
    %v1341 = vsel %vm327, %v1294, 0
    %v1343 = vsel %vm327, %v1296, 0
    %v1345 = vsel %vm327, %v1298, 0
    %v1347 = vsel %vm327, %v1300, 0
    %v1349 = vsel %vm327, %v1302, 0
    %v1351 = vsel %vm327, %v1304, 0
    %v1353 = vsel %vm327, %v1306, 0
    %v1355 = vsel %vm327, %v1308, 0
    %1357 = vmatprep.subr.mxu0 0.0
    %1358 = vmatpush1.msra.mxu0 %v1318
    %1359 = vmatprep.subr.mxu0 0.0
    %1360 = vmatpush1.msra.mxu0 %v1320
    %1361 = vmatprep.subr.mxu0 0.0
    %1362 = vmatpush1.msra.mxu0 %v1322
    %1363 = vmatprep.subr.mxu0 0.0
    %1364 = vmatpush1.msra.mxu0 %v1324
    %1365 = vmatprep.subr.mxu0 0.0
    %1366 = vmatpush1.msra.mxu0 %v1326
    %1367 = vmatprep.subr.mxu0 0.0
    %1368 = vmatpush1.msra.mxu0 %v1328
    %1369 = vmatprep.subr.mxu0 0.0
    %1370 = vmatpush1.msra.mxu0 %v1330
    %1371 = vmatprep.subr.mxu0 0.0
    %1372 = vmatpush1.msra.mxu0 %v1332
    %1373 = vmatprep.subr.mxu0 0.0
    %1374 = vmatpush1.msra.mxu0 0.0
    %1375 = vmatprep.subr.mxu0 0.0
    %1376 = vmatpush1.msra.mxu0 0.0
    %1377 = vmatprep.subr.mxu0 0.0
    %1378 = vmatpush1.msra.mxu0 0.0
    %1379 = vmatprep.subr.mxu0 0.0
    %1380 = vmatpush1.msra.mxu0 0.0
    %1381 = vmatprep.subr.mxu0 0.0
    %1382 = vmatpush1.msra.mxu0 0.0
    %1383 = vmatprep.subr.mxu0 0.0
    %1384 = vmatpush1.msra.mxu0 0.0
    %1385 = vmatprep.subr.mxu0 0.0
    %1386 = vmatpush1.msra.mxu0 0.0
    %1387 = vmatprep.subr.mxu0 0.0
    %1388 = vmatpush1.msra.mxu0 0.0
    %1389 = vmatprep.subr.mxu0 0.0
    %1390 = vmatpush1.msra.mxu0 0.0
    %1391 = vmatprep.subr.mxu0 0.0
    %1392 = vmatpush1.msra.mxu0 0.0
    %1393 = vmatprep.subr.mxu0 0.0
    %1394 = vmatpush1.msra.mxu0 0.0
    %1395 = vmatprep.subr.mxu0 0.0
    %1396 = vmatpush1.msra.mxu0 0.0
    %1397 = vmatprep.subr.mxu0 0.0
    %1398 = vmatpush1.msra.mxu0 0.0
    %1399 = vmatprep.subr.mxu0 0.0
    %1400 = vmatpush1.msra.mxu0 0.0
    %1401 = vmatprep.subr.mxu0 0.0
    %1402 = vmatpush1.msra.mxu0 0.0
    %1403 = vmatprep.subr.mxu0 0.0
    %1404 = vmatpush1.msra.mxu0 0.0
    %1405 = vmatprep.subr.mxu0 0.0
    %1406 = vmatpush1.msra.mxu0 0.0
    %1407 = vmatprep.subr.mxu0 0.0
    %1408 = vmatpush1.msra.mxu0 0.0
    %1409 = vmatprep.subr.mxu0 0.0
    %1410 = vmatpush1.msra.mxu0 0.0
    %1411 = vmatprep.subr.mxu0 0.0
    %1412 = vmatpush1.msra.mxu0 0.0
    %1413 = vmatprep.subr.mxu0 0.0
    %1414 = vmatpush1.msra.mxu0 0.0
    %1415 = vmatprep.subr.mxu0 0.0
    %1416 = vmatpush1.msra.mxu0 0.0
    %1417 = vmatprep.subr.mxu0 0.0
    %1418 = vmatpush1.msra.mxu0 0.0
    %1419 = vmatprep.subr.mxu0 0.0
    %1420 = vmatpush1.msra.mxu0 0.0
    %1421 = vmatprep.mubr.f32.mxu0 0.0
    %1422 = vmatmul.mubr.f32.gmra.mrb[0].mxu0 %v1341
    %v1423 = vpop.f32.mrb[0].mxu0
    %v1424 = vadd.f32 0.0, %v1423
    %v1425 = vpop.f32.mrb[0].mxu0
    %1426 = vmatprep.mubr.f32.mxu0 0.0
    %1427 = vmatmul.mubr.f32.gmra.mrb[0].mxu0 %v1343
    %v1428 = vpop.f32.mrb[0].mxu0
    %v1429 = vadd.f32 0.0, %v1428
    %v1430 = vpop.f32.mrb[0].mxu0
    %1431 = vmatprep.mubr.f32.mxu0 0.0
    %1432 = vmatmul.mubr.f32.gmra.mrb[0].mxu0 %v1345
    %v1433 = vpop.f32.mrb[0].mxu0
    %v1434 = vadd.f32 0.0, %v1433
    %v1435 = vpop.f32.mrb[0].mxu0
    %1436 = vmatprep.mubr.f32.mxu0 0.0
    %1437 = vmatmul.mubr.f32.gmra.mrb[0].mxu0 %v1347
    %v1438 = vpop.f32.mrb[0].mxu0
    %v1439 = vadd.f32 0.0, %v1438
    %v1440 = vpop.f32.mrb[0].mxu0
    %1441 = vmatprep.mubr.f32.mxu0 0.0
    %1442 = vmatmul.mubr.f32.gmra.mrb[0].mxu0 %v1349
    %v1443 = vpop.f32.mrb[0].mxu0
    %v1444 = vadd.f32 0.0, %v1443
    %v1445 = vpop.f32.mrb[0].mxu0
    %1446 = vmatprep.mubr.f32.mxu0 0.0
    %1447 = vmatmul.mubr.f32.gmra.mrb[0].mxu0 %v1351
    %v1448 = vpop.f32.mrb[0].mxu0
    %v1449 = vadd.f32 0.0, %v1448
    %v1450 = vpop.f32.mrb[0].mxu0
    %1451 = vmatprep.mubr.f32.mxu0 0.0
    %1452 = vmatmul.mubr.f32.gmra.mrb[0].mxu0 %v1353
    %v1453 = vpop.f32.mrb[0].mxu0
    %v1454 = vadd.f32 0.0, %v1453
    %v1455 = vpop.f32.mrb[0].mxu0
    %1456 = vmatprep.mubr.f32.mxu0 0.0
    %1457 = vmatmul.mubr.f32.gmra.mrb[0].mxu0 %v1355
    %v1458 = vpop.f32.mrb[0].mxu0
    %v1459 = vadd.f32 0.0, %v1458
    %v1460 = vpop.f32.mrb[0].mxu0
    %1461 = vdwg.mxu0
    %1470 = vrot.lane.b32.xlu0 %v1424, 8
    %v1471 = vpop.permute.xlu0 %1470
    %1472 = vrot.lane.b32.xlu0 %v1429, 8
    %v1473 = vpop.permute.xlu0 %1472
    %1474 = vrot.lane.b32.xlu0 %v1434, 8
    %v1475 = vpop.permute.xlu0 %1474
    %1476 = vrot.lane.b32.xlu0 %v1439, 8
    %v1477 = vpop.permute.xlu0 %1476
    %1478 = vrot.lane.b32.xlu0 %v1444, 8
    %v1479 = vpop.permute.xlu0 %1478
    %1480 = vrot.lane.b32.xlu0 %v1449, 8
    %v1481 = vpop.permute.xlu0 %1480
    %1482 = vrot.lane.b32.xlu0 %v1454, 8
    %v1483 = vpop.permute.xlu0 %1482
    %1484 = vrot.lane.b32.xlu0 %v1459, 8
    %v1485 = vpop.permute.xlu0 %1484
    %v1494 = vadd.f32 %v1285, %v1471
    %v1495 = vadd.f32 %v1286, %v1473
    %v1496 = vadd.f32 %v1287, %v1475
    %v1497 = vadd.f32 %v1288, %v1477
    %v1498 = vadd.f32 %v1289, %v1479
    %v1499 = vadd.f32 %v1290, %v1481
    %v1500 = vadd.f32 %v1291, %v1483
    %v1501 = vadd.f32 %v1292, %v1485
    %1502 = vrot.lane.b32.xlu0 %v465, 64
    %v1503 = vpop.permute.xlu0 %1502
    %1504 = vrot.lane.b32.xlu0 %v470, 64
    %v1505 = vpop.permute.xlu0 %1504
    %1506 = vrot.lane.b32.xlu0 %v475, 64
    %v1507 = vpop.permute.xlu0 %1506
    %1508 = vrot.lane.b32.xlu0 %v480, 64
    %v1509 = vpop.permute.xlu0 %1508
    %1510 = vrot.lane.b32.xlu0 %v485, 64
    %v1511 = vpop.permute.xlu0 %1510
    %1512 = vrot.lane.b32.xlu0 %v490, 64
    %v1513 = vpop.permute.xlu0 %1512
    %1514 = vrot.lane.b32.xlu0 %v495, 64
    %v1515 = vpop.permute.xlu0 %1514
    %1516 = vrot.lane.b32.xlu0 %v500, 64
    %v1517 = vpop.permute.xlu0 %1516
    %v1527 = vsel %vm327, %v1109, 0
    %v1530 = vsel %vm327, %v1111, 0
    %v1533 = vsel %vm327, %v1113, 0
    %v1536 = vsel %vm327, %v1115, 0
    %v1539 = vsel %vm327, %v1117, 0
    %v1542 = vsel %vm327, %v1119, 0
    %v1545 = vsel %vm327, %v1121, 0
    %v1548 = vsel %vm327, %v1123, 0
    %1550 = vmatprep.subr.mxu0 0.0
    %1551 = vmatpush1.msra.mxu0 %v1503
    %1552 = vmatprep.subr.mxu0 0.0
    %1553 = vmatpush1.msra.mxu0 %v1505
    %1554 = vmatprep.subr.mxu0 0.0
    %1555 = vmatpush1.msra.mxu0 %v1507
    %1556 = vmatprep.subr.mxu0 0.0
    %1557 = vmatpush1.msra.mxu0 %v1509
    %1558 = vmatprep.subr.mxu0 0.0
    %1559 = vmatpush1.msra.mxu0 %v1511
    %1560 = vmatprep.subr.mxu0 0.0
    %1561 = vmatpush1.msra.mxu0 %v1513
    %1562 = vmatprep.subr.mxu0 0.0
    %1563 = vmatpush1.msra.mxu0 %v1515
    %1564 = vmatprep.subr.mxu0 0.0
    %1565 = vmatpush1.msra.mxu0 %v1517
    %1566 = vmatprep.subr.mxu0 0.0
    %1567 = vmatpush1.msra.mxu0 0.0
    %1568 = vmatprep.subr.mxu0 0.0
    %1569 = vmatpush1.msra.mxu0 0.0
    %1570 = vmatprep.subr.mxu0 0.0
    %1571 = vmatpush1.msra.mxu0 0.0
    %1572 = vmatprep.subr.mxu0 0.0
    %1573 = vmatpush1.msra.mxu0 0.0
    %1574 = vmatprep.subr.mxu0 0.0
    %1575 = vmatpush1.msra.mxu0 0.0
    %1576 = vmatprep.subr.mxu0 0.0
    %1577 = vmatpush1.msra.mxu0 0.0
    %1578 = vmatprep.subr.mxu0 0.0
    %1579 = vmatpush1.msra.mxu0 0.0
    %1580 = vmatprep.subr.mxu0 0.0
    %1581 = vmatpush1.msra.mxu0 0.0
    %1582 = vmatprep.subr.mxu0 0.0
    %1583 = vmatpush1.msra.mxu0 0.0
    %1584 = vmatprep.subr.mxu0 0.0
    %1585 = vmatpush1.msra.mxu0 0.0
    %1586 = vmatprep.subr.mxu0 0.0
    %1587 = vmatpush1.msra.mxu0 0.0
    %1588 = vmatprep.subr.mxu0 0.0
    %1589 = vmatpush1.msra.mxu0 0.0
    %1590 = vmatprep.subr.mxu0 0.0
    %1591 = vmatpush1.msra.mxu0 0.0
    %1592 = vmatprep.subr.mxu0 0.0
    %1593 = vmatpush1.msra.mxu0 0.0
    %1594 = vmatprep.subr.mxu0 0.0
    %1595 = vmatpush1.msra.mxu0 0.0
    %1596 = vmatprep.subr.mxu0 0.0
    %1597 = vmatpush1.msra.mxu0 0.0
    %1598 = vmatprep.subr.mxu0 0.0
    %1599 = vmatpush1.msra.mxu0 0.0
    %1600 = vmatprep.subr.mxu0 0.0
    %1601 = vmatpush1.msra.mxu0 0.0
    %1602 = vmatprep.subr.mxu0 0.0
    %1603 = vmatpush1.msra.mxu0 0.0
    %1604 = vmatprep.subr.mxu0 0.0
    %1605 = vmatpush1.msra.mxu0 0.0
    %1606 = vmatprep.subr.mxu0 0.0
    %1607 = vmatpush1.msra.mxu0 0.0
    %1608 = vmatprep.subr.mxu0 0.0
    %1609 = vmatpush1.msra.mxu0 0.0
    %1610 = vmatprep.subr.mxu0 0.0
    %1611 = vmatpush1.msra.mxu0 0.0
    %1612 = vmatprep.subr.mxu0 0.0
    %1613 = vmatpush1.msra.mxu0 0.0
    %1614 = vmatprep.mubr.f32.mxu0 0.0
    %1615 = vmatmul.mubr.f32.gmra.mrb[0].mxu0 %v1527
    %v1616 = vpop.f32.mrb[0].mxu0
    %v1617 = vadd.f32 0.0, %v1616
    %v1618 = vpop.f32.mrb[0].mxu0
    %1619 = vmatprep.mubr.f32.mxu0 0.0
    %1620 = vmatmul.mubr.f32.gmra.mrb[0].mxu0 %v1530
    %v1621 = vpop.f32.mrb[0].mxu0
    %v1622 = vadd.f32 0.0, %v1621
    %v1623 = vpop.f32.mrb[0].mxu0
    %1624 = vmatprep.mubr.f32.mxu0 0.0
    %1625 = vmatmul.mubr.f32.gmra.mrb[0].mxu0 %v1533
    %v1626 = vpop.f32.mrb[0].mxu0
    %v1627 = vadd.f32 0.0, %v1626
    %v1628 = vpop.f32.mrb[0].mxu0
    %1629 = vmatprep.mubr.f32.mxu0 0.0
    %1630 = vmatmul.mubr.f32.gmra.mrb[0].mxu0 %v1536
    %v1631 = vpop.f32.mrb[0].mxu0
    %v1632 = vadd.f32 0.0, %v1631
    %v1633 = vpop.f32.mrb[0].mxu0
    %1634 = vmatprep.mubr.f32.mxu0 0.0
    %1635 = vmatmul.mubr.f32.gmra.mrb[0].mxu0 %v1539
    %v1636 = vpop.f32.mrb[0].mxu0
    %v1637 = vadd.f32 0.0, %v1636
    %v1638 = vpop.f32.mrb[0].mxu0
    %1639 = vmatprep.mubr.f32.mxu0 0.0
    %1640 = vmatmul.mubr.f32.gmra.mrb[0].mxu0 %v1542
    %v1641 = vpop.f32.mrb[0].mxu0
    %v1642 = vadd.f32 0.0, %v1641
    %v1643 = vpop.f32.mrb[0].mxu0
    %1644 = vmatprep.mubr.f32.mxu0 0.0
    %1645 = vmatmul.mubr.f32.gmra.mrb[0].mxu0 %v1545
    %v1646 = vpop.f32.mrb[0].mxu0
    %v1647 = vadd.f32 0.0, %v1646
    %v1648 = vpop.f32.mrb[0].mxu0
    %1649 = vmatprep.mubr.f32.mxu0 0.0
    %1650 = vmatmul.mubr.f32.gmra.mrb[0].mxu0 %v1548
    %v1651 = vpop.f32.mrb[0].mxu0
    %v1652 = vadd.f32 0.0, %v1651
    %v1653 = vpop.f32.mrb[0].mxu0
    %1654 = vdwg.mxu0
    %1663 = vrot.lane.b32.xlu0 %v1617, 8
    %v1664 = vpop.permute.xlu0 %1663
    %1665 = vrot.lane.b32.xlu0 %v1622, 8
    %v1666 = vpop.permute.xlu0 %1665
    %1667 = vrot.lane.b32.xlu0 %v1627, 8
    %v1668 = vpop.permute.xlu0 %1667
    %1669 = vrot.lane.b32.xlu0 %v1632, 8
    %v1670 = vpop.permute.xlu0 %1669
    %1671 = vrot.lane.b32.xlu0 %v1637, 8
    %v1672 = vpop.permute.xlu0 %1671
    %1673 = vrot.lane.b32.xlu0 %v1642, 8
    %v1674 = vpop.permute.xlu0 %1673
    %1675 = vrot.lane.b32.xlu0 %v1647, 8
    %v1676 = vpop.permute.xlu0 %1675
    %1677 = vrot.lane.b32.xlu0 %v1652, 8
    %v1678 = vpop.permute.xlu0 %1677
    %v1687 = vadd.f32 %v1494, %v1664
    %v1688 = vadd.f32 %v1495, %v1666
    %v1689 = vadd.f32 %v1496, %v1668
    %v1690 = vadd.f32 %v1497, %v1670
    %v1691 = vadd.f32 %v1498, %v1672
    %v1692 = vadd.f32 %v1499, %v1674
    %v1693 = vadd.f32 %v1500, %v1676
    %v1694 = vadd.f32 %v1501, %v1678
    %1695 = vrot.lane.b32.xlu0 %v1109, 64
    %v1696 = vpop.permute.xlu0 %1695
    %1697 = vrot.lane.b32.xlu0 %v1111, 64
    %v1698 = vpop.permute.xlu0 %1697
    %1699 = vrot.lane.b32.xlu0 %v1113, 64
    %v1700 = vpop.permute.xlu0 %1699
    %1701 = vrot.lane.b32.xlu0 %v1115, 64
    %v1702 = vpop.permute.xlu0 %1701
    %1703 = vrot.lane.b32.xlu0 %v1117, 64
    %v1704 = vpop.permute.xlu0 %1703
    %1705 = vrot.lane.b32.xlu0 %v1119, 64
    %v1706 = vpop.permute.xlu0 %1705
    %1707 = vrot.lane.b32.xlu0 %v1121, 64
    %v1708 = vpop.permute.xlu0 %1707
    %1709 = vrot.lane.b32.xlu0 %v1123, 64
    %v1710 = vpop.permute.xlu0 %1709
    %1711 = vrot.lane.b32.xlu0 %v465, 32
    %v1712 = vpop.permute.xlu0 %1711
    %1713 = vrot.lane.b32.xlu0 %v470, 32
    %v1714 = vpop.permute.xlu0 %1713
    %1715 = vrot.lane.b32.xlu0 %v475, 32
    %v1716 = vpop.permute.xlu0 %1715
    %1717 = vrot.lane.b32.xlu0 %v480, 32
    %v1718 = vpop.permute.xlu0 %1717
    %1719 = vrot.lane.b32.xlu0 %v485, 32
    %v1720 = vpop.permute.xlu0 %1719
    %1721 = vrot.lane.b32.xlu0 %v490, 32
    %v1722 = vpop.permute.xlu0 %1721
    %1723 = vrot.lane.b32.xlu0 %v495, 32
    %v1724 = vpop.permute.xlu0 %1723
    %1725 = vrot.lane.b32.xlu0 %v500, 32
    %v1726 = vpop.permute.xlu0 %1725
    %v1735 = vsel %vm327, %v1696, 0
    %v1737 = vsel %vm327, %v1698, 0
    %v1739 = vsel %vm327, %v1700, 0
    %v1741 = vsel %vm327, %v1702, 0
    %v1743 = vsel %vm327, %v1704, 0
    %v1745 = vsel %vm327, %v1706, 0
    %v1747 = vsel %vm327, %v1708, 0
    %v1749 = vsel %vm327, %v1710, 0
    %1751 = vmatprep.subr.mxu0 0.0
    %1752 = vmatpush1.msra.mxu0 %v1712
    %1753 = vmatprep.subr.mxu0 0.0
    %1754 = vmatpush1.msra.mxu0 %v1714
    %1755 = vmatprep.subr.mxu0 0.0
    %1756 = vmatpush1.msra.mxu0 %v1716
    %1757 = vmatprep.subr.mxu0 0.0
    %1758 = vmatpush1.msra.mxu0 %v1718
    %1759 = vmatprep.subr.mxu0 0.0
    %1760 = vmatpush1.msra.mxu0 %v1720
    %1761 = vmatprep.subr.mxu0 0.0
    %1762 = vmatpush1.msra.mxu0 %v1722
    %1763 = vmatprep.subr.mxu0 0.0
    %1764 = vmatpush1.msra.mxu0 %v1724
    %1765 = vmatprep.subr.mxu0 0.0
    %1766 = vmatpush1.msra.mxu0 %v1726
    %1767 = vmatprep.subr.mxu0 0.0
    %1768 = vmatpush1.msra.mxu0 0.0
    %1769 = vmatprep.subr.mxu0 0.0
    %1770 = vmatpush1.msra.mxu0 0.0
    %1771 = vmatprep.subr.mxu0 0.0
    %1772 = vmatpush1.msra.mxu0 0.0
    %1773 = vmatprep.subr.mxu0 0.0
    %1774 = vmatpush1.msra.mxu0 0.0
    %1775 = vmatprep.subr.mxu0 0.0
    %1776 = vmatpush1.msra.mxu0 0.0
    %1777 = vmatprep.subr.mxu0 0.0
    %1778 = vmatpush1.msra.mxu0 0.0
    %1779 = vmatprep.subr.mxu0 0.0
    %1780 = vmatpush1.msra.mxu0 0.0
    %1781 = vmatprep.subr.mxu0 0.0
    %1782 = vmatpush1.msra.mxu0 0.0
    %1783 = vmatprep.subr.mxu0 0.0
    %1784 = vmatpush1.msra.mxu0 0.0
    %1785 = vmatprep.subr.mxu0 0.0
    %1786 = vmatpush1.msra.mxu0 0.0
    %1787 = vmatprep.subr.mxu0 0.0
    %1788 = vmatpush1.msra.mxu0 0.0
    %1789 = vmatprep.subr.mxu0 0.0
    %1790 = vmatpush1.msra.mxu0 0.0
    %1791 = vmatprep.subr.mxu0 0.0
    %1792 = vmatpush1.msra.mxu0 0.0
    %1793 = vmatprep.subr.mxu0 0.0
    %1794 = vmatpush1.msra.mxu0 0.0
    %1795 = vmatprep.subr.mxu0 0.0
    %1796 = vmatpush1.msra.mxu0 0.0
    %1797 = vmatprep.subr.mxu0 0.0
    %1798 = vmatpush1.msra.mxu0 0.0
    %1799 = vmatprep.subr.mxu0 0.0
    %1800 = vmatpush1.msra.mxu0 0.0
    %1801 = vmatprep.subr.mxu0 0.0
    %1802 = vmatpush1.msra.mxu0 0.0
    %1803 = vmatprep.subr.mxu0 0.0
    %1804 = vmatpush1.msra.mxu0 0.0
    %1805 = vmatprep.subr.mxu0 0.0
    %1806 = vmatpush1.msra.mxu0 0.0
    %1807 = vmatprep.subr.mxu0 0.0
    %1808 = vmatpush1.msra.mxu0 0.0
    %1809 = vmatprep.subr.mxu0 0.0
    %1810 = vmatpush1.msra.mxu0 0.0
    %1811 = vmatprep.subr.mxu0 0.0
    %1812 = vmatpush1.msra.mxu0 0.0
    %1813 = vmatprep.subr.mxu0 0.0
    %1814 = vmatpush1.msra.mxu0 0.0
    %1815 = vmatprep.mubr.f32.mxu0 0.0
    %1816 = vmatmul.mubr.f32.gmra.mrb[0].mxu0 %v1735
    %v1817 = vpop.f32.mrb[0].mxu0
    %v1818 = vadd.f32 0.0, %v1817
    %v1819 = vpop.f32.mrb[0].mxu0
    %1820 = vmatprep.mubr.f32.mxu0 0.0
    %1821 = vmatmul.mubr.f32.gmra.mrb[0].mxu0 %v1737
    %v1822 = vpop.f32.mrb[0].mxu0
    %v1823 = vadd.f32 0.0, %v1822
    %v1824 = vpop.f32.mrb[0].mxu0
    %1825 = vmatprep.mubr.f32.mxu0 0.0
    %1826 = vmatmul.mubr.f32.gmra.mrb[0].mxu0 %v1739
    %v1827 = vpop.f32.mrb[0].mxu0
    %v1828 = vadd.f32 0.0, %v1827
    %v1829 = vpop.f32.mrb[0].mxu0
    %1830 = vmatprep.mubr.f32.mxu0 0.0
    %1831 = vmatmul.mubr.f32.gmra.mrb[0].mxu0 %v1741
    %v1832 = vpop.f32.mrb[0].mxu0
    %v1833 = vadd.f32 0.0, %v1832
    %v1834 = vpop.f32.mrb[0].mxu0
    %1835 = vmatprep.mubr.f32.mxu0 0.0
    %1836 = vmatmul.mubr.f32.gmra.mrb[0].mxu0 %v1743
    %v1837 = vpop.f32.mrb[0].mxu0
    %v1838 = vadd.f32 0.0, %v1837
    %v1839 = vpop.f32.mrb[0].mxu0
    %1840 = vmatprep.mubr.f32.mxu0 0.0
    %1841 = vmatmul.mubr.f32.gmra.mrb[0].mxu0 %v1745
    %v1842 = vpop.f32.mrb[0].mxu0
    %v1843 = vadd.f32 0.0, %v1842
    %v1844 = vpop.f32.mrb[0].mxu0
    %1845 = vmatprep.mubr.f32.mxu0 0.0
    %1846 = vmatmul.mubr.f32.gmra.mrb[0].mxu0 %v1747
    %v1847 = vpop.f32.mrb[0].mxu0
    %v1848 = vadd.f32 0.0, %v1847
    %v1849 = vpop.f32.mrb[0].mxu0
    %1850 = vmatprep.mubr.f32.mxu0 0.0
    %1851 = vmatmul.mubr.f32.gmra.mrb[0].mxu0 %v1749
    %v1852 = vpop.f32.mrb[0].mxu0
    %v1853 = vadd.f32 0.0, %v1852
    %v1854 = vpop.f32.mrb[0].mxu0
    %1855 = vdwg.mxu0
    %1864 = vrot.lane.b32.xlu0 %v1818, 8
    %v1865 = vpop.permute.xlu0 %1864
    %1866 = vrot.lane.b32.xlu0 %v1823, 8
    %v1867 = vpop.permute.xlu0 %1866
    %1868 = vrot.lane.b32.xlu0 %v1828, 8
    %v1869 = vpop.permute.xlu0 %1868
    %1870 = vrot.lane.b32.xlu0 %v1833, 8
    %v1871 = vpop.permute.xlu0 %1870
    %1872 = vrot.lane.b32.xlu0 %v1838, 8
    %v1873 = vpop.permute.xlu0 %1872
    %1874 = vrot.lane.b32.xlu0 %v1843, 8
    %v1875 = vpop.permute.xlu0 %1874
    %1876 = vrot.lane.b32.xlu0 %v1848, 8
    %v1877 = vpop.permute.xlu0 %1876
    %1878 = vrot.lane.b32.xlu0 %v1853, 8
    %v1879 = vpop.permute.xlu0 %1878
    %v1888 = vadd.f32 %v1687, %v1865
    %v1889 = vadd.f32 %v1688, %v1867
    %v1890 = vadd.f32 %v1689, %v1869
    %v1891 = vadd.f32 %v1690, %v1871
    %v1892 = vadd.f32 %v1691, %v1873
    %v1893 = vadd.f32 %v1692, %v1875
    %v1894 = vadd.f32 %v1693, %v1877
    %v1895 = vadd.f32 %v1694, %v1879
    %v1896 = vmax.f32 %v1888, 0.0
    %v1897 = vmax.f32 %v1889, 0.0
    %v1898 = vmax.f32 %v1890, 0.0
    %v1899 = vmax.f32 %v1891, 0.0
    %v1900 = vmax.f32 %v1892, 0.0
    %v1901 = vmax.f32 %v1893, 0.0
    %v1902 = vmax.f32 %v1894, 0.0
    %v1903 = vmax.f32 %v1895, 0.0
    %vm1904 = vcmask 326720
    %v1905 = vsel %vm1904, %v1896, 0.0
    %v1906 = vsel %vm1904, %v1897, 0.0
    %v1907 = vadd.f32 %v1905, %v1906
    %v1908 = vsel %vm1904, %v1898, 0.0
    %v1909 = vadd.f32 %v1907, %v1908
    %v1910 = vsel %vm1904, %v1899, 0.0
    %v1911 = vadd.f32 %v1909, %v1910
    %v1912 = vsel %vm1904, %v1900, 0.0
    %v1913 = vadd.f32 %v1911, %v1912
    %v1914 = vsel %vm1904, %v1901, 0.0
    %v1915 = vadd.f32 %v1913, %v1914
    %v1916 = vsel %vm1904, %v1902, 0.0
    %v1917 = vadd.f32 %v1915, %v1916
    %v1918 = vsel %vm1904, %v1903, 0.0
    %v1919 = vadd.f32 %v1917, %v1918
    %v1920 = vrot.slane %v1919, 4
    %v1921 = vadd.f32 %v1919, %v1920
    %v1922 = vrot.slane %v1921, 2
    %v1923 = vadd.f32 %v1921, %v1922
    %v1924 = vrot.slane %v1923, 1
    %v1925 = vadd.f32 %v1923, %v1924
    %v1926 = vrcp.pop 64.0
    %v1927 = vmul.f32 %v1925, %v1926
    %v1928 = vsub.f32 %v1896, %v1927
    %v1929 = vsub.f32 %v1897, %v1927
    %v1930 = vsub.f32 %v1898, %v1927
    %v1931 = vsub.f32 %v1899, %v1927
    %v1932 = vsub.f32 %v1900, %v1927
    %v1933 = vsub.f32 %v1901, %v1927
    %v1934 = vsub.f32 %v1902, %v1927
    %v1935 = vsub.f32 %v1903, %v1927
    %v1936 = vmul.f32 %v1928, %v1928
    %v1937 = vmul.f32 %v1929, %v1929
    %v1938 = vmul.f32 %v1930, %v1930
    %v1939 = vmul.f32 %v1931, %v1931
    %v1940 = vmul.f32 %v1932, %v1932
    %v1941 = vmul.f32 %v1933, %v1933
    %v1942 = vmul.f32 %v1934, %v1934
    %v1943 = vmul.f32 %v1935, %v1935
    %v1944 = vsel %vm1904, %v1936, 0.0
    %v1945 = vsel %vm1904, %v1937, 0.0
    %v1946 = vadd.f32 %v1944, %v1945
    %v1947 = vsel %vm1904, %v1938, 0.0
    %v1948 = vadd.f32 %v1946, %v1947
    %v1949 = vsel %vm1904, %v1939, 0.0
    %v1950 = vadd.f32 %v1948, %v1949
    %v1951 = vsel %vm1904, %v1940, 0.0
    %v1952 = vadd.f32 %v1950, %v1951
    %v1953 = vsel %vm1904, %v1941, 0.0
    %v1954 = vadd.f32 %v1952, %v1953
    %v1955 = vsel %vm1904, %v1942, 0.0
    %v1956 = vadd.f32 %v1954, %v1955
    %v1957 = vsel %vm1904, %v1943, 0.0
    %v1958 = vadd.f32 %v1956, %v1957
    %v1959 = vrot.slane %v1958, 4
    %v1960 = vadd.f32 %v1958, %v1959
    %v1961 = vrot.slane %v1960, 2
    %v1962 = vadd.f32 %v1960, %v1961
    %v1963 = vrot.slane %v1962, 1
    %v1964 = vadd.f32 %v1962, %v1963
    %v1965 = vmul.f32 %v1964, %v1926
    %v1966 = vadd.f32 %v1965, 1e-05
    %v1967 = vrsqrt.pop %v1966
    %v1968 = vmul.f32 %v1928, %v1967
    %v1969 = vmul.f32 %v1929, %v1967
    %v1970 = vmul.f32 %v1930, %v1967
    %v1971 = vmul.f32 %v1931, %v1967
    %v1972 = vmul.f32 %v1932, %v1967
    %v1973 = vmul.f32 %v1933, %v1967
    %v1974 = vmul.f32 %v1934, %v1967
    %v1975 = vmul.f32 %v1935, %v1967
    %v1976 = vld [vmem:[#allocation2 + $0xb0] sm:$0xff]
    %v1977 = vld [vmem:[#allocation2 + $0xb8] sm:$0xff]
    %v1978 = vld [vmem:[#allocation2 + $0xc0] sm:$0xff]
    %v1979 = vld [vmem:[#allocation2 + $0xc8] sm:$0xff]
    %v1980 = vld [vmem:[#allocation2 + $0xd0] sm:$0xff]
    %v1981 = vld [vmem:[#allocation2 + $0xd8] sm:$0xff]
    %v1982 = vld [vmem:[#allocation2 + $0xe0] sm:$0xff]
    %v1983 = vld [vmem:[#allocation2 + $0xe8] sm:$0xff]
    %v1984 = vld [vmem:[#allocation2 + $0xf0] sm:$0x1]
    %1993 = vrot.lane.b32.xlu0 %v1968, 120
    %v1994 = vpop.permute.xlu0 %1993
    %1995 = vrot.lane.b32.xlu0 %v1969, 120
    %v1996 = vpop.permute.xlu0 %1995
    %1997 = vrot.lane.b32.xlu0 %v1970, 120
    %v1998 = vpop.permute.xlu0 %1997
    %1999 = vrot.lane.b32.xlu0 %v1971, 120
    %v2000 = vpop.permute.xlu0 %1999
    %2001 = vrot.lane.b32.xlu0 %v1972, 120
    %v2002 = vpop.permute.xlu0 %2001
    %2003 = vrot.lane.b32.xlu0 %v1973, 120
    %v2004 = vpop.permute.xlu0 %2003
    %2005 = vrot.lane.b32.xlu0 %v1974, 120
    %v2006 = vpop.permute.xlu0 %2005
    %2007 = vrot.lane.b32.xlu0 %v1975, 120
    %v2008 = vpop.permute.xlu0 %2007
    %v2009 = vsel %vm197, %v1994, 0
    %v2011 = vsel %vm197, %v1996, 0
    %v2013 = vsel %vm197, %v1998, 0
    %v2015 = vsel %vm197, %v2000, 0
    %v2017 = vsel %vm197, %v2002, 0
    %v2019 = vsel %vm197, %v2004, 0
    %v2021 = vsel %vm197, %v2006, 0
    %v2023 = vsel %vm197, %v2008, 0
    %2025 = vmatprep.subr.mxu0 0.0
    %2026 = vmatpush1.msra.mxu0 %v1976
    %2027 = vmatprep.subr.mxu0 0.0
    %2028 = vmatpush1.msra.mxu0 %v1977
    %2029 = vmatprep.subr.mxu0 0.0
    %2030 = vmatpush1.msra.mxu0 %v1978
    %2031 = vmatprep.subr.mxu0 0.0
    %2032 = vmatpush1.msra.mxu0 %v1979
    %2033 = vmatprep.subr.mxu0 0.0
    %2034 = vmatpush1.msra.mxu0 0.0
    %2035 = vmatprep.subr.mxu0 0.0
    %2036 = vmatpush1.msra.mxu0 0.0
    %2037 = vmatprep.subr.mxu0 0.0
    %2038 = vmatpush1.msra.mxu0 0.0
    %2039 = vmatprep.subr.mxu0 0.0
    %2040 = vmatpush1.msra.mxu0 0.0
    %2041 = vmatprep.subr.mxu0 0.0
    %2042 = vmatpush1.msra.mxu0 0.0
    %2043 = vmatprep.subr.mxu0 0.0
    %2044 = vmatpush1.msra.mxu0 0.0
    %2045 = vmatprep.subr.mxu0 0.0
    %2046 = vmatpush1.msra.mxu0 0.0
    %2047 = vmatprep.subr.mxu0 0.0
    %2048 = vmatpush1.msra.mxu0 0.0
    %2049 = vmatprep.subr.mxu0 0.0
    %2050 = vmatpush1.msra.mxu0 0.0
    %2051 = vmatprep.subr.mxu0 0.0
    %2052 = vmatpush1.msra.mxu0 0.0
    %2053 = vmatprep.subr.mxu0 0.0
    %2054 = vmatpush1.msra.mxu0 0.0
    %2055 = vmatprep.subr.mxu0 0.0
    %2056 = vmatpush1.msra.mxu0 0.0
    %2057 = vmatprep.subr.mxu0 0.0
    %2058 = vmatpush1.msra.mxu0 0.0
    %2059 = vmatprep.subr.mxu0 0.0
    %2060 = vmatpush1.msra.mxu0 0.0
    %2061 = vmatprep.subr.mxu0 0.0
    %2062 = vmatpush1.msra.mxu0 0.0
    %2063 = vmatprep.subr.mxu0 0.0
    %2064 = vmatpush1.msra.mxu0 0.0
    %2065 = vmatprep.subr.mxu0 0.0
    %2066 = vmatpush1.msra.mxu0 0.0
    %2067 = vmatprep.subr.mxu0 0.0
    %2068 = vmatpush1.msra.mxu0 0.0
    %2069 = vmatprep.subr.mxu0 0.0
    %2070 = vmatpush1.msra.mxu0 0.0
    %2071 = vmatprep.subr.mxu0 0.0
    %2072 = vmatpush1.msra.mxu0 0.0
    %2073 = vmatprep.subr.mxu0 0.0
    %2074 = vmatpush1.msra.mxu0 0.0
    %2075 = vmatprep.subr.mxu0 0.0
    %2076 = vmatpush1.msra.mxu0 0.0
    %2077 = vmatprep.subr.mxu0 0.0
    %2078 = vmatpush1.msra.mxu0 0.0
    %2079 = vmatprep.subr.mxu0 0.0
    %2080 = vmatpush1.msra.mxu0 0.0
    %2081 = vmatprep.subr.mxu0 0.0
    %2082 = vmatpush1.msra.mxu0 0.0
    %2083 = vmatprep.subr.mxu0 0.0
    %2084 = vmatpush1.msra.mxu0 0.0
    %2085 = vmatprep.subr.mxu0 0.0
    %2086 = vmatpush1.msra.mxu0 0.0
    %2087 = vmatprep.subr.mxu0 0.0
    %2088 = vmatpush1.msra.mxu0 0.0
    %2089 = vmatprep.mubr.f32.mxu0 0.0
    %2090 = vmatmul.mubr.f32.gmra.mrb[0].mxu0 %v2009
    %v2091 = vpop.f32.mrb[0].mxu0
    %v2092 = vadd.f32 0.0, %v2091
    %v2093 = vpop.f32.mrb[0].mxu0
    %2094 = vmatprep.mubr.f32.mxu0 0.0
    %2095 = vmatmul.mubr.f32.gmra.mrb[0].mxu0 %v2011
    %v2096 = vpop.f32.mrb[0].mxu0
    %v2097 = vadd.f32 0.0, %v2096
    %v2098 = vpop.f32.mrb[0].mxu0
    %2099 = vmatprep.mubr.f32.mxu0 0.0
    %2100 = vmatmul.mubr.f32.gmra.mrb[0].mxu0 %v2013
    %v2101 = vpop.f32.mrb[0].mxu0
    %v2102 = vadd.f32 0.0, %v2101
    %v2103 = vpop.f32.mrb[0].mxu0
    %2104 = vmatprep.mubr.f32.mxu0 0.0
    %2105 = vmatmul.mubr.f32.gmra.mrb[0].mxu0 %v2015
    %v2106 = vpop.f32.mrb[0].mxu0
    %v2107 = vadd.f32 0.0, %v2106
    %v2108 = vpop.f32.mrb[0].mxu0
    %2109 = vmatprep.mubr.f32.mxu0 0.0
    %2110 = vmatmul.mubr.f32.gmra.mrb[0].mxu0 %v2017
    %v2111 = vpop.f32.mrb[0].mxu0
    %v2112 = vadd.f32 0.0, %v2111
    %v2113 = vpop.f32.mrb[0].mxu0
    %2114 = vmatprep.mubr.f32.mxu0 0.0
    %2115 = vmatmul.mubr.f32.gmra.mrb[0].mxu0 %v2019
    %v2116 = vpop.f32.mrb[0].mxu0
    %v2117 = vadd.f32 0.0, %v2116
    %v2118 = vpop.f32.mrb[0].mxu0
    %2119 = vmatprep.mubr.f32.mxu0 0.0
    %2120 = vmatmul.mubr.f32.gmra.mrb[0].mxu0 %v2021
    %v2121 = vpop.f32.mrb[0].mxu0
    %v2122 = vadd.f32 0.0, %v2121
    %v2123 = vpop.f32.mrb[0].mxu0
    %2124 = vmatprep.mubr.f32.mxu0 0.0
    %2125 = vmatmul.mubr.f32.gmra.mrb[0].mxu0 %v2023
    %v2126 = vpop.f32.mrb[0].mxu0
    %v2127 = vadd.f32 0.0, %v2126
    %v2128 = vpop.f32.mrb[0].mxu0
    %2129 = vdwg.mxu0
    %2130 = vmatprep.subr.mxu0 0.0
    %2131 = vmatpush1.msra.mxu0 %v1980
    %2132 = vmatprep.subr.mxu0 0.0
    %2133 = vmatpush1.msra.mxu0 %v1981
    %2134 = vmatprep.subr.mxu0 0.0
    %2135 = vmatpush1.msra.mxu0 %v1982
    %2136 = vmatprep.subr.mxu0 0.0
    %2137 = vmatpush1.msra.mxu0 %v1983
    %2138 = vmatprep.subr.mxu0 0.0
    %2139 = vmatpush1.msra.mxu0 0.0
    %2140 = vmatprep.subr.mxu0 0.0
    %2141 = vmatpush1.msra.mxu0 0.0
    %2142 = vmatprep.subr.mxu0 0.0
    %2143 = vmatpush1.msra.mxu0 0.0
    %2144 = vmatprep.subr.mxu0 0.0
    %2145 = vmatpush1.msra.mxu0 0.0
    %2146 = vmatprep.subr.mxu0 0.0
    %2147 = vmatpush1.msra.mxu0 0.0
    %2148 = vmatprep.subr.mxu0 0.0
    %2149 = vmatpush1.msra.mxu0 0.0
    %2150 = vmatprep.subr.mxu0 0.0
    %2151 = vmatpush1.msra.mxu0 0.0
    %2152 = vmatprep.subr.mxu0 0.0
    %2153 = vmatpush1.msra.mxu0 0.0
    %2154 = vmatprep.subr.mxu0 0.0
    %2155 = vmatpush1.msra.mxu0 0.0
    %2156 = vmatprep.subr.mxu0 0.0
    %2157 = vmatpush1.msra.mxu0 0.0
    %2158 = vmatprep.subr.mxu0 0.0
    %2159 = vmatpush1.msra.mxu0 0.0
    %2160 = vmatprep.subr.mxu0 0.0
    %2161 = vmatpush1.msra.mxu0 0.0
    %2162 = vmatprep.subr.mxu0 0.0
    %2163 = vmatpush1.msra.mxu0 0.0
    %2164 = vmatprep.subr.mxu0 0.0
    %2165 = vmatpush1.msra.mxu0 0.0
    %2166 = vmatprep.subr.mxu0 0.0
    %2167 = vmatpush1.msra.mxu0 0.0
    %2168 = vmatprep.subr.mxu0 0.0
    %2169 = vmatpush1.msra.mxu0 0.0
    %2170 = vmatprep.subr.mxu0 0.0
    %2171 = vmatpush1.msra.mxu0 0.0
    %2172 = vmatprep.subr.mxu0 0.0
    %2173 = vmatpush1.msra.mxu0 0.0
    %2174 = vmatprep.subr.mxu0 0.0
    %2175 = vmatpush1.msra.mxu0 0.0
    %2176 = vmatprep.subr.mxu0 0.0
    %2177 = vmatpush1.msra.mxu0 0.0
    %2178 = vmatprep.subr.mxu0 0.0
    %2179 = vmatpush1.msra.mxu0 0.0
    %2180 = vmatprep.subr.mxu0 0.0
    %2181 = vmatpush1.msra.mxu0 0.0
    %2182 = vmatprep.subr.mxu0 0.0
    %2183 = vmatpush1.msra.mxu0 0.0
    %2184 = vmatprep.subr.mxu0 0.0
    %2185 = vmatpush1.msra.mxu0 0.0
    %2186 = vmatprep.subr.mxu0 0.0
    %2187 = vmatpush1.msra.mxu0 0.0
    %2188 = vmatprep.subr.mxu0 0.0
    %2189 = vmatpush1.msra.mxu0 0.0
    %2190 = vmatprep.subr.mxu0 0.0
    %2191 = vmatpush1.msra.mxu0 0.0
    %2192 = vmatprep.subr.mxu0 0.0
    %2193 = vmatpush1.msra.mxu0 0.0
    %2194 = vmatprep.mubr.f32.mxu0 0.0
    %2195 = vmatmul.mubr.f32.gmra.mrb[0].mxu0 %v2009
    %v2196 = vpop.f32.mrb[0].mxu0
    %v2197 = vadd.f32 0.0, %v2196
    %v2198 = vpop.f32.mrb[0].mxu0
    %2199 = vmatprep.mubr.f32.mxu0 0.0
    %2200 = vmatmul.mubr.f32.gmra.mrb[0].mxu0 %v2011
    %v2201 = vpop.f32.mrb[0].mxu0
    %v2202 = vadd.f32 0.0, %v2201
    %v2203 = vpop.f32.mrb[0].mxu0
    %2204 = vmatprep.mubr.f32.mxu0 0.0
    %2205 = vmatmul.mubr.f32.gmra.mrb[0].mxu0 %v2013
    %v2206 = vpop.f32.mrb[0].mxu0
    %v2207 = vadd.f32 0.0, %v2206
    %v2208 = vpop.f32.mrb[0].mxu0
    %2209 = vmatprep.mubr.f32.mxu0 0.0
    %2210 = vmatmul.mubr.f32.gmra.mrb[0].mxu0 %v2015
    %v2211 = vpop.f32.mrb[0].mxu0
    %v2212 = vadd.f32 0.0, %v2211
    %v2213 = vpop.f32.mrb[0].mxu0
    %2214 = vmatprep.mubr.f32.mxu0 0.0
    %2215 = vmatmul.mubr.f32.gmra.mrb[0].mxu0 %v2017
    %v2216 = vpop.f32.mrb[0].mxu0
    %v2217 = vadd.f32 0.0, %v2216
    %v2218 = vpop.f32.mrb[0].mxu0
    %2219 = vmatprep.mubr.f32.mxu0 0.0
    %2220 = vmatmul.mubr.f32.gmra.mrb[0].mxu0 %v2019
    %v2221 = vpop.f32.mrb[0].mxu0
    %v2222 = vadd.f32 0.0, %v2221
    %v2223 = vpop.f32.mrb[0].mxu0
    %2224 = vmatprep.mubr.f32.mxu0 0.0
    %2225 = vmatmul.mubr.f32.gmra.mrb[0].mxu0 %v2021
    %v2226 = vpop.f32.mrb[0].mxu0
    %v2227 = vadd.f32 0.0, %v2226
    %v2228 = vpop.f32.mrb[0].mxu0
    %2229 = vmatprep.mubr.f32.mxu0 0.0
    %2230 = vmatmul.mubr.f32.gmra.mrb[0].mxu0 %v2023
    %v2231 = vpop.f32.mrb[0].mxu0
    %v2232 = vadd.f32 0.0, %v2231
    %v2233 = vpop.f32.mrb[0].mxu0
    %2234 = vdwg.mxu0
    %v2235 = vlaneseq
    %v2236 = vshrl.u32 %v2235, 7
    %v2237 = vsub.s32 0, %v2236
    %v2238 = vrot.slane %v1984, %v2237
    %v2239 = vadd.f32 %v2197, %v2238
    %v2240 = vadd.f32 %v2202, %v2238
    %v2241 = vadd.f32 %v2207, %v2238
    %v2242 = vadd.f32 %v2212, %v2238
    %v2243 = vadd.f32 %v2217, %v2238
    %v2244 = vadd.f32 %v2222, %v2238
    %v2245 = vadd.f32 %v2227, %v2238
    %v2246 = vadd.f32 %v2232, %v2238
    %2247 = vxpose.xlu0.b32.start [1/16] %v2197, 128
    %2248 = vxpose.xlu0.b32.cont [2/16] %v2202, 128
    %2249 = vxpose.xlu0.b32.cont [3/16] %v2207, 128
    %2250 = vxpose.xlu0.b32.cont [4/16] %v2212, 128
    %2251 = vxpose.xlu0.b32.cont [5/16] %v2217, 128
    %2252 = vxpose.xlu0.b32.cont [6/16] %v2222, 128
    %2253 = vxpose.xlu0.b32.cont [7/16] %v2227, 128
    %2254 = vxpose.xlu0.b32.cont [8/16] %v2232, 128
    %2255 = vxpose.xlu0.b32.cont [9/16] 0.0, 128
    %2256 = vxpose.xlu0.b32.cont [10/16] 0.0, 128
    %2257 = vxpose.xlu0.b32.cont [11/16] 0.0, 128
    %2258 = vxpose.xlu0.b32.cont [12/16] 0.0, 128
    %2259 = vxpose.xlu0.b32.cont [13/16] 0.0, 128
    %2260 = vxpose.xlu0.b32.cont [14/16] 0.0, 128
    %2261 = vxpose.xlu0.b32.cont [15/16] 0.0, 128
    %2262 = vxpose.xlu0.b32.end [16/16] 0.0, 128
    %v2263 = vpop.trf.xlu0
    %v2264 = vpop.trf.xlu0
    %v2265 = vpop.trf.xlu0
    %v2266 = vpop.trf.xlu0
    %v2267 = vpop.trf.xlu0
    %v2268 = vpop.trf.xlu0
    %v2269 = vpop.trf.xlu0
    %v2270 = vpop.trf.xlu0
    %v2271 = vpop.trf.xlu0
    %v2272 = vpop.trf.xlu0
    %v2273 = vpop.trf.xlu0
    %v2274 = vpop.trf.xlu0
    %v2275 = vpop.trf.xlu0
    %v2276 = vpop.trf.xlu0
    %v2277 = vpop.trf.xlu0
    %v2278 = vpop.trf.xlu0
    %2280 = vset.pattern.permute.xlu0 0
    %2281 = vperm.xlu0 %2280, %v2239
    %v2282 = vpop.permute.xlu0 %2281
    %2285 = vset.pattern.permute.xlu0 0
    %2286 = vperm.xlu0 %2285, %v2240
    %v2287 = vpop.permute.xlu0 %2286
    %2290 = vset.pattern.permute.xlu0 0
    %2291 = vperm.xlu0 %2290, %v2241
    %v2292 = vpop.permute.xlu0 %2291
    %2295 = vset.pattern.permute.xlu0 0
    %2296 = vperm.xlu0 %2295, %v2242
    %v2297 = vpop.permute.xlu0 %2296
    %2300 = vset.pattern.permute.xlu0 0
    %2301 = vperm.xlu0 %2300, %v2243
    %v2302 = vpop.permute.xlu0 %2301
    %2305 = vset.pattern.permute.xlu0 0
    %2306 = vperm.xlu0 %2305, %v2244
    %v2307 = vpop.permute.xlu0 %2306
    %2310 = vset.pattern.permute.xlu0 0
    %2311 = vperm.xlu0 %2310, %v2245
    %v2312 = vpop.permute.xlu0 %2311
    %2315 = vset.pattern.permute.xlu0 0
    %2316 = vperm.xlu0 %2315, %v2246
    %v2317 = vpop.permute.xlu0 %2316
    %v2319 = vlaneseq
    %v2320 = vshrl.u32 %v2319, 7
    %v2321 = vsub.s32 0, %v2320
    %v2322 = vrot.slane %v2263, %v2321
    %v2323 = vsub.f32 %v2282, %v2322
    %v2324 = vsub.f32 %v2287, %v2322
    %v2325 = vsub.f32 %v2292, %v2322
    %v2326 = vsub.f32 %v2297, %v2322
    %v2327 = vsub.f32 %v2302, %v2322
    %v2328 = vsub.f32 %v2307, %v2322
    %v2329 = vsub.f32 %v2312, %v2322
    %v2330 = vsub.f32 %v2317, %v2322
    %2331 = vset.pattern.permute.xlu0 1
    %2332 = vperm.xlu0 %2331, %v2239
    %v2333 = vpop.permute.xlu0 %2332
    %2335 = vset.pattern.permute.xlu0 1
    %2336 = vperm.xlu0 %2335, %v2240
    %v2337 = vpop.permute.xlu0 %2336
    %2339 = vset.pattern.permute.xlu0 1
    %2340 = vperm.xlu0 %2339, %v2241
    %v2341 = vpop.permute.xlu0 %2340
    %2343 = vset.pattern.permute.xlu0 1
    %2344 = vperm.xlu0 %2343, %v2242
    %v2345 = vpop.permute.xlu0 %2344
    %2347 = vset.pattern.permute.xlu0 1
    %2348 = vperm.xlu0 %2347, %v2243
    %v2349 = vpop.permute.xlu0 %2348
    %2351 = vset.pattern.permute.xlu0 1
    %2352 = vperm.xlu0 %2351, %v2244
    %v2353 = vpop.permute.xlu0 %2352
    %2355 = vset.pattern.permute.xlu0 1
    %2356 = vperm.xlu0 %2355, %v2245
    %v2357 = vpop.permute.xlu0 %2356
    %2359 = vset.pattern.permute.xlu0 1
    %2360 = vperm.xlu0 %2359, %v2246
    %v2361 = vpop.permute.xlu0 %2360
    %v2363 = vlaneseq
    %v2364 = vshrl.u32 %v2363, 7
    %v2365 = vsub.s32 1, %v2364
    %v2366 = vrot.slane %v2263, %v2365
    %v2367 = vsub.f32 %v2333, %v2366
    %v2368 = vsub.f32 %v2337, %v2366
    %v2369 = vsub.f32 %v2341, %v2366
    %v2370 = vsub.f32 %v2345, %v2366
    %v2371 = vsub.f32 %v2349, %v2366
    %v2372 = vsub.f32 %v2353, %v2366
    %v2373 = vsub.f32 %v2357, %v2366
    %v2374 = vsub.f32 %v2361, %v2366
    %2375 = vset.pattern.permute.xlu0 2
    %2376 = vperm.xlu0 %2375, %v2239
    %v2377 = vpop.permute.xlu0 %2376
    %2379 = vset.pattern.permute.xlu0 2
    %2380 = vperm.xlu0 %2379, %v2240
    %v2381 = vpop.permute.xlu0 %2380
    %2383 = vset.pattern.permute.xlu0 2
    %2384 = vperm.xlu0 %2383, %v2241
    %v2385 = vpop.permute.xlu0 %2384
    %2387 = vset.pattern.permute.xlu0 2
    %2388 = vperm.xlu0 %2387, %v2242
    %v2389 = vpop.permute.xlu0 %2388
    %2391 = vset.pattern.permute.xlu0 2
    %2392 = vperm.xlu0 %2391, %v2243
    %v2393 = vpop.permute.xlu0 %2392
    %2395 = vset.pattern.permute.xlu0 2
    %2396 = vperm.xlu0 %2395, %v2244
    %v2397 = vpop.permute.xlu0 %2396
    %2399 = vset.pattern.permute.xlu0 2
    %2400 = vperm.xlu0 %2399, %v2245
    %v2401 = vpop.permute.xlu0 %2400
    %2403 = vset.pattern.permute.xlu0 2
    %2404 = vperm.xlu0 %2403, %v2246
    %v2405 = vpop.permute.xlu0 %2404
    %v2407 = vlaneseq
    %v2408 = vshrl.u32 %v2407, 7
    %v2409 = vsub.s32 2, %v2408
    %v2410 = vrot.slane %v2263, %v2409
    %v2411 = vsub.f32 %v2377, %v2410
    %v2412 = vsub.f32 %v2381, %v2410
    %v2413 = vsub.f32 %v2385, %v2410
    %v2414 = vsub.f32 %v2389, %v2410
    %v2415 = vsub.f32 %v2393, %v2410
    %v2416 = vsub.f32 %v2397, %v2410
    %v2417 = vsub.f32 %v2401, %v2410
    %v2418 = vsub.f32 %v2405, %v2410
    %2419 = vset.pattern.permute.xlu0 3
    %2420 = vperm.xlu0 %2419, %v2239
    %v2421 = vpop.permute.xlu0 %2420
    %2423 = vset.pattern.permute.xlu0 3
    %2424 = vperm.xlu0 %2423, %v2240
    %v2425 = vpop.permute.xlu0 %2424
    %2427 = vset.pattern.permute.xlu0 3
    %2428 = vperm.xlu0 %2427, %v2241
    %v2429 = vpop.permute.xlu0 %2428
    %2431 = vset.pattern.permute.xlu0 3
    %2432 = vperm.xlu0 %2431, %v2242
    %v2433 = vpop.permute.xlu0 %2432
    %2435 = vset.pattern.permute.xlu0 3
    %2436 = vperm.xlu0 %2435, %v2243
    %v2437 = vpop.permute.xlu0 %2436
    %2439 = vset.pattern.permute.xlu0 3
    %2440 = vperm.xlu0 %2439, %v2244
    %v2441 = vpop.permute.xlu0 %2440
    %2443 = vset.pattern.permute.xlu0 3
    %2444 = vperm.xlu0 %2443, %v2245
    %v2445 = vpop.permute.xlu0 %2444
    %2447 = vset.pattern.permute.xlu0 3
    %2448 = vperm.xlu0 %2447, %v2246
    %v2449 = vpop.permute.xlu0 %2448
    %v2451 = vlaneseq
    %v2452 = vshrl.u32 %v2451, 7
    %v2453 = vsub.s32 3, %v2452
    %v2454 = vrot.slane %v2263, %v2453
    %v2455 = vsub.f32 %v2421, %v2454
    %v2456 = vsub.f32 %v2425, %v2454
    %v2457 = vsub.f32 %v2429, %v2454
    %v2458 = vsub.f32 %v2433, %v2454
    %v2459 = vsub.f32 %v2437, %v2454
    %v2460 = vsub.f32 %v2441, %v2454
    %v2461 = vsub.f32 %v2445, %v2454
    %v2462 = vsub.f32 %v2449, %v2454
    %v2463 = vmax.f32 %v2323, %v2367
    %v2464 = vmax.f32 %v2324, %v2368
    %v2465 = vmax.f32 %v2325, %v2369
    %v2466 = vmax.f32 %v2326, %v2370
    %v2467 = vmax.f32 %v2327, %v2371
    %v2468 = vmax.f32 %v2328, %v2372
    %v2469 = vmax.f32 %v2329, %v2373
    %v2470 = vmax.f32 %v2330, %v2374
    %v2471 = vmax.f32 %v2411, %v2455
    %v2472 = vmax.f32 %v2412, %v2456
    %v2473 = vmax.f32 %v2413, %v2457
    %v2474 = vmax.f32 %v2414, %v2458
    %v2475 = vmax.f32 %v2415, %v2459
    %v2476 = vmax.f32 %v2416, %v2460
    %v2477 = vmax.f32 %v2417, %v2461
    %v2478 = vmax.f32 %v2418, %v2462
    %v2479 = vmax.f32 %v2463, %v2471
    %v2480 = vmax.f32 %v2464, %v2472
    %v2481 = vmax.f32 %v2465, %v2473
    %v2482 = vmax.f32 %v2466, %v2474
    %v2483 = vmax.f32 %v2467, %v2475
    %v2484 = vmax.f32 %v2468, %v2476
    %v2485 = vmax.f32 %v2469, %v2477
    %v2486 = vmax.f32 %v2470, %v2478
    %v2487 = vsub.f32 %v2323, %v2479
    %v2488 = vsub.f32 %v2324, %v2480
    %v2489 = vsub.f32 %v2325, %v2481
    %v2490 = vsub.f32 %v2326, %v2482
    %v2491 = vsub.f32 %v2327, %v2483
    %v2492 = vsub.f32 %v2328, %v2484
    %v2493 = vsub.f32 %v2329, %v2485
    %v2494 = vsub.f32 %v2330, %v2486
    %v2495 = vsub.f32 %v2367, %v2479
    %v2496 = vsub.f32 %v2368, %v2480
    %v2497 = vsub.f32 %v2369, %v2481
    %v2498 = vsub.f32 %v2370, %v2482
    %v2499 = vsub.f32 %v2371, %v2483
    %v2500 = vsub.f32 %v2372, %v2484
    %v2501 = vsub.f32 %v2373, %v2485
    %v2502 = vsub.f32 %v2374, %v2486
    %v2503 = vsub.f32 %v2411, %v2479
    %v2504 = vsub.f32 %v2412, %v2480
    %v2505 = vsub.f32 %v2413, %v2481
    %v2506 = vsub.f32 %v2414, %v2482
    %v2507 = vsub.f32 %v2415, %v2483
    %v2508 = vsub.f32 %v2416, %v2484
    %v2509 = vsub.f32 %v2417, %v2485
    %v2510 = vsub.f32 %v2418, %v2486
    %v2511 = vsub.f32 %v2455, %v2479
    %v2512 = vsub.f32 %v2456, %v2480
    %v2513 = vsub.f32 %v2457, %v2481
    %v2514 = vsub.f32 %v2458, %v2482
    %v2515 = vsub.f32 %v2459, %v2483
    %v2516 = vsub.f32 %v2460, %v2484
    %v2517 = vsub.f32 %v2461, %v2485
    %v2518 = vsub.f32 %v2462, %v2486
    %2527 = vrot.lane.b32.xlu0 %v2495, 64
    %v2528 = vpop.permute.xlu0 %2527
    %2529 = vrot.lane.b32.xlu0 %v2496, 64
    %v2530 = vpop.permute.xlu0 %2529
    %2531 = vrot.lane.b32.xlu0 %v2497, 64
    %v2532 = vpop.permute.xlu0 %2531
    %2533 = vrot.lane.b32.xlu0 %v2498, 64
    %v2534 = vpop.permute.xlu0 %2533
    %2535 = vrot.lane.b32.xlu0 %v2499, 64
    %v2536 = vpop.permute.xlu0 %2535
    %2537 = vrot.lane.b32.xlu0 %v2500, 64
    %v2538 = vpop.permute.xlu0 %2537
    %2539 = vrot.lane.b32.xlu0 %v2501, 64
    %v2540 = vpop.permute.xlu0 %2539
    %2541 = vrot.lane.b32.xlu0 %v2502, 64
    %v2542 = vpop.permute.xlu0 %2541
    %2559 = vrot.lane.b32.xlu0 %v2511, 64
    %v2560 = vpop.permute.xlu0 %2559
    %2561 = vrot.lane.b32.xlu0 %v2512, 64
    %v2562 = vpop.permute.xlu0 %2561
    %2563 = vrot.lane.b32.xlu0 %v2513, 64
    %v2564 = vpop.permute.xlu0 %2563
    %2565 = vrot.lane.b32.xlu0 %v2514, 64
    %v2566 = vpop.permute.xlu0 %2565
    %2567 = vrot.lane.b32.xlu0 %v2515, 64
    %v2568 = vpop.permute.xlu0 %2567
    %2569 = vrot.lane.b32.xlu0 %v2516, 64
    %v2570 = vpop.permute.xlu0 %2569
    %2571 = vrot.lane.b32.xlu0 %v2517, 64
    %v2572 = vpop.permute.xlu0 %2571
    %2573 = vrot.lane.b32.xlu0 %v2518, 64
    %v2574 = vpop.permute.xlu0 %2573
    %v2583 = vsel %vm327, %v2487, %v2528
    %v2584 = vsel %vm327, %v2488, %v2530
    %v2585 = vsel %vm327, %v2489, %v2532
    %v2586 = vsel %vm327, %v2490, %v2534
    %v2587 = vsel %vm327, %v2491, %v2536
    %v2588 = vsel %vm327, %v2492, %v2538
    %v2589 = vsel %vm327, %v2493, %v2540
    %v2590 = vsel %vm327, %v2494, %v2542
    %v2591 = vsel %vm327, %v2503, %v2560
    %v2592 = vsel %vm327, %v2504, %v2562
    %v2593 = vsel %vm327, %v2505, %v2564
    %v2594 = vsel %vm327, %v2506, %v2566
    %v2595 = vsel %vm327, %v2507, %v2568
    %v2596 = vsel %vm327, %v2508, %v2570
    %v2597 = vsel %vm327, %v2509, %v2572
    %v2598 = vsel %vm327, %v2510, %v2574
    %v2599 = vmul.f32 %v2583, 1.442695
    %v2600 = vpow.pop %v2599
    %v2601 = vmul.f32 %v2591, 1.442695
    %v2602 = vpow.pop %v2601
    %v2603 = vmul.f32 %v2584, 1.442695
    %v2604 = vpow.pop %v2603
    %v2605 = vmul.f32 %v2592, 1.442695
    %v2606 = vpow.pop %v2605
    %v2607 = vmul.f32 %v2585, 1.442695
    %v2608 = vpow.pop %v2607
    %v2609 = vmul.f32 %v2593, 1.442695
    %v2610 = vpow.pop %v2609
    %v2611 = vmul.f32 %v2586, 1.442695
    %v2612 = vpow.pop %v2611
    %v2613 = vmul.f32 %v2594, 1.442695
    %v2614 = vpow.pop %v2613
    %v2615 = vmul.f32 %v2587, 1.442695
    %v2616 = vpow.pop %v2615
    %v2617 = vmul.f32 %v2595, 1.442695
    %v2618 = vpow.pop %v2617
    %v2619 = vmul.f32 %v2588, 1.442695
    %v2620 = vpow.pop %v2619
    %v2621 = vmul.f32 %v2596, 1.442695
    %v2622 = vpow.pop %v2621
    %v2623 = vmul.f32 %v2589, 1.442695
    %v2624 = vpow.pop %v2623
    %v2625 = vmul.f32 %v2597, 1.442695
    %v2626 = vpow.pop %v2625
    %v2627 = vmul.f32 %v2590, 1.442695
    %v2628 = vpow.pop %v2627
    %v2629 = vmul.f32 %v2598, 1.442695
    %v2630 = vpow.pop %v2629
    %v2631 = vadd.f32 %v2600, %v2602
    %v2632 = vadd.f32 %v2604, %v2606
    %v2633 = vadd.f32 %v2608, %v2610
    %v2634 = vadd.f32 %v2612, %v2614
    %v2635 = vadd.f32 %v2616, %v2618
    %v2636 = vadd.f32 %v2620, %v2622
    %v2637 = vadd.f32 %v2624, %v2626
    %v2638 = vadd.f32 %v2628, %v2630
    %2647 = vrot.lane.b32.xlu0 %v2631, 64
    %v2648 = vpop.permute.xlu0 %2647
    %2649 = vrot.lane.b32.xlu0 %v2632, 64
    %v2650 = vpop.permute.xlu0 %2649
    %2651 = vrot.lane.b32.xlu0 %v2633, 64
    %v2652 = vpop.permute.xlu0 %2651
    %2653 = vrot.lane.b32.xlu0 %v2634, 64
    %v2654 = vpop.permute.xlu0 %2653
    %2655 = vrot.lane.b32.xlu0 %v2635, 64
    %v2656 = vpop.permute.xlu0 %2655
    %2657 = vrot.lane.b32.xlu0 %v2636, 64
    %v2658 = vpop.permute.xlu0 %2657
    %2659 = vrot.lane.b32.xlu0 %v2637, 64
    %v2660 = vpop.permute.xlu0 %2659
    %2661 = vrot.lane.b32.xlu0 %v2638, 64
    %v2662 = vpop.permute.xlu0 %2661
    %v2671 = vadd.f32 %v2631, %v2648
    %v2672 = vadd.f32 %v2632, %v2650
    %v2673 = vadd.f32 %v2633, %v2652
    %v2674 = vadd.f32 %v2634, %v2654
    %v2675 = vadd.f32 %v2635, %v2656
    %v2676 = vadd.f32 %v2636, %v2658
    %v2677 = vadd.f32 %v2637, %v2660
    %v2678 = vadd.f32 %v2638, %v2662
    %v2679 = vrcp.pop %v2671
    %v2680 = vmul.f32 %v353, %v2679
    %v2681 = vrcp.pop %v2672
    %v2682 = vmul.f32 %v355, %v2681
    %v2683 = vrcp.pop %v2673
    %v2684 = vmul.f32 %v357, %v2683
    %v2685 = vrcp.pop %v2674
    %v2686 = vmul.f32 %v359, %v2685
    %v2687 = vrcp.pop %v2675
    %v2688 = vmul.f32 %v361, %v2687
    %v2689 = vrcp.pop %v2676
    %v2690 = vmul.f32 %v363, %v2689
    %v2691 = vrcp.pop %v2677
    %v2692 = vmul.f32 %v365, %v2691
    %v2693 = vrcp.pop %v2678
    %v2694 = vmul.f32 %v367, %v2693
    %2703 = vrot.lane.b32.xlu0 %v2680, 64
    %v2704 = vpop.permute.xlu0 %2703
    %2705 = vrot.lane.b32.xlu0 %v2682, 64
    %v2706 = vpop.permute.xlu0 %2705
    %2707 = vrot.lane.b32.xlu0 %v2684, 64
    %v2708 = vpop.permute.xlu0 %2707
    %2709 = vrot.lane.b32.xlu0 %v2686, 64
    %v2710 = vpop.permute.xlu0 %2709
    %2711 = vrot.lane.b32.xlu0 %v2688, 64
    %v2712 = vpop.permute.xlu0 %2711
    %2713 = vrot.lane.b32.xlu0 %v2690, 64
    %v2714 = vpop.permute.xlu0 %2713
    %2715 = vrot.lane.b32.xlu0 %v2692, 64
    %v2716 = vpop.permute.xlu0 %2715
    %2717 = vrot.lane.b32.xlu0 %v2694, 64
    %v2718 = vpop.permute.xlu0 %2717
    %v2727 = vsel %vm327, %v2680, %v2704
    %v2728 = vsel %vm327, %v2682, %v2706
    %v2729 = vsel %vm327, %v2684, %v2708
    %v2730 = vsel %vm327, %v2686, %v2710
    %v2731 = vsel %vm327, %v2688, %v2712
    %v2732 = vsel %vm327, %v2690, %v2714
    %v2733 = vsel %vm327, %v2692, %v2716
    %v2734 = vsel %vm327, %v2694, %v2718
    %v2735 = vmul.f32 %v2600, %v2727
    %v2736 = vmul.f32 %v2602, %v2727
    %v2737 = vmul.f32 %v2604, %v2728
    %v2738 = vmul.f32 %v2606, %v2728
    %v2739 = vmul.f32 %v2608, %v2729
    %v2740 = vmul.f32 %v2610, %v2729
    %v2741 = vmul.f32 %v2612, %v2730
    %v2742 = vmul.f32 %v2614, %v2730
    %v2743 = vmul.f32 %v2616, %v2731
    %v2744 = vmul.f32 %v2618, %v2731
    %v2745 = vmul.f32 %v2620, %v2732
    %v2746 = vmul.f32 %v2622, %v2732
    %v2747 = vmul.f32 %v2624, %v2733
    %v2748 = vmul.f32 %v2626, %v2733
    %v2749 = vmul.f32 %v2628, %v2734
    %v2750 = vmul.f32 %v2630, %v2734
    %v2752 = vsel %vm327, %v2735, 0
    %v2755 = vsel %vm327, %v2737, 0
    %v2758 = vsel %vm327, %v2739, 0
    %v2761 = vsel %vm327, %v2741, 0
    %v2764 = vsel %vm327, %v2743, 0
    %v2767 = vsel %vm327, %v2745, 0
    %v2770 = vsel %vm327, %v2747, 0
    %v2773 = vsel %vm327, %v2749, 0
    %2775 = vmatprep.subr.mxu0 0.0
    %2776 = vmatpush1.msra.mxu0 %v2092
    %2777 = vmatprep.subr.mxu0 0.0
    %2778 = vmatpush1.msra.mxu0 %v2097
    %2779 = vmatprep.subr.mxu0 0.0
    %2780 = vmatpush1.msra.mxu0 %v2102
    %2781 = vmatprep.subr.mxu0 0.0
    %2782 = vmatpush1.msra.mxu0 %v2107
    %2783 = vmatprep.subr.mxu0 0.0
    %2784 = vmatpush1.msra.mxu0 %v2112
    %2785 = vmatprep.subr.mxu0 0.0
    %2786 = vmatpush1.msra.mxu0 %v2117
    %2787 = vmatprep.subr.mxu0 0.0
    %2788 = vmatpush1.msra.mxu0 %v2122
    %2789 = vmatprep.subr.mxu0 0.0
    %2790 = vmatpush1.msra.mxu0 %v2127
    %2791 = vmatprep.subr.mxu0 0.0
    %2792 = vmatpush1.msra.mxu0 0.0
    %2793 = vmatprep.subr.mxu0 0.0
    %2794 = vmatpush1.msra.mxu0 0.0
    %2795 = vmatprep.subr.mxu0 0.0
    %2796 = vmatpush1.msra.mxu0 0.0
    %2797 = vmatprep.subr.mxu0 0.0
    %2798 = vmatpush1.msra.mxu0 0.0
    %2799 = vmatprep.subr.mxu0 0.0
    %2800 = vmatpush1.msra.mxu0 0.0
    %2801 = vmatprep.subr.mxu0 0.0
    %2802 = vmatpush1.msra.mxu0 0.0
    %2803 = vmatprep.subr.mxu0 0.0
    %2804 = vmatpush1.msra.mxu0 0.0
    %2805 = vmatprep.subr.mxu0 0.0
    %2806 = vmatpush1.msra.mxu0 0.0
    %2807 = vmatprep.subr.mxu0 0.0
    %2808 = vmatpush1.msra.mxu0 0.0
    %2809 = vmatprep.subr.mxu0 0.0
    %2810 = vmatpush1.msra.mxu0 0.0
    %2811 = vmatprep.subr.mxu0 0.0
    %2812 = vmatpush1.msra.mxu0 0.0
    %2813 = vmatprep.subr.mxu0 0.0
    %2814 = vmatpush1.msra.mxu0 0.0
    %2815 = vmatprep.subr.mxu0 0.0
    %2816 = vmatpush1.msra.mxu0 0.0
    %2817 = vmatprep.subr.mxu0 0.0
    %2818 = vmatpush1.msra.mxu0 0.0
    %2819 = vmatprep.subr.mxu0 0.0
    %2820 = vmatpush1.msra.mxu0 0.0
    %2821 = vmatprep.subr.mxu0 0.0
    %2822 = vmatpush1.msra.mxu0 0.0
    %2823 = vmatprep.subr.mxu0 0.0
    %2824 = vmatpush1.msra.mxu0 0.0
    %2825 = vmatprep.subr.mxu0 0.0
    %2826 = vmatpush1.msra.mxu0 0.0
    %2827 = vmatprep.subr.mxu0 0.0
    %2828 = vmatpush1.msra.mxu0 0.0
    %2829 = vmatprep.subr.mxu0 0.0
    %2830 = vmatpush1.msra.mxu0 0.0
    %2831 = vmatprep.subr.mxu0 0.0
    %2832 = vmatpush1.msra.mxu0 0.0
    %2833 = vmatprep.subr.mxu0 0.0
    %2834 = vmatpush1.msra.mxu0 0.0
    %2835 = vmatprep.subr.mxu0 0.0
    %2836 = vmatpush1.msra.mxu0 0.0
    %2837 = vmatprep.subr.mxu0 0.0
    %2838 = vmatpush1.msra.mxu0 0.0
    %2839 = vmatprep.mubr.f32.mxu0 0.0
    %2840 = vmatmul.mubr.f32.gmra.mrb[0].mxu0 %v2752
    %v2841 = vpop.f32.mrb[0].mxu0
    %v2842 = vadd.f32 0.0, %v2841
    %v2843 = vpop.f32.mrb[0].mxu0
    %2844 = vmatprep.mubr.f32.mxu0 0.0
    %2845 = vmatmul.mubr.f32.gmra.mrb[0].mxu0 %v2755
    %v2846 = vpop.f32.mrb[0].mxu0
    %v2847 = vadd.f32 0.0, %v2846
    %v2848 = vpop.f32.mrb[0].mxu0
    %2849 = vmatprep.mubr.f32.mxu0 0.0
    %2850 = vmatmul.mubr.f32.gmra.mrb[0].mxu0 %v2758
    %v2851 = vpop.f32.mrb[0].mxu0
    %v2852 = vadd.f32 0.0, %v2851
    %v2853 = vpop.f32.mrb[0].mxu0
    %2854 = vmatprep.mubr.f32.mxu0 0.0
    %2855 = vmatmul.mubr.f32.gmra.mrb[0].mxu0 %v2761
    %v2856 = vpop.f32.mrb[0].mxu0
    %v2857 = vadd.f32 0.0, %v2856
    %v2858 = vpop.f32.mrb[0].mxu0
    %2859 = vmatprep.mubr.f32.mxu0 0.0
    %2860 = vmatmul.mubr.f32.gmra.mrb[0].mxu0 %v2764
    %v2861 = vpop.f32.mrb[0].mxu0
    %v2862 = vadd.f32 0.0, %v2861
    %v2863 = vpop.f32.mrb[0].mxu0
    %2864 = vmatprep.mubr.f32.mxu0 0.0
    %2865 = vmatmul.mubr.f32.gmra.mrb[0].mxu0 %v2767
    %v2866 = vpop.f32.mrb[0].mxu0
    %v2867 = vadd.f32 0.0, %v2866
    %v2868 = vpop.f32.mrb[0].mxu0
    %2869 = vmatprep.mubr.f32.mxu0 0.0
    %2870 = vmatmul.mubr.f32.gmra.mrb[0].mxu0 %v2770
    %v2871 = vpop.f32.mrb[0].mxu0
    %v2872 = vadd.f32 0.0, %v2871
    %v2873 = vpop.f32.mrb[0].mxu0
    %2874 = vmatprep.mubr.f32.mxu0 0.0
    %2875 = vmatmul.mubr.f32.gmra.mrb[0].mxu0 %v2773
    %v2876 = vpop.f32.mrb[0].mxu0
    %v2877 = vadd.f32 0.0, %v2876
    %v2878 = vpop.f32.mrb[0].mxu0
    %2879 = vdwg.mxu0
    %2888 = vrot.lane.b32.xlu0 %v2842, 8
    %v2889 = vpop.permute.xlu0 %2888
    %2890 = vrot.lane.b32.xlu0 %v2847, 8
    %v2891 = vpop.permute.xlu0 %2890
    %2892 = vrot.lane.b32.xlu0 %v2852, 8
    %v2893 = vpop.permute.xlu0 %2892
    %2894 = vrot.lane.b32.xlu0 %v2857, 8
    %v2895 = vpop.permute.xlu0 %2894
    %2896 = vrot.lane.b32.xlu0 %v2862, 8
    %v2897 = vpop.permute.xlu0 %2896
    %2898 = vrot.lane.b32.xlu0 %v2867, 8
    %v2899 = vpop.permute.xlu0 %2898
    %2900 = vrot.lane.b32.xlu0 %v2872, 8
    %v2901 = vpop.permute.xlu0 %2900
    %2902 = vrot.lane.b32.xlu0 %v2877, 8
    %v2903 = vpop.permute.xlu0 %2902
    %v2912 = vadd.f32 %v2238, %v2889
    %v2913 = vadd.f32 %v2238, %v2891
    %v2914 = vadd.f32 %v2238, %v2893
    %v2915 = vadd.f32 %v2238, %v2895
    %v2916 = vadd.f32 %v2238, %v2897
    %v2917 = vadd.f32 %v2238, %v2899
    %v2918 = vadd.f32 %v2238, %v2901
    %v2919 = vadd.f32 %v2238, %v2903
    %2920 = vrot.lane.b32.xlu0 %v2735, 64
    %v2921 = vpop.permute.xlu0 %2920
    %2922 = vrot.lane.b32.xlu0 %v2737, 64
    %v2923 = vpop.permute.xlu0 %2922
    %2924 = vrot.lane.b32.xlu0 %v2739, 64
    %v2925 = vpop.permute.xlu0 %2924
    %2926 = vrot.lane.b32.xlu0 %v2741, 64
    %v2927 = vpop.permute.xlu0 %2926
    %2928 = vrot.lane.b32.xlu0 %v2743, 64
    %v2929 = vpop.permute.xlu0 %2928
    %2930 = vrot.lane.b32.xlu0 %v2745, 64
    %v2931 = vpop.permute.xlu0 %2930
    %2932 = vrot.lane.b32.xlu0 %v2747, 64
    %v2933 = vpop.permute.xlu0 %2932
    %2934 = vrot.lane.b32.xlu0 %v2749, 64
    %v2935 = vpop.permute.xlu0 %2934
    %2944 = vrot.lane.b32.xlu0 %v2092, 96
    %v2945 = vpop.permute.xlu0 %2944
    %2946 = vrot.lane.b32.xlu0 %v2097, 96
    %v2947 = vpop.permute.xlu0 %2946
    %2948 = vrot.lane.b32.xlu0 %v2102, 96
    %v2949 = vpop.permute.xlu0 %2948
    %2950 = vrot.lane.b32.xlu0 %v2107, 96
    %v2951 = vpop.permute.xlu0 %2950
    %2952 = vrot.lane.b32.xlu0 %v2112, 96
    %v2953 = vpop.permute.xlu0 %2952
    %2954 = vrot.lane.b32.xlu0 %v2117, 96
    %v2955 = vpop.permute.xlu0 %2954
    %2956 = vrot.lane.b32.xlu0 %v2122, 96
    %v2957 = vpop.permute.xlu0 %2956
    %2958 = vrot.lane.b32.xlu0 %v2127, 96
    %v2959 = vpop.permute.xlu0 %2958
    %v2968 = vsel %vm327, %v2921, 0
    %v2970 = vsel %vm327, %v2923, 0
    %v2972 = vsel %vm327, %v2925, 0
    %v2974 = vsel %vm327, %v2927, 0
    %v2976 = vsel %vm327, %v2929, 0
    %v2978 = vsel %vm327, %v2931, 0
    %v2980 = vsel %vm327, %v2933, 0
    %v2982 = vsel %vm327, %v2935, 0
    %2984 = vmatprep.subr.mxu0 0.0
    %2985 = vmatpush1.msra.mxu0 %v2945
    %2986 = vmatprep.subr.mxu0 0.0
    %2987 = vmatpush1.msra.mxu0 %v2947
    %2988 = vmatprep.subr.mxu0 0.0
    %2989 = vmatpush1.msra.mxu0 %v2949
    %2990 = vmatprep.subr.mxu0 0.0
    %2991 = vmatpush1.msra.mxu0 %v2951
    %2992 = vmatprep.subr.mxu0 0.0
    %2993 = vmatpush1.msra.mxu0 %v2953
    %2994 = vmatprep.subr.mxu0 0.0
    %2995 = vmatpush1.msra.mxu0 %v2955
    %2996 = vmatprep.subr.mxu0 0.0
    %2997 = vmatpush1.msra.mxu0 %v2957
    %2998 = vmatprep.subr.mxu0 0.0
    %2999 = vmatpush1.msra.mxu0 %v2959
    %3000 = vmatprep.subr.mxu0 0.0
    %3001 = vmatpush1.msra.mxu0 0.0
    %3002 = vmatprep.subr.mxu0 0.0
    %3003 = vmatpush1.msra.mxu0 0.0
    %3004 = vmatprep.subr.mxu0 0.0
    %3005 = vmatpush1.msra.mxu0 0.0
    %3006 = vmatprep.subr.mxu0 0.0
    %3007 = vmatpush1.msra.mxu0 0.0
    %3008 = vmatprep.subr.mxu0 0.0
    %3009 = vmatpush1.msra.mxu0 0.0
    %3010 = vmatprep.subr.mxu0 0.0
    %3011 = vmatpush1.msra.mxu0 0.0
    %3012 = vmatprep.subr.mxu0 0.0
    %3013 = vmatpush1.msra.mxu0 0.0
    %3014 = vmatprep.subr.mxu0 0.0
    %3015 = vmatpush1.msra.mxu0 0.0
    %3016 = vmatprep.subr.mxu0 0.0
    %3017 = vmatpush1.msra.mxu0 0.0
    %3018 = vmatprep.subr.mxu0 0.0
    %3019 = vmatpush1.msra.mxu0 0.0
    %3020 = vmatprep.subr.mxu0 0.0
    %3021 = vmatpush1.msra.mxu0 0.0
    %3022 = vmatprep.subr.mxu0 0.0
    %3023 = vmatpush1.msra.mxu0 0.0
    %3024 = vmatprep.subr.mxu0 0.0
    %3025 = vmatpush1.msra.mxu0 0.0
    %3026 = vmatprep.subr.mxu0 0.0
    %3027 = vmatpush1.msra.mxu0 0.0
    %3028 = vmatprep.subr.mxu0 0.0
    %3029 = vmatpush1.msra.mxu0 0.0
    %3030 = vmatprep.subr.mxu0 0.0
    %3031 = vmatpush1.msra.mxu0 0.0
    %3032 = vmatprep.subr.mxu0 0.0
    %3033 = vmatpush1.msra.mxu0 0.0
    %3034 = vmatprep.subr.mxu0 0.0
    %3035 = vmatpush1.msra.mxu0 0.0
    %3036 = vmatprep.subr.mxu0 0.0
    %3037 = vmatpush1.msra.mxu0 0.0
    %3038 = vmatprep.subr.mxu0 0.0
    %3039 = vmatpush1.msra.mxu0 0.0
    %3040 = vmatprep.subr.mxu0 0.0
    %3041 = vmatpush1.msra.mxu0 0.0
    %3042 = vmatprep.subr.mxu0 0.0
    %3043 = vmatpush1.msra.mxu0 0.0
    %3044 = vmatprep.subr.mxu0 0.0
    %3045 = vmatpush1.msra.mxu0 0.0
    %3046 = vmatprep.subr.mxu0 0.0
    %3047 = vmatpush1.msra.mxu0 0.0
    %3048 = vmatprep.mubr.f32.mxu0 0.0
    %3049 = vmatmul.mubr.f32.gmra.mrb[0].mxu0 %v2968
    %v3050 = vpop.f32.mrb[0].mxu0
    %v3051 = vadd.f32 0.0, %v3050
    %v3052 = vpop.f32.mrb[0].mxu0
    %3053 = vmatprep.mubr.f32.mxu0 0.0
    %3054 = vmatmul.mubr.f32.gmra.mrb[0].mxu0 %v2970
    %v3055 = vpop.f32.mrb[0].mxu0
    %v3056 = vadd.f32 0.0, %v3055
    %v3057 = vpop.f32.mrb[0].mxu0
    %3058 = vmatprep.mubr.f32.mxu0 0.0
    %3059 = vmatmul.mubr.f32.gmra.mrb[0].mxu0 %v2972
    %v3060 = vpop.f32.mrb[0].mxu0
    %v3061 = vadd.f32 0.0, %v3060
    %v3062 = vpop.f32.mrb[0].mxu0
    %3063 = vmatprep.mubr.f32.mxu0 0.0
    %3064 = vmatmul.mubr.f32.gmra.mrb[0].mxu0 %v2974
    %v3065 = vpop.f32.mrb[0].mxu0
    %v3066 = vadd.f32 0.0, %v3065
    %v3067 = vpop.f32.mrb[0].mxu0
    %3068 = vmatprep.mubr.f32.mxu0 0.0
    %3069 = vmatmul.mubr.f32.gmra.mrb[0].mxu0 %v2976
    %v3070 = vpop.f32.mrb[0].mxu0
    %v3071 = vadd.f32 0.0, %v3070
    %v3072 = vpop.f32.mrb[0].mxu0
    %3073 = vmatprep.mubr.f32.mxu0 0.0
    %3074 = vmatmul.mubr.f32.gmra.mrb[0].mxu0 %v2978
    %v3075 = vpop.f32.mrb[0].mxu0
    %v3076 = vadd.f32 0.0, %v3075
    %v3077 = vpop.f32.mrb[0].mxu0
    %3078 = vmatprep.mubr.f32.mxu0 0.0
    %3079 = vmatmul.mubr.f32.gmra.mrb[0].mxu0 %v2980
    %v3080 = vpop.f32.mrb[0].mxu0
    %v3081 = vadd.f32 0.0, %v3080
    %v3082 = vpop.f32.mrb[0].mxu0
    %3083 = vmatprep.mubr.f32.mxu0 0.0
    %3084 = vmatmul.mubr.f32.gmra.mrb[0].mxu0 %v2982
    %v3085 = vpop.f32.mrb[0].mxu0
    %v3086 = vadd.f32 0.0, %v3085
    %v3087 = vpop.f32.mrb[0].mxu0
    %3088 = vdwg.mxu0
    %3097 = vrot.lane.b32.xlu0 %v3051, 8
    %v3098 = vpop.permute.xlu0 %3097
    %3099 = vrot.lane.b32.xlu0 %v3056, 8
    %v3100 = vpop.permute.xlu0 %3099
    %3101 = vrot.lane.b32.xlu0 %v3061, 8
    %v3102 = vpop.permute.xlu0 %3101
    %3103 = vrot.lane.b32.xlu0 %v3066, 8
    %v3104 = vpop.permute.xlu0 %3103
    %3105 = vrot.lane.b32.xlu0 %v3071, 8
    %v3106 = vpop.permute.xlu0 %3105
    %3107 = vrot.lane.b32.xlu0 %v3076, 8
    %v3108 = vpop.permute.xlu0 %3107
    %3109 = vrot.lane.b32.xlu0 %v3081, 8
    %v3110 = vpop.permute.xlu0 %3109
    %3111 = vrot.lane.b32.xlu0 %v3086, 8
    %v3112 = vpop.permute.xlu0 %3111
    %v3121 = vadd.f32 %v2912, %v3098
    %v3122 = vadd.f32 %v2913, %v3100
    %v3123 = vadd.f32 %v2914, %v3102
    %v3124 = vadd.f32 %v2915, %v3104
    %v3125 = vadd.f32 %v2916, %v3106
    %v3126 = vadd.f32 %v2917, %v3108
    %v3127 = vadd.f32 %v2918, %v3110
    %v3128 = vadd.f32 %v2919, %v3112
    %3129 = vrot.lane.b32.xlu0 %v2092, 64
    %v3130 = vpop.permute.xlu0 %3129
    %3131 = vrot.lane.b32.xlu0 %v2097, 64
    %v3132 = vpop.permute.xlu0 %3131
    %3133 = vrot.lane.b32.xlu0 %v2102, 64
    %v3134 = vpop.permute.xlu0 %3133
    %3135 = vrot.lane.b32.xlu0 %v2107, 64
    %v3136 = vpop.permute.xlu0 %3135
    %3137 = vrot.lane.b32.xlu0 %v2112, 64
    %v3138 = vpop.permute.xlu0 %3137
    %3139 = vrot.lane.b32.xlu0 %v2117, 64
    %v3140 = vpop.permute.xlu0 %3139
    %3141 = vrot.lane.b32.xlu0 %v2122, 64
    %v3142 = vpop.permute.xlu0 %3141
    %3143 = vrot.lane.b32.xlu0 %v2127, 64
    %v3144 = vpop.permute.xlu0 %3143
    %v3154 = vsel %vm327, %v2736, 0
    %v3157 = vsel %vm327, %v2738, 0
    %v3160 = vsel %vm327, %v2740, 0
    %v3163 = vsel %vm327, %v2742, 0
    %v3166 = vsel %vm327, %v2744, 0
    %v3169 = vsel %vm327, %v2746, 0
    %v3172 = vsel %vm327, %v2748, 0
    %v3175 = vsel %vm327, %v2750, 0
    %3177 = vmatprep.subr.mxu0 0.0
    %3178 = vmatpush1.msra.mxu0 %v3130
    %3179 = vmatprep.subr.mxu0 0.0
    %3180 = vmatpush1.msra.mxu0 %v3132
    %3181 = vmatprep.subr.mxu0 0.0
    %3182 = vmatpush1.msra.mxu0 %v3134
    %3183 = vmatprep.subr.mxu0 0.0
    %3184 = vmatpush1.msra.mxu0 %v3136
    %3185 = vmatprep.subr.mxu0 0.0
    %3186 = vmatpush1.msra.mxu0 %v3138
    %3187 = vmatprep.subr.mxu0 0.0
    %3188 = vmatpush1.msra.mxu0 %v3140
    %3189 = vmatprep.subr.mxu0 0.0
    %3190 = vmatpush1.msra.mxu0 %v3142
    %3191 = vmatprep.subr.mxu0 0.0
    %3192 = vmatpush1.msra.mxu0 %v3144
    %3193 = vmatprep.subr.mxu0 0.0
    %3194 = vmatpush1.msra.mxu0 0.0
    %3195 = vmatprep.subr.mxu0 0.0
    %3196 = vmatpush1.msra.mxu0 0.0
    %3197 = vmatprep.subr.mxu0 0.0
    %3198 = vmatpush1.msra.mxu0 0.0
    %3199 = vmatprep.subr.mxu0 0.0
    %3200 = vmatpush1.msra.mxu0 0.0
    %3201 = vmatprep.subr.mxu0 0.0
    %3202 = vmatpush1.msra.mxu0 0.0
    %3203 = vmatprep.subr.mxu0 0.0
    %3204 = vmatpush1.msra.mxu0 0.0
    %3205 = vmatprep.subr.mxu0 0.0
    %3206 = vmatpush1.msra.mxu0 0.0
    %3207 = vmatprep.subr.mxu0 0.0
    %3208 = vmatpush1.msra.mxu0 0.0
    %3209 = vmatprep.subr.mxu0 0.0
    %3210 = vmatpush1.msra.mxu0 0.0
    %3211 = vmatprep.subr.mxu0 0.0
    %3212 = vmatpush1.msra.mxu0 0.0
    %3213 = vmatprep.subr.mxu0 0.0
    %3214 = vmatpush1.msra.mxu0 0.0
    %3215 = vmatprep.subr.mxu0 0.0
    %3216 = vmatpush1.msra.mxu0 0.0
    %3217 = vmatprep.subr.mxu0 0.0
    %3218 = vmatpush1.msra.mxu0 0.0
    %3219 = vmatprep.subr.mxu0 0.0
    %3220 = vmatpush1.msra.mxu0 0.0
    %3221 = vmatprep.subr.mxu0 0.0
    %3222 = vmatpush1.msra.mxu0 0.0
    %3223 = vmatprep.subr.mxu0 0.0
    %3224 = vmatpush1.msra.mxu0 0.0
    %3225 = vmatprep.subr.mxu0 0.0
    %3226 = vmatpush1.msra.mxu0 0.0
    %3227 = vmatprep.subr.mxu0 0.0
    %3228 = vmatpush1.msra.mxu0 0.0
    %3229 = vmatprep.subr.mxu0 0.0
    %3230 = vmatpush1.msra.mxu0 0.0
    %3231 = vmatprep.subr.mxu0 0.0
    %3232 = vmatpush1.msra.mxu0 0.0
    %3233 = vmatprep.subr.mxu0 0.0
    %3234 = vmatpush1.msra.mxu0 0.0
    %3235 = vmatprep.subr.mxu0 0.0
    %3236 = vmatpush1.msra.mxu0 0.0
    %3237 = vmatprep.subr.mxu0 0.0
    %3238 = vmatpush1.msra.mxu0 0.0
    %3239 = vmatprep.subr.mxu0 0.0
    %3240 = vmatpush1.msra.mxu0 0.0
    %3241 = vmatprep.mubr.f32.mxu0 0.0
    %3242 = vmatmul.mubr.f32.gmra.mrb[0].mxu0 %v3154
    %v3243 = vpop.f32.mrb[0].mxu0
    %v3244 = vadd.f32 0.0, %v3243
    %v3245 = vpop.f32.mrb[0].mxu0
    %3246 = vmatprep.mubr.f32.mxu0 0.0
    %3247 = vmatmul.mubr.f32.gmra.mrb[0].mxu0 %v3157
    %v3248 = vpop.f32.mrb[0].mxu0
    %v3249 = vadd.f32 0.0, %v3248
    %v3250 = vpop.f32.mrb[0].mxu0
    %3251 = vmatprep.mubr.f32.mxu0 0.0
    %3252 = vmatmul.mubr.f32.gmra.mrb[0].mxu0 %v3160
    %v3253 = vpop.f32.mrb[0].mxu0
    %v3254 = vadd.f32 0.0, %v3253
    %v3255 = vpop.f32.mrb[0].mxu0
    %3256 = vmatprep.mubr.f32.mxu0 0.0
    %3257 = vmatmul.mubr.f32.gmra.mrb[0].mxu0 %v3163
    %v3258 = vpop.f32.mrb[0].mxu0
    %v3259 = vadd.f32 0.0, %v3258
    %v3260 = vpop.f32.mrb[0].mxu0
    %3261 = vmatprep.mubr.f32.mxu0 0.0
    %3262 = vmatmul.mubr.f32.gmra.mrb[0].mxu0 %v3166
    %v3263 = vpop.f32.mrb[0].mxu0
    %v3264 = vadd.f32 0.0, %v3263
    %v3265 = vpop.f32.mrb[0].mxu0
    %3266 = vmatprep.mubr.f32.mxu0 0.0
    %3267 = vmatmul.mubr.f32.gmra.mrb[0].mxu0 %v3169
    %v3268 = vpop.f32.mrb[0].mxu0
    %v3269 = vadd.f32 0.0, %v3268
    %v3270 = vpop.f32.mrb[0].mxu0
    %3271 = vmatprep.mubr.f32.mxu0 0.0
    %3272 = vmatmul.mubr.f32.gmra.mrb[0].mxu0 %v3172
    %v3273 = vpop.f32.mrb[0].mxu0
    %v3274 = vadd.f32 0.0, %v3273
    %v3275 = vpop.f32.mrb[0].mxu0
    %3276 = vmatprep.mubr.f32.mxu0 0.0
    %3277 = vmatmul.mubr.f32.gmra.mrb[0].mxu0 %v3175
    %v3278 = vpop.f32.mrb[0].mxu0
    %v3279 = vadd.f32 0.0, %v3278
    %v3280 = vpop.f32.mrb[0].mxu0
    %3281 = vdwg.mxu0
    %3290 = vrot.lane.b32.xlu0 %v3244, 8
    %v3291 = vpop.permute.xlu0 %3290
    %3292 = vrot.lane.b32.xlu0 %v3249, 8
    %v3293 = vpop.permute.xlu0 %3292
    %3294 = vrot.lane.b32.xlu0 %v3254, 8
    %v3295 = vpop.permute.xlu0 %3294
    %3296 = vrot.lane.b32.xlu0 %v3259, 8
    %v3297 = vpop.permute.xlu0 %3296
    %3298 = vrot.lane.b32.xlu0 %v3264, 8
    %v3299 = vpop.permute.xlu0 %3298
    %3300 = vrot.lane.b32.xlu0 %v3269, 8
    %v3301 = vpop.permute.xlu0 %3300
    %3302 = vrot.lane.b32.xlu0 %v3274, 8
    %v3303 = vpop.permute.xlu0 %3302
    %3304 = vrot.lane.b32.xlu0 %v3279, 8
    %v3305 = vpop.permute.xlu0 %3304
    %v3314 = vadd.f32 %v3121, %v3291
    %v3315 = vadd.f32 %v3122, %v3293
    %v3316 = vadd.f32 %v3123, %v3295
    %v3317 = vadd.f32 %v3124, %v3297
    %v3318 = vadd.f32 %v3125, %v3299
    %v3319 = vadd.f32 %v3126, %v3301
    %v3320 = vadd.f32 %v3127, %v3303
    %v3321 = vadd.f32 %v3128, %v3305
    %3322 = vrot.lane.b32.xlu0 %v2736, 64
    %v3323 = vpop.permute.xlu0 %3322
    %3324 = vrot.lane.b32.xlu0 %v2738, 64
    %v3325 = vpop.permute.xlu0 %3324
    %3326 = vrot.lane.b32.xlu0 %v2740, 64
    %v3327 = vpop.permute.xlu0 %3326
    %3328 = vrot.lane.b32.xlu0 %v2742, 64
    %v3329 = vpop.permute.xlu0 %3328
    %3330 = vrot.lane.b32.xlu0 %v2744, 64
    %v3331 = vpop.permute.xlu0 %3330
    %3332 = vrot.lane.b32.xlu0 %v2746, 64
    %v3333 = vpop.permute.xlu0 %3332
    %3334 = vrot.lane.b32.xlu0 %v2748, 64
    %v3335 = vpop.permute.xlu0 %3334
    %3336 = vrot.lane.b32.xlu0 %v2750, 64
    %v3337 = vpop.permute.xlu0 %3336
    %3338 = vrot.lane.b32.xlu0 %v2092, 32
    %v3339 = vpop.permute.xlu0 %3338
    %3340 = vrot.lane.b32.xlu0 %v2097, 32
    %v3341 = vpop.permute.xlu0 %3340
    %3342 = vrot.lane.b32.xlu0 %v2102, 32
    %v3343 = vpop.permute.xlu0 %3342
    %3344 = vrot.lane.b32.xlu0 %v2107, 32
    %v3345 = vpop.permute.xlu0 %3344
    %3346 = vrot.lane.b32.xlu0 %v2112, 32
    %v3347 = vpop.permute.xlu0 %3346
    %3348 = vrot.lane.b32.xlu0 %v2117, 32
    %v3349 = vpop.permute.xlu0 %3348
    %3350 = vrot.lane.b32.xlu0 %v2122, 32
    %v3351 = vpop.permute.xlu0 %3350
    %3352 = vrot.lane.b32.xlu0 %v2127, 32
    %v3353 = vpop.permute.xlu0 %3352
    %v3362 = vsel %vm327, %v3323, 0
    %v3364 = vsel %vm327, %v3325, 0
    %v3366 = vsel %vm327, %v3327, 0
    %v3368 = vsel %vm327, %v3329, 0
    %v3370 = vsel %vm327, %v3331, 0
    %v3372 = vsel %vm327, %v3333, 0
    %v3374 = vsel %vm327, %v3335, 0
    %v3376 = vsel %vm327, %v3337, 0
    %3378 = vmatprep.subr.mxu0 0.0
    %3379 = vmatpush1.msra.mxu0 %v3339
    %3380 = vmatprep.subr.mxu0 0.0
    %3381 = vmatpush1.msra.mxu0 %v3341
    %3382 = vmatprep.subr.mxu0 0.0
    %3383 = vmatpush1.msra.mxu0 %v3343
    %3384 = vmatprep.subr.mxu0 0.0
    %3385 = vmatpush1.msra.mxu0 %v3345
    %3386 = vmatprep.subr.mxu0 0.0
    %3387 = vmatpush1.msra.mxu0 %v3347
    %3388 = vmatprep.subr.mxu0 0.0
    %3389 = vmatpush1.msra.mxu0 %v3349
    %3390 = vmatprep.subr.mxu0 0.0
    %3391 = vmatpush1.msra.mxu0 %v3351
    %3392 = vmatprep.subr.mxu0 0.0
    %3393 = vmatpush1.msra.mxu0 %v3353
    %3394 = vmatprep.subr.mxu0 0.0
    %3395 = vmatpush1.msra.mxu0 0.0
    %3396 = vmatprep.subr.mxu0 0.0
    %3397 = vmatpush1.msra.mxu0 0.0
    %3398 = vmatprep.subr.mxu0 0.0
    %3399 = vmatpush1.msra.mxu0 0.0
    %3400 = vmatprep.subr.mxu0 0.0
    %3401 = vmatpush1.msra.mxu0 0.0
    %3402 = vmatprep.subr.mxu0 0.0
    %3403 = vmatpush1.msra.mxu0 0.0
    %3404 = vmatprep.subr.mxu0 0.0
    %3405 = vmatpush1.msra.mxu0 0.0
    %3406 = vmatprep.subr.mxu0 0.0
    %3407 = vmatpush1.msra.mxu0 0.0
    %3408 = vmatprep.subr.mxu0 0.0
    %3409 = vmatpush1.msra.mxu0 0.0
    %3410 = vmatprep.subr.mxu0 0.0
    %3411 = vmatpush1.msra.mxu0 0.0
    %3412 = vmatprep.subr.mxu0 0.0
    %3413 = vmatpush1.msra.mxu0 0.0
    %3414 = vmatprep.subr.mxu0 0.0
    %3415 = vmatpush1.msra.mxu0 0.0
    %3416 = vmatprep.subr.mxu0 0.0
    %3417 = vmatpush1.msra.mxu0 0.0
    %3418 = vmatprep.subr.mxu0 0.0
    %3419 = vmatpush1.msra.mxu0 0.0
    %3420 = vmatprep.subr.mxu0 0.0
    %3421 = vmatpush1.msra.mxu0 0.0
    %3422 = vmatprep.subr.mxu0 0.0
    %3423 = vmatpush1.msra.mxu0 0.0
    %3424 = vmatprep.subr.mxu0 0.0
    %3425 = vmatpush1.msra.mxu0 0.0
    %3426 = vmatprep.subr.mxu0 0.0
    %3427 = vmatpush1.msra.mxu0 0.0
    %3428 = vmatprep.subr.mxu0 0.0
    %3429 = vmatpush1.msra.mxu0 0.0
    %3430 = vmatprep.subr.mxu0 0.0
    %3431 = vmatpush1.msra.mxu0 0.0
    %3432 = vmatprep.subr.mxu0 0.0
    %3433 = vmatpush1.msra.mxu0 0.0
    %3434 = vmatprep.subr.mxu0 0.0
    %3435 = vmatpush1.msra.mxu0 0.0
    %3436 = vmatprep.subr.mxu0 0.0
    %3437 = vmatpush1.msra.mxu0 0.0
    %3438 = vmatprep.subr.mxu0 0.0
    %3439 = vmatpush1.msra.mxu0 0.0
    %3440 = vmatprep.subr.mxu0 0.0
    %3441 = vmatpush1.msra.mxu0 0.0
    %3442 = vmatprep.mubr.f32.mxu0 0.0
    %3443 = vmatmul.mubr.f32.gmra.mrb[0].mxu0 %v3362
    %v3444 = vpop.f32.mrb[0].mxu0
    %v3445 = vadd.f32 0.0, %v3444
    %v3446 = vpop.f32.mrb[0].mxu0
    %3447 = vmatprep.mubr.f32.mxu0 0.0
    %3448 = vmatmul.mubr.f32.gmra.mrb[0].mxu0 %v3364
    %v3449 = vpop.f32.mrb[0].mxu0
    %v3450 = vadd.f32 0.0, %v3449
    %v3451 = vpop.f32.mrb[0].mxu0
    %3452 = vmatprep.mubr.f32.mxu0 0.0
    %3453 = vmatmul.mubr.f32.gmra.mrb[0].mxu0 %v3366
    %v3454 = vpop.f32.mrb[0].mxu0
    %v3455 = vadd.f32 0.0, %v3454
    %v3456 = vpop.f32.mrb[0].mxu0
    %3457 = vmatprep.mubr.f32.mxu0 0.0
    %3458 = vmatmul.mubr.f32.gmra.mrb[0].mxu0 %v3368
    %v3459 = vpop.f32.mrb[0].mxu0
    %v3460 = vadd.f32 0.0, %v3459
    %v3461 = vpop.f32.mrb[0].mxu0
    %3462 = vmatprep.mubr.f32.mxu0 0.0
    %3463 = vmatmul.mubr.f32.gmra.mrb[0].mxu0 %v3370
    %v3464 = vpop.f32.mrb[0].mxu0
    %v3465 = vadd.f32 0.0, %v3464
    %v3466 = vpop.f32.mrb[0].mxu0
    %3467 = vmatprep.mubr.f32.mxu0 0.0
    %3468 = vmatmul.mubr.f32.gmra.mrb[0].mxu0 %v3372
    %v3469 = vpop.f32.mrb[0].mxu0
    %v3470 = vadd.f32 0.0, %v3469
    %v3471 = vpop.f32.mrb[0].mxu0
    %3472 = vmatprep.mubr.f32.mxu0 0.0
    %3473 = vmatmul.mubr.f32.gmra.mrb[0].mxu0 %v3374
    %v3474 = vpop.f32.mrb[0].mxu0
    %v3475 = vadd.f32 0.0, %v3474
    %v3476 = vpop.f32.mrb[0].mxu0
    %3477 = vmatprep.mubr.f32.mxu0 0.0
    %3478 = vmatmul.mubr.f32.gmra.mrb[0].mxu0 %v3376
    %v3479 = vpop.f32.mrb[0].mxu0
    %v3480 = vadd.f32 0.0, %v3479
    %v3481 = vpop.f32.mrb[0].mxu0
    %3482 = vdwg.mxu0
    %3491 = vrot.lane.b32.xlu0 %v3445, 8
    %v3492 = vpop.permute.xlu0 %3491
    %3493 = vrot.lane.b32.xlu0 %v3450, 8
    %v3494 = vpop.permute.xlu0 %3493
    %3495 = vrot.lane.b32.xlu0 %v3455, 8
    %v3496 = vpop.permute.xlu0 %3495
    %3497 = vrot.lane.b32.xlu0 %v3460, 8
    %v3498 = vpop.permute.xlu0 %3497
    %3499 = vrot.lane.b32.xlu0 %v3465, 8
    %v3500 = vpop.permute.xlu0 %3499
    %3501 = vrot.lane.b32.xlu0 %v3470, 8
    %v3502 = vpop.permute.xlu0 %3501
    %3503 = vrot.lane.b32.xlu0 %v3475, 8
    %v3504 = vpop.permute.xlu0 %3503
    %3505 = vrot.lane.b32.xlu0 %v3480, 8
    %v3506 = vpop.permute.xlu0 %3505
    %v3515 = vadd.f32 %v3314, %v3492
    %v3516 = vadd.f32 %v3315, %v3494
    %v3517 = vadd.f32 %v3316, %v3496
    %v3518 = vadd.f32 %v3317, %v3498
    %v3519 = vadd.f32 %v3318, %v3500
    %v3520 = vadd.f32 %v3319, %v3502
    %v3521 = vadd.f32 %v3320, %v3504
    %v3522 = vadd.f32 %v3321, %v3506
    %v3523 = vld [vmem:[#allocation2 + $0x38] sm:$0xff]
    %v3524 = vld [vmem:[#allocation2 + $0x40] sm:$0xff]
    %v3525 = vld [vmem:[#allocation2 + $0x48] sm:$0xff]
    %v3526 = vld [vmem:[#allocation2 + $0x50] sm:$0xff]
    %v3527 = vld [vmem:[#allocation2 + $0x58] sm:$0x1]
    %v3528 = vlaneseq
    %v3529 = vshrl.u32 %v3528, 7
    %v3530 = vsub.s32 0, %v3529
    %v3531 = vrot.slane %v3527, %v3530
    %3540 = vrot.lane.b32.xlu0 %v3515, 120
    %v3541 = vpop.permute.xlu0 %3540
    %3542 = vrot.lane.b32.xlu0 %v3516, 120
    %v3543 = vpop.permute.xlu0 %3542
    %3544 = vrot.lane.b32.xlu0 %v3517, 120
    %v3545 = vpop.permute.xlu0 %3544
    %3546 = vrot.lane.b32.xlu0 %v3518, 120
    %v3547 = vpop.permute.xlu0 %3546
    %3548 = vrot.lane.b32.xlu0 %v3519, 120
    %v3549 = vpop.permute.xlu0 %3548
    %3550 = vrot.lane.b32.xlu0 %v3520, 120
    %v3551 = vpop.permute.xlu0 %3550
    %3552 = vrot.lane.b32.xlu0 %v3521, 120
    %v3553 = vpop.permute.xlu0 %3552
    %3554 = vrot.lane.b32.xlu0 %v3522, 120
    %v3555 = vpop.permute.xlu0 %3554
    %v3556 = vsel %vm197, %v3541, 0
    %v3558 = vsel %vm197, %v3543, 0
    %v3560 = vsel %vm197, %v3545, 0
    %v3562 = vsel %vm197, %v3547, 0
    %v3564 = vsel %vm197, %v3549, 0
    %v3566 = vsel %vm197, %v3551, 0
    %v3568 = vsel %vm197, %v3553, 0
    %v3570 = vsel %vm197, %v3555, 0
    %3572 = vmatprep.subr.mxu0 0.0
    %3573 = vmatpush1.msra.mxu0 %v3523
    %3574 = vmatprep.subr.mxu0 0.0
    %3575 = vmatpush1.msra.mxu0 %v3524
    %3576 = vmatprep.subr.mxu0 0.0
    %3577 = vmatpush1.msra.mxu0 %v3525
    %3578 = vmatprep.subr.mxu0 0.0
    %3579 = vmatpush1.msra.mxu0 %v3526
    %3580 = vmatprep.subr.mxu0 0.0
    %3581 = vmatpush1.msra.mxu0 0.0
    %3582 = vmatprep.subr.mxu0 0.0
    %3583 = vmatpush1.msra.mxu0 0.0
    %3584 = vmatprep.subr.mxu0 0.0
    %3585 = vmatpush1.msra.mxu0 0.0
    %3586 = vmatprep.subr.mxu0 0.0
    %3587 = vmatpush1.msra.mxu0 0.0
    %3588 = vmatprep.subr.mxu0 0.0
    %3589 = vmatpush1.msra.mxu0 0.0
    %3590 = vmatprep.subr.mxu0 0.0
    %3591 = vmatpush1.msra.mxu0 0.0
    %3592 = vmatprep.subr.mxu0 0.0
    %3593 = vmatpush1.msra.mxu0 0.0
    %3594 = vmatprep.subr.mxu0 0.0
    %3595 = vmatpush1.msra.mxu0 0.0
    %3596 = vmatprep.subr.mxu0 0.0
    %3597 = vmatpush1.msra.mxu0 0.0
    %3598 = vmatprep.subr.mxu0 0.0
    %3599 = vmatpush1.msra.mxu0 0.0
    %3600 = vmatprep.subr.mxu0 0.0
    %3601 = vmatpush1.msra.mxu0 0.0
    %3602 = vmatprep.subr.mxu0 0.0
    %3603 = vmatpush1.msra.mxu0 0.0
    %3604 = vmatprep.subr.mxu0 0.0
    %3605 = vmatpush1.msra.mxu0 0.0
    %3606 = vmatprep.subr.mxu0 0.0
    %3607 = vmatpush1.msra.mxu0 0.0
    %3608 = vmatprep.subr.mxu0 0.0
    %3609 = vmatpush1.msra.mxu0 0.0
    %3610 = vmatprep.subr.mxu0 0.0
    %3611 = vmatpush1.msra.mxu0 0.0
    %3612 = vmatprep.subr.mxu0 0.0
    %3613 = vmatpush1.msra.mxu0 0.0
    %3614 = vmatprep.subr.mxu0 0.0
    %3615 = vmatpush1.msra.mxu0 0.0
    %3616 = vmatprep.subr.mxu0 0.0
    %3617 = vmatpush1.msra.mxu0 0.0
    %3618 = vmatprep.subr.mxu0 0.0
    %3619 = vmatpush1.msra.mxu0 0.0
    %3620 = vmatprep.subr.mxu0 0.0
    %3621 = vmatpush1.msra.mxu0 0.0
    %3622 = vmatprep.subr.mxu0 0.0
    %3623 = vmatpush1.msra.mxu0 0.0
    %3624 = vmatprep.subr.mxu0 0.0
    %3625 = vmatpush1.msra.mxu0 0.0
    %3626 = vmatprep.subr.mxu0 0.0
    %3627 = vmatpush1.msra.mxu0 0.0
    %3628 = vmatprep.subr.mxu0 0.0
    %3629 = vmatpush1.msra.mxu0 0.0
    %3630 = vmatprep.subr.mxu0 0.0
    %3631 = vmatpush1.msra.mxu0 0.0
    %3632 = vmatprep.subr.mxu0 0.0
    %3633 = vmatpush1.msra.mxu0 0.0
    %3634 = vmatprep.subr.mxu0 0.0
    %3635 = vmatpush1.msra.mxu0 0.0
    %3636 = vmatprep.mubr.f32.mxu0 0.0
    %3637 = vmatmul.mubr.f32.gmra.mrb[0].mxu0 %v3556
    %v3638 = vpop.f32.mrb[0].mxu0
    %v3639 = vadd.f32 %v3531, %v3638
    %v3640 = vpop.f32.mrb[0].mxu0
    %3641 = vmatprep.mubr.f32.mxu0 0.0
    %3642 = vmatmul.mubr.f32.gmra.mrb[0].mxu0 %v3558
    %v3643 = vpop.f32.mrb[0].mxu0
    %v3644 = vadd.f32 %v3531, %v3643
    %v3645 = vpop.f32.mrb[0].mxu0
    %3646 = vmatprep.mubr.f32.mxu0 0.0
    %3647 = vmatmul.mubr.f32.gmra.mrb[0].mxu0 %v3560
    %v3648 = vpop.f32.mrb[0].mxu0
    %v3649 = vadd.f32 %v3531, %v3648
    %v3650 = vpop.f32.mrb[0].mxu0
    %3651 = vmatprep.mubr.f32.mxu0 0.0
    %3652 = vmatmul.mubr.f32.gmra.mrb[0].mxu0 %v3562
    %v3653 = vpop.f32.mrb[0].mxu0
    %v3654 = vadd.f32 %v3531, %v3653
    %v3655 = vpop.f32.mrb[0].mxu0
    %3656 = vmatprep.mubr.f32.mxu0 0.0
    %3657 = vmatmul.mubr.f32.gmra.mrb[0].mxu0 %v3564
    %v3658 = vpop.f32.mrb[0].mxu0
    %v3659 = vadd.f32 %v3531, %v3658
    %v3660 = vpop.f32.mrb[0].mxu0
    %3661 = vmatprep.mubr.f32.mxu0 0.0
    %3662 = vmatmul.mubr.f32.gmra.mrb[0].mxu0 %v3566
    %v3663 = vpop.f32.mrb[0].mxu0
    %v3664 = vadd.f32 %v3531, %v3663
    %v3665 = vpop.f32.mrb[0].mxu0
    %3666 = vmatprep.mubr.f32.mxu0 0.0
    %3667 = vmatmul.mubr.f32.gmra.mrb[0].mxu0 %v3568
    %v3668 = vpop.f32.mrb[0].mxu0
    %v3669 = vadd.f32 %v3531, %v3668
    %v3670 = vpop.f32.mrb[0].mxu0
    %3671 = vmatprep.mubr.f32.mxu0 0.0
    %3672 = vmatmul.mubr.f32.gmra.mrb[0].mxu0 %v3570
    %v3673 = vpop.f32.mrb[0].mxu0
    %v3674 = vadd.f32 %v3531, %v3673
    %v3675 = vpop.f32.mrb[0].mxu0
    %3676 = vdwg.mxu0
    %v3677 = vmax.f32 %v3639, 0.0
    %v3678 = vmax.f32 %v3644, 0.0
    %v3679 = vmax.f32 %v3649, 0.0
    %v3680 = vmax.f32 %v3654, 0.0
    %v3681 = vmax.f32 %v3659, 0.0
    %v3682 = vmax.f32 %v3664, 0.0
    %v3683 = vmax.f32 %v3669, 0.0
    %v3684 = vmax.f32 %v3674, 0.0
    %v3685 = vld [vmem:[#allocation2 + $0x60] sm:$0xff]
    %v3686 = vld [vmem:[#allocation2 + $0x68] sm:$0xff]
    %v3687 = vld [vmem:[#allocation2 + $0x70] sm:$0xff]
    %v3688 = vld [vmem:[#allocation2 + $0x78] sm:$0xff]
    %v3689 = vld [vmem:[#allocation2 + $0x80] sm:$0x1]
    %v3690 = vlaneseq
    %v3691 = vshrl.u32 %v3690, 7
    %v3692 = vsub.s32 0, %v3691
    %v3693 = vrot.slane %v3689, %v3692
    %v3695 = vsel %vm197, %v3677, 0
    %v3698 = vsel %vm197, %v3678, 0
    %v3701 = vsel %vm197, %v3679, 0
    %v3704 = vsel %vm197, %v3680, 0
    %v3707 = vsel %vm197, %v3681, 0
    %v3710 = vsel %vm197, %v3682, 0
    %v3713 = vsel %vm197, %v3683, 0
    %v3716 = vsel %vm197, %v3684, 0
    %3718 = vmatprep.subr.mxu0 0.0
    %3719 = vmatpush1.msra.mxu0 %v3685
    %3720 = vmatprep.subr.mxu0 0.0
    %3721 = vmatpush1.msra.mxu0 %v3686
    %3722 = vmatprep.subr.mxu0 0.0
    %3723 = vmatpush1.msra.mxu0 %v3687
    %3724 = vmatprep.subr.mxu0 0.0
    %3725 = vmatpush1.msra.mxu0 %v3688
    %3726 = vmatprep.subr.mxu0 0.0
    %3727 = vmatpush1.msra.mxu0 0.0
    %3728 = vmatprep.subr.mxu0 0.0
    %3729 = vmatpush1.msra.mxu0 0.0
    %3730 = vmatprep.subr.mxu0 0.0
    %3731 = vmatpush1.msra.mxu0 0.0
    %3732 = vmatprep.subr.mxu0 0.0
    %3733 = vmatpush1.msra.mxu0 0.0
    %3734 = vmatprep.subr.mxu0 0.0
    %3735 = vmatpush1.msra.mxu0 0.0
    %3736 = vmatprep.subr.mxu0 0.0
    %3737 = vmatpush1.msra.mxu0 0.0
    %3738 = vmatprep.subr.mxu0 0.0
    %3739 = vmatpush1.msra.mxu0 0.0
    %3740 = vmatprep.subr.mxu0 0.0
    %3741 = vmatpush1.msra.mxu0 0.0
    %3742 = vmatprep.subr.mxu0 0.0
    %3743 = vmatpush1.msra.mxu0 0.0
    %3744 = vmatprep.subr.mxu0 0.0
    %3745 = vmatpush1.msra.mxu0 0.0
    %3746 = vmatprep.subr.mxu0 0.0
    %3747 = vmatpush1.msra.mxu0 0.0
    %3748 = vmatprep.subr.mxu0 0.0
    %3749 = vmatpush1.msra.mxu0 0.0
    %3750 = vmatprep.subr.mxu0 0.0
    %3751 = vmatpush1.msra.mxu0 0.0
    %3752 = vmatprep.subr.mxu0 0.0
    %3753 = vmatpush1.msra.mxu0 0.0
    %3754 = vmatprep.subr.mxu0 0.0
    %3755 = vmatpush1.msra.mxu0 0.0
    %3756 = vmatprep.subr.mxu0 0.0
    %3757 = vmatpush1.msra.mxu0 0.0
    %3758 = vmatprep.subr.mxu0 0.0
    %3759 = vmatpush1.msra.mxu0 0.0
    %3760 = vmatprep.subr.mxu0 0.0
    %3761 = vmatpush1.msra.mxu0 0.0
    %3762 = vmatprep.subr.mxu0 0.0
    %3763 = vmatpush1.msra.mxu0 0.0
    %3764 = vmatprep.subr.mxu0 0.0
    %3765 = vmatpush1.msra.mxu0 0.0
    %3766 = vmatprep.subr.mxu0 0.0
    %3767 = vmatpush1.msra.mxu0 0.0
    %3768 = vmatprep.subr.mxu0 0.0
    %3769 = vmatpush1.msra.mxu0 0.0
    %3770 = vmatprep.subr.mxu0 0.0
    %3771 = vmatpush1.msra.mxu0 0.0
    %3772 = vmatprep.subr.mxu0 0.0
    %3773 = vmatpush1.msra.mxu0 0.0
    %3774 = vmatprep.subr.mxu0 0.0
    %3775 = vmatpush1.msra.mxu0 0.0
    %3776 = vmatprep.subr.mxu0 0.0
    %3777 = vmatpush1.msra.mxu0 0.0
    %3778 = vmatprep.subr.mxu0 0.0
    %3779 = vmatpush1.msra.mxu0 0.0
    %3780 = vmatprep.subr.mxu0 0.0
    %3781 = vmatpush1.msra.mxu0 0.0
    %3782 = vmatprep.mubr.f32.mxu0 0.0
    %3783 = vmatmul.mubr.f32.gmra.mrb[0].mxu0 %v3695
    %v3784 = vpop.f32.mrb[0].mxu0
    %v3785 = vadd.f32 %v3693, %v3784
    %v3786 = vpop.f32.mrb[0].mxu0
    %3787 = vmatprep.mubr.f32.mxu0 0.0
    %3788 = vmatmul.mubr.f32.gmra.mrb[0].mxu0 %v3698
    %v3789 = vpop.f32.mrb[0].mxu0
    %v3790 = vadd.f32 %v3693, %v3789
    %v3791 = vpop.f32.mrb[0].mxu0
    %3792 = vmatprep.mubr.f32.mxu0 0.0
    %3793 = vmatmul.mubr.f32.gmra.mrb[0].mxu0 %v3701
    %v3794 = vpop.f32.mrb[0].mxu0
    %v3795 = vadd.f32 %v3693, %v3794
    %v3796 = vpop.f32.mrb[0].mxu0
    %3797 = vmatprep.mubr.f32.mxu0 0.0
    %3798 = vmatmul.mubr.f32.gmra.mrb[0].mxu0 %v3704
    %v3799 = vpop.f32.mrb[0].mxu0
    %v3800 = vadd.f32 %v3693, %v3799
    %v3801 = vpop.f32.mrb[0].mxu0
    %3802 = vmatprep.mubr.f32.mxu0 0.0
    %3803 = vmatmul.mubr.f32.gmra.mrb[0].mxu0 %v3707
    %v3804 = vpop.f32.mrb[0].mxu0
    %v3805 = vadd.f32 %v3693, %v3804
    %v3806 = vpop.f32.mrb[0].mxu0
    %3807 = vmatprep.mubr.f32.mxu0 0.0
    %3808 = vmatmul.mubr.f32.gmra.mrb[0].mxu0 %v3710
    %v3809 = vpop.f32.mrb[0].mxu0
    %v3810 = vadd.f32 %v3693, %v3809
    %v3811 = vpop.f32.mrb[0].mxu0
    %3812 = vmatprep.mubr.f32.mxu0 0.0
    %3813 = vmatmul.mubr.f32.gmra.mrb[0].mxu0 %v3713
    %v3814 = vpop.f32.mrb[0].mxu0
    %v3815 = vadd.f32 %v3693, %v3814
    %v3816 = vpop.f32.mrb[0].mxu0
    %3817 = vmatprep.mubr.f32.mxu0 0.0
    %3818 = vmatmul.mubr.f32.gmra.mrb[0].mxu0 %v3716
    %v3819 = vpop.f32.mrb[0].mxu0
    %v3820 = vadd.f32 %v3693, %v3819
    %v3821 = vpop.f32.mrb[0].mxu0
    %3822 = vdwg.mxu0
    %3823 = vst [vmem:[%s3] sm:$0xff] %v3785
    %3824 = vst [vmem:[%s3 + $0x8] sm:$0xff] %v3790
    %3825 = vst [vmem:[%s3 + $0x10] sm:$0xff] %v3795
    %3826 = vst [vmem:[%s3 + $0x18] sm:$0xff] %v3800
    %3827 = vst [vmem:[%s3 + $0x20] sm:$0xff] %v3805
    %3828 = vst [vmem:[%s3 + $0x28] sm:$0xff] %v3810
    %3829 = vst [vmem:[%s3 + $0x30] sm:$0xff] %v3815
    %3830 = vst [vmem:[%s3 + $0x38] sm:$0xff] %v3820
    // Predicated region
    $region18: #{mesh_seg_forward.1} parent=1 // pred_check
      _
    $region19: #{mesh_seg_forward.1} parent=1 // pred_check_branch
      %3832 = sbr.rel (0) target = $region21
    $region20: #{mesh_seg_forward.1} parent=1 // pred_region
      _
    $region21: #{mesh_seg_forward.1} parent=1 // pred_fallthru
      _
    // Predicated region
    $region22: #{mesh_seg_forward.1} parent=1 // pred_check
      _
    $region23: #{mesh_seg_forward.1} parent=1 // pred_check_branch
      %3834 = sbr.rel (0) target = $region25
    $region24: #{mesh_seg_forward.1} parent=1 // pred_region
      _
    $region25: #{mesh_seg_forward.1} parent=1 // pred_fallthru
      _
    %3835 = vsyncpa [#allocation3], 1

</llo_original>
